<compile_context>
chip_gen: v5e
topology: v5e:2x2
jax: 0.10.0
libtpu: 0.0.40
codegen_flags: <defaults>
</compile_context>

<pallas_src>
import functools

import jax
import jax.numpy as jnp
from jax.experimental import pallas as pl
from jax.experimental.pallas import tpu as pltpu

EPS = 1e-5


# ----------------------------------------------------------------------------
# In-kernel GroupNorm on a (HW, C) f32 tile.
#   memb:  (C, G) one-hot channel->group membership, membT: (G, C)
#   inv_cnt: python float, 1 / (HW * channels_per_group)
# Stats use E[x^2] - E[x]^2 in f32 (fine at these activation scales).
# ----------------------------------------------------------------------------
def _group_norm(y, gamma, beta, memb, membT, inv_cnt):
    s = jnp.sum(y, axis=0, keepdims=True)           # (1, C)
    sq = jnp.sum(y * y, axis=0, keepdims=True)      # (1, C)
    # Stack [sum; sumsq] into a (2, C) tile via broadcast+select (avoids an
    # in-kernel concatenate) so both group projections share one MXU pass.
    sel = jax.lax.broadcasted_iota(jnp.int32, (2, 1), 0)
    stats = jnp.where(sel == 0, s, sq)              # (2, C)
    g = jnp.dot(stats, memb, preferred_element_type=jnp.float32) * inv_cnt  # (2, G)
    mean_g = g[0:1, :]
    var_g = g[1:2, :] - mean_g * mean_g
    rstd_g = jax.lax.rsqrt(var_g + EPS)
    mb = jnp.where(sel == 0, mean_g, rstd_g)        # (2, G) = [mean; rstd]
    back = jnp.dot(mb, membT, preferred_element_type=jnp.float32)           # (2, C)
    scale = back[1:2, :] * gamma                    # rstd_c * gamma
    bias = beta - back[0:1, :] * scale              # beta - mean_c * scale
    return y * scale + bias                         # single FMA per element


# ----------------------------------------------------------------------------
# Fused Bottleneck kernel: one grid step == one image.
# ----------------------------------------------------------------------------
def _bottleneck_kernel(x_ref, w1_ref, w2_ref, w3_ref,
                       g1_ref, b1_ref, g2_ref, b2_ref, g3_ref, b3_ref,
                       m1_ref, m1t_ref, m3_ref, m3t_ref,
                       o_ref, xpad_ref,
                       *, H, W, d, inv_cnt1, inv_cnt3):
    HW = H * W
    P = w1_ref.shape[-1]

    x = x_ref[0]                                    # (HW, Cin) f32; also the residual

    # ---- stage 1: 1x1 conv (bf16 MXU operands, f32 acc) + GN + ReLU --------
    y1 = jnp.dot(x.astype(jnp.bfloat16), w1_ref[...],
                 preferred_element_type=jnp.float32)                        # (HW, P)
    y1 = _group_norm(y1, g1_ref[...], b1_ref[...], m1_ref[...], m1t_ref[...],
                     inv_cnt1)
    y1 = jnp.maximum(y1, 0.0)

    # ---- stage 2: 3x3 dilated conv on an in-VMEM zero-padded copy ----------
    xpad_ref[...] = jnp.zeros_like(xpad_ref)        # zero halo (cheap, always safe)
    xpad_ref[d:d + H, d:d + W, :] = y1.reshape(H, W, P).astype(xpad_ref.dtype)

    acc = jnp.zeros((HW, P), jnp.float32)
    for kx in range(3):
        # one unaligned (sublane) W-shift per kx, reused across the 3 ky taps
        col = xpad_ref[:, kx * d:kx * d + W, :].astype(jnp.bfloat16)        # (H+2d, W, P)
        for ky in range(3):
            patch = col[ky * d:ky * d + H].reshape(HW, P)   # H slice: major dim, free
            acc = acc + jnp.dot(patch, w2_ref[ky * 3 + kx],
                                preferred_element_type=jnp.float32)
    y2 = _group_norm(acc, g2_ref[...], b2_ref[...], m1_ref[...], m1t_ref[...],
                     inv_cnt1)
    y2 = jnp.maximum(y2, 0.0)

    # ---- stage 3: 1x1 conv + GN + residual add + ReLU -----------------------
    y3 = jnp.dot(y2.astype(jnp.bfloat16), w3_ref[...],
                 preferred_element_type=jnp.float32)                        # (HW, Cout)
    y3 = _group_norm(y3, g3_ref[...], b3_ref[...], m3_ref[...], m3t_ref[...],
                     inv_cnt3)
    o_ref[0] = jnp.maximum(y3 + x, 0.0).astype(o_ref.dtype)


# ----------------------------------------------------------------------------
# Parameter helpers + full Bottleneck forward (wrapper)
# ----------------------------------------------------------------------------
def _num_groups(c):
    # Assumed GroupNorm default of the wrapped layer: min(32, C) groups.
    g = min(32, c)
    assert c % g == 0
    return g


def _membership(c, g):
    idx = jnp.arange(c) // (c // g)
    memb = (idx[:, None] == jnp.arange(g)[None, :]).astype(jnp.float32)  # (C, G)
    return memb, memb.T


def init_bottleneck_params(key, inplanes, planes):
    exp = 4
    ks = jax.random.split(key, 9)
    p = {
        # PyTorch OIHW conv weights
        "conv1_w": 0.1 * jax.random.normal(ks[0], (planes, inplanes, 1, 1), jnp.float32),
        "conv2_w": 0.1 * jax.random.normal(ks[1], (planes, planes, 3, 3), jnp.float32),
        "conv3_w": 0.1 * jax.random.normal(ks[2], (planes * exp, planes, 1, 1), jnp.float32),
        "gn1_g": 1.0 + 0.1 * jax.random.normal(ks[3], (planes,), jnp.float32),
        "gn1_b": 0.1 * jax.random.normal(ks[4], (planes,), jnp.float32),
        "gn2_g": 1.0 + 0.1 * jax.random.normal(ks[5], (planes,), jnp.float32),
        "gn2_b": 0.1 * jax.random.normal(ks[6], (planes,), jnp.float32),
        "gn3_g": 1.0 + 0.1 * jax.random.normal(ks[7], (planes * exp,), jnp.float32),
        "gn3_b": 0.1 * jax.random.normal(ks[8], (planes * exp,), jnp.float32),
    }
    return p


def bottleneck_forward(x_nchw, params, dilation=1):
    # layout: input/output NCHW (PyTorch convention); internals (N, H*W, C).
    N, Cin, H, W = x_nchw.shape
    planes = params["conv1_w"].shape[0]
    out_c = params["conv3_w"].shape[0]
    # No-downsample residual requires inplanes == planes*expansion.
    assert Cin == out_c, "downsample branch not implemented (inplanes != planes*4)"

    d = int(dilation)
    g1 = _num_groups(planes)
    g3 = _num_groups(out_c)
    memb1, memb1T = _membership(planes, g1)
    memb3, memb3T = _membership(out_c, g3)

    # Activations: NCHW -> flattened channels-last (N, H*W, C).
    x = jnp.transpose(x_nchw, (0, 2, 3, 1)).reshape(N, H * W, Cin)

    # Weights as bf16 MXU operands (accumulation stays f32 in-kernel).
    w1 = jnp.transpose(params["conv1_w"][:, :, 0, 0]).astype(jnp.bfloat16)      # (Cin, P)
    w2 = jnp.transpose(params["conv2_w"], (2, 3, 1, 0)) \
            .reshape(9, planes, planes).astype(jnp.bfloat16)                    # (9, P, P)
    w3 = jnp.transpose(params["conv3_w"][:, :, 0, 0]).astype(jnp.bfloat16)      # (P, Cout)

    gb = lambda k: params[k].reshape(1, -1)

    HW = H * W
    Hp, Wp = H + 2 * d, W + 2 * d
    kern = functools.partial(
        _bottleneck_kernel, H=H, W=W, d=d,
        inv_cnt1=1.0 / (HW * (planes // g1)),
        inv_cnt3=1.0 / (HW * (out_c // g3)))

    # Scoped-VMEM limit sized from the per-step working set (double-buffered
    # in/out blocks + padded scratch + weights + in-register intermediates).
    est = (2 * HW * Cin * 4 + 2 * HW * out_c * 4 + Hp * Wp * planes * 4
           + 9 * planes * planes * 2 + (Cin + out_c) * planes * 2
           + 6 * HW * max(planes, out_c) * 4)
    vmem_limit = int(min(max(2 * est, 16 * 1024 * 1024), 48 * 1024 * 1024))

    cmap2 = lambda n: (0, 0)
    cmap3 = lambda n: (0, 0, 0)

    out_flat = pl.pallas_call(
        kern,
        out_shape=jax.ShapeDtypeStruct((N, HW, out_c), x_nchw.dtype),
        grid=(N,),
        in_specs=[
            pl.BlockSpec((1, HW, Cin), lambda n: (n, 0, 0)),     # x (input + residual)
            pl.BlockSpec((Cin, planes), cmap2),                  # w1
            pl.BlockSpec((9, planes, planes), cmap3),            # w2 (9 taps)
            pl.BlockSpec((planes, out_c), cmap2),                # w3
            pl.BlockSpec((1, planes), cmap2),                    # gn1 gamma
            pl.BlockSpec((1, planes), cmap2),                    # gn1 beta
            pl.BlockSpec((1, planes), cmap2),                    # gn2 gamma
            pl.BlockSpec((1, planes), cmap2),                    # gn2 beta
            pl.BlockSpec((1, out_c), cmap2),                     # gn3 gamma
            pl.BlockSpec((1, out_c), cmap2),                     # gn3 beta
            pl.BlockSpec((planes, g1), cmap2),                   # memb1
            pl.BlockSpec((g1, planes), cmap2),                   # memb1T
            pl.BlockSpec((out_c, g3), cmap2),                    # memb3
            pl.BlockSpec((g3, out_c), cmap2),                    # memb3T
        ],
        out_specs=pl.BlockSpec((1, HW, out_c), lambda n: (n, 0, 0)),
        scratch_shapes=[pltpu.VMEM((Hp, Wp, planes), jnp.float32)],  # padded conv1 out
        compiler_params=pltpu.CompilerParams(
            dimension_semantics=("parallel",),
            vmem_limit_bytes=vmem_limit),
    )(x, w1, w2, w3,
      gb("gn1_g"), gb("gn1_b"), gb("gn2_g"), gb("gn2_b"), gb("gn3_g"), gb("gn3_b"),
      memb1, memb1T, memb3, memb3T)

    return jnp.transpose(out_flat.reshape(N, H, W, out_c), (0, 3, 1, 2))  # NCHW


# ----------------------------------------------------------------------------
# Pure-JAX f32 reference (for correctness check)
# ----------------------------------------------------------------------------
def _ref_gn(x_nhwc, gamma, beta, ng):
    N, H, W, C = x_nhwc.shape
    xr = x_nhwc.reshape(N, H, W, ng, C // ng)
    mean = xr.mean(axis=(1, 2, 4), keepdims=True)
    var = ((xr - mean) ** 2).mean(axis=(1, 2, 4), keepdims=True)
    xn = ((xr - mean) / jnp.sqrt(var + EPS)).reshape(N, H, W, C)
    return xn * gamma.reshape(1, 1, 1, C) + beta.reshape(1, 1, 1, C)


def _ref_conv(x_nhwc, w_oihw, dilation, pad):
    w_hwio = jnp.transpose(w_oihw, (2, 3, 1, 0))
    return jax.lax.conv_general_dilated(
        x_nhwc, w_hwio, window_strides=(1, 1),
        padding=((pad, pad), (pad, pad)), rhs_dilation=(dilation, dilation),
        dimension_numbers=("NHWC", "HWIO", "NHWC"))


def bottleneck_ref(x_nchw, params, dilation=1):
    x = jnp.transpose(x_nchw, (0, 2, 3, 1))
    planes = params["conv1_w"].shape[0]
    out_c = params["conv3_w"].shape[0]
    out = _ref_conv(x, params["conv1_w"], 1, 0)
    out = jax.nn.relu(_ref_gn(out, params["gn1_g"], params["gn1_b"], _num_groups(planes)))
    out = _ref_conv(out, params["conv2_w"], dilation, dilation)
    out = jax.nn.relu(_ref_gn(out, params["gn2_g"], params["gn2_b"], _num_groups(planes)))
    out = _ref_conv(out, params["conv3_w"], 1, 0)
    out = _ref_gn(out, params["gn3_g"], params["gn3_b"], _num_groups(out_c))
    out = jax.nn.relu(out + x)
    return jnp.transpose(out, (0, 3, 1, 2))


if __name__ == "__main__":
    # Small shapes: batch=2, inplanes=16, planes=4 (expansion 4 -> 16), 16x16.
    N, inplanes, planes, H, W = 2, 16, 4, 16, 16
    key = jax.random.PRNGKey(0)
    kx_, kp = jax.random.split(key)
    x = jax.random.normal(kx_, (N, inplanes, H, W), jnp.float32)  # NCHW
    params = init_bottleneck_params(kp, inplanes, planes)

    for dil in (1, 2):
        out = jax.block_until_ready(bottleneck_forward(x, params, dilation=dil))
        ref = jax.block_until_ready(bottleneck_ref(x, params, dilation=dil))
        assert out.shape == (N, planes * 4, H, W)
        err = float(jnp.max(jnp.abs(out - ref)))
        # bf16 matmul operands with f32 accumulation -> relaxed tolerance.
        assert jnp.allclose(out, ref, atol=5e-2, rtol=5e-2), (dil, err)

    print("KERNEL_OK")
</pallas_src>

<mosaic_0001>
module attributes {stable_mosaic.version = 11 : i64} {
  func.func @_bottleneck_kernel(%arg0: i32, %arg1: memref<1x256x16xf32, #tpu.memory_space<vmem>>, %arg2: memref<16x4xbf16, #tpu.memory_space<vmem>>, %arg3: memref<9x4x4xbf16, #tpu.memory_space<vmem>>, %arg4: memref<4x16xbf16, #tpu.memory_space<vmem>>, %arg5: memref<1x4xf32, #tpu.memory_space<vmem>>, %arg6: memref<1x4xf32, #tpu.memory_space<vmem>>, %arg7: memref<1x4xf32, #tpu.memory_space<vmem>>, %arg8: memref<1x4xf32, #tpu.memory_space<vmem>>, %arg9: memref<1x16xf32, #tpu.memory_space<vmem>>, %arg10: memref<1x16xf32, #tpu.memory_space<vmem>>, %arg11: memref<4x4xf32, #tpu.memory_space<vmem>>, %arg12: memref<4x4xf32, #tpu.memory_space<vmem>>, %arg13: memref<16x16xf32, #tpu.memory_space<vmem>>, %arg14: memref<16x16xf32, #tpu.memory_space<vmem>>, %arg15: memref<1x256x16xf32, #tpu.memory_space<vmem>>, %arg16: memref<18x18x4xf32, #tpu.memory_space<vmem>>) attributes {dimension_semantics = [#tpu.dimension_semantics<parallel>], iteration_bounds = array<i64: 2>, scalar_prefetch = 0 : i64, scratch_operands = 1 : i64, tpu.core_type = #tpu.core_type<tc>, window_params = [{transform_indices = @transform_0, window_bounds = array<i64: 1, 256, 16>}, {pipeline_mode = #tpu.pipeline_mode<synchronous>, transform_indices = @transform_1, window_bounds = array<i64: 16, 4>}, {pipeline_mode = #tpu.pipeline_mode<synchronous>, transform_indices = @transform_2, window_bounds = array<i64: 9, 4, 4>}, {pipeline_mode = #tpu.pipeline_mode<synchronous>, transform_indices = @transform_3, window_bounds = array<i64: 4, 16>}, {pipeline_mode = #tpu.pipeline_mode<synchronous>, transform_indices = @transform_4, window_bounds = array<i64: 1, 4>}, {pipeline_mode = #tpu.pipeline_mode<synchronous>, transform_indices = @transform_5, window_bounds = array<i64: 1, 4>}, {pipeline_mode = #tpu.pipeline_mode<synchronous>, transform_indices = @transform_6, window_bounds = array<i64: 1, 4>}, {pipeline_mode = #tpu.pipeline_mode<synchronous>, transform_indices = @transform_7, window_bounds = array<i64: 1, 4>}, {pipeline_mode = #tpu.pipeline_mode<synchronous>, transform_indices = @transform_8, window_bounds = array<i64: 1, 16>}, {pipeline_mode = #tpu.pipeline_mode<synchronous>, transform_indices = @transform_9, window_bounds = array<i64: 1, 16>}, {pipeline_mode = #tpu.pipeline_mode<synchronous>, transform_indices = @transform_10, window_bounds = array<i64: 4, 4>}, {pipeline_mode = #tpu.pipeline_mode<synchronous>, transform_indices = @transform_11, window_bounds = array<i64: 4, 4>}, {pipeline_mode = #tpu.pipeline_mode<synchronous>, transform_indices = @transform_12, window_bounds = array<i64: 16, 16>}, {pipeline_mode = #tpu.pipeline_mode<synchronous>, transform_indices = @transform_13, window_bounds = array<i64: 16, 16>}, {transform_indices = @transform_14, window_bounds = array<i64: 1, 256, 16>}]} {
    %c0 = arith.constant 0 : index
    %c0_0 = arith.constant 0 : index
    %c0_1 = arith.constant 0 : index
    %0 = vector.load %arg1[%c0, %c0_0, %c0_1] : memref<1x256x16xf32, #tpu.memory_space<vmem>>, vector<1x256x16xf32>
    %1 = vector.shape_cast %0 : vector<1x256x16xf32> to vector<256x16xf32>
    %2 = arith.truncf %1 : vector<256x16xf32> to vector<256x16xbf16>
    %c0_2 = arith.constant 0 : index
    %c0_3 = arith.constant 0 : index
    %3 = vector.load %arg2[%c0_2, %c0_3] : memref<16x4xbf16, #tpu.memory_space<vmem>>, vector<16x4xbf16>
    %cst = arith.constant dense<0.000000e+00> : vector<256x4xf32>
    %4 = tpu.matmul %2, %3, %cst {dimension_numbers = #tpu.dot_dimension_numbers<[1], [0], [0], [1], [0, 0, 1, 1], [], []>} : vector<256x16xbf16>, vector<16x4xbf16>, vector<256x4xf32> -> vector<256x4xf32>
    %c0_4 = arith.constant 0 : index
    %c0_5 = arith.constant 0 : index
    %5 = vector.load %arg5[%c0_4, %c0_5] : memref<1x4xf32, #tpu.memory_space<vmem>>, vector<1x4xf32>
    %c0_6 = arith.constant 0 : index
    %c0_7 = arith.constant 0 : index
    %6 = vector.load %arg6[%c0_6, %c0_7] : memref<1x4xf32, #tpu.memory_space<vmem>>, vector<1x4xf32>
    %c0_8 = arith.constant 0 : index
    %c0_9 = arith.constant 0 : index
    %7 = vector.load %arg11[%c0_8, %c0_9] : memref<4x4xf32, #tpu.memory_space<vmem>>, vector<4x4xf32>
    %c0_10 = arith.constant 0 : index
    %c0_11 = arith.constant 0 : index
    %8 = vector.load %arg12[%c0_10, %c0_11] : memref<4x4xf32, #tpu.memory_space<vmem>>, vector<4x4xf32>
    %cst_12 = arith.constant dense<0.000000e+00> : vector<4xf32>
    %9 = vector.multi_reduction <add>, %4, %cst_12 [0] : vector<256x4xf32> to vector<4xf32>
    %10 = vector.shape_cast %9 : vector<4xf32> to vector<1x4xf32>
    %11 = arith.mulf %4, %4 : vector<256x4xf32>
    %cst_13 = arith.constant dense<0.000000e+00> : vector<4xf32>
    %12 = vector.multi_reduction <add>, %11, %cst_13 [0] : vector<256x4xf32> to vector<4xf32>
    %13 = vector.shape_cast %12 : vector<4xf32> to vector<1x4xf32>
    %14 = tpu.iota {dimensions = array<i32: 0>} : vector<2x1xi32>
    %c0_i32 = arith.constant 0 : i32
    %15 = vector.broadcast %c0_i32 : i32 to vector<2x1xi32>
    %16 = arith.cmpi eq, %14, %15 : vector<2x1xi32>
    %17 = vector.shape_cast %16 : vector<2x1xi1> to vector<2x1xi1>
    %18 = vector.broadcast %17 : vector<2x1xi1> to vector<2x4xi1>
    %19 = vector.shape_cast %10 : vector<1x4xf32> to vector<1x4xf32>
    %20 = vector.broadcast %19 : vector<1x4xf32> to vector<2x4xf32>
    %21 = vector.shape_cast %13 : vector<1x4xf32> to vector<1x4xf32>
    %22 = vector.broadcast %21 : vector<1x4xf32> to vector<2x4xf32>
    %23 = arith.select %18, %20, %22 : vector<2x4xi1>, vector<2x4xf32>
    %cst_14 = arith.constant dense<0.000000e+00> : vector<2x4xf32>
    %24 = tpu.matmul %23, %7, %cst_14 {dimension_numbers = #tpu.dot_dimension_numbers<[1], [0], [0], [1], [0, 0, 1, 1], [], []>} : vector<2x4xf32>, vector<4x4xf32>, vector<2x4xf32> -> vector<2x4xf32>
    %cst_15 = arith.constant 3.906250e-03 : f32
    %25 = vector.broadcast %cst_15 : f32 to vector<2x4xf32>
    %26 = arith.mulf %24, %25 : vector<2x4xf32>
    %27 = vector.extract_strided_slice %26 {offsets = [0, 0], sizes = [1, 4], strides = [1, 1]} : vector<2x4xf32> to vector<1x4xf32>
    %28 = vector.extract_strided_slice %26 {offsets = [1, 0], sizes = [1, 4], strides = [1, 1]} : vector<2x4xf32> to vector<1x4xf32>
    %29 = arith.mulf %27, %27 : vector<1x4xf32>
    %30 = arith.subf %28, %29 : vector<1x4xf32>
    %cst_16 = arith.constant 9.99999974E-6 : f32
    %31 = vector.broadcast %cst_16 : f32 to vector<1x4xf32>
    %32 = arith.addf %30, %31 : vector<1x4xf32>
    %33 = math.rsqrt %32 : vector<1x4xf32>
    %c0_i32_17 = arith.constant 0 : i32
    %34 = vector.broadcast %c0_i32_17 : i32 to vector<2x1xi32>
    %35 = arith.cmpi eq, %14, %34 : vector<2x1xi32>
    %36 = vector.shape_cast %35 : vector<2x1xi1> to vector<2x1xi1>
    %37 = vector.broadcast %36 : vector<2x1xi1> to vector<2x4xi1>
    %38 = vector.shape_cast %27 : vector<1x4xf32> to vector<1x4xf32>
    %39 = vector.broadcast %38 : vector<1x4xf32> to vector<2x4xf32>
    %40 = vector.shape_cast %33 : vector<1x4xf32> to vector<1x4xf32>
    %41 = vector.broadcast %40 : vector<1x4xf32> to vector<2x4xf32>
    %42 = arith.select %37, %39, %41 : vector<2x4xi1>, vector<2x4xf32>
    %cst_18 = arith.constant dense<0.000000e+00> : vector<2x4xf32>
    %43 = tpu.matmul %42, %8, %cst_18 {dimension_numbers = #tpu.dot_dimension_numbers<[1], [0], [0], [1], [0, 0, 1, 1], [], []>} : vector<2x4xf32>, vector<4x4xf32>, vector<2x4xf32> -> vector<2x4xf32>
    %44 = vector.extract_strided_slice %43 {offsets = [1, 0], sizes = [1, 4], strides = [1, 1]} : vector<2x4xf32> to vector<1x4xf32>
    %45 = arith.mulf %44, %5 : vector<1x4xf32>
    %46 = vector.extract_strided_slice %43 {offsets = [0, 0], sizes = [1, 4], strides = [1, 1]} : vector<2x4xf32> to vector<1x4xf32>
    %47 = arith.mulf %46, %45 : vector<1x4xf32>
    %48 = arith.subf %6, %47 : vector<1x4xf32>
    %49 = vector.broadcast %45 : vector<1x4xf32> to vector<256x4xf32>
    %50 = arith.mulf %4, %49 : vector<256x4xf32>
    %51 = vector.broadcast %48 : vector<1x4xf32> to vector<256x4xf32>
    %52 = arith.addf %50, %51 : vector<256x4xf32>
    %cst_19 = arith.constant 0.000000e+00 : f32
    %53 = vector.broadcast %cst_19 : f32 to vector<256x4xf32>
    %54 = arith.maximumf %52, %53 : vector<256x4xf32>
    %cst_20 = arith.constant 0.000000e+00 : f32
    %55 = vector.broadcast %cst_20 : f32 to vector<18x18x4xf32>
    %c0_21 = arith.constant 0 : index
    %c0_22 = arith.constant 0 : index
    %c0_23 = arith.constant 0 : index
    %56 = vector.load %arg16[%c0_21, %c0_22, %c0_23] : memref<18x18x4xf32, #tpu.memory_space<vmem>>, vector<18x18x4xf32>
    tpu.vector_store %arg16[%c0_21, %c0_22, %c0_23], %55 {strides = array<i32>} : memref<18x18x4xf32, #tpu.memory_space<vmem>>, vector<18x18x4xf32>,
    %57 = vector.shape_cast %54 : vector<256x4xf32> to vector<16x16x4xf32>
    %c1 = arith.constant 1 : index
    %c1_24 = arith.constant 1 : index
    %c0_25 = arith.constant 0 : index
    %58 = vector.load %arg16[%c1, %c1_24, %c0_25] : memref<18x18x4xf32, #tpu.memory_space<vmem>>, vector<16x16x4xf32>
    tpu.vector_store %arg16[%c1, %c1_24, %c0_25], %57 {strides = array<i32>} : memref<18x18x4xf32, #tpu.memory_space<vmem>>, vector<16x16x4xf32>,
    %cst_26 = arith.constant 0.000000e+00 : f32
    %59 = vector.broadcast %cst_26 : f32 to vector<256x4xf32>
    %c0_27 = arith.constant 0 : index
    %c0_28 = arith.constant 0 : index
    %c0_29 = arith.constant 0 : index
    %60 = vector.load %arg16[%c0_27, %c0_28, %c0_29] : memref<18x18x4xf32, #tpu.memory_space<vmem>>, vector<18x16x4xf32>
    %61 = arith.truncf %60 : vector<18x16x4xf32> to vector<18x16x4xbf16>
    %62 = vector.extract_strided_slice %61 {offsets = [0, 0, 0], sizes = [16, 16, 4], strides = [1, 1, 1]} : vector<18x16x4xbf16> to vector<16x16x4xbf16>
    %63 = vector.shape_cast %62 : vector<16x16x4xbf16> to vector<256x4xbf16>
    %c0_30 = arith.constant 0 : index
    %c0_31 = arith.constant 0 : index
    %c0_32 = arith.constant 0 : index
    %64 = vector.load %arg3[%c0_30, %c0_31, %c0_32] : memref<9x4x4xbf16, #tpu.memory_space<vmem>>, vector<1x4x4xbf16>
    %65 = vector.shape_cast %64 : vector<1x4x4xbf16> to vector<4x4xbf16>
    %cst_33 = arith.constant dense<0.000000e+00> : vector<256x4xf32>
    %66 = tpu.matmul %63, %65, %cst_33 {dimension_numbers = #tpu.dot_dimension_numbers<[1], [0], [0], [1], [0, 0, 1, 1], [], []>} : vector<256x4xbf16>, vector<4x4xbf16>, vector<256x4xf32> -> vector<256x4xf32>
    %67 = arith.addf %59, %66 : vector<256x4xf32>
    %68 = vector.extract_strided_slice %61 {offsets = [1, 0, 0], sizes = [16, 16, 4], strides = [1, 1, 1]} : vector<18x16x4xbf16> to vector<16x16x4xbf16>
    %69 = vector.shape_cast %68 : vector<16x16x4xbf16> to vector<256x4xbf16>
    %c3 = arith.constant 3 : index
    %c0_34 = arith.constant 0 : index
    %c0_35 = arith.constant 0 : index
    %70 = vector.load %arg3[%c3, %c0_34, %c0_35] : memref<9x4x4xbf16, #tpu.memory_space<vmem>>, vector<1x4x4xbf16>
    %71 = vector.shape_cast %70 : vector<1x4x4xbf16> to vector<4x4xbf16>
    %cst_36 = arith.constant dense<0.000000e+00> : vector<256x4xf32>
    %72 = tpu.matmul %69, %71, %cst_36 {dimension_numbers = #tpu.dot_dimension_numbers<[1], [0], [0], [1], [0, 0, 1, 1], [], []>} : vector<256x4xbf16>, vector<4x4xbf16>, vector<256x4xf32> -> vector<256x4xf32>
    %73 = arith.addf %67, %72 : vector<256x4xf32>
    %74 = vector.extract_strided_slice %61 {offsets = [2, 0, 0], sizes = [16, 16, 4], strides = [1, 1, 1]} : vector<18x16x4xbf16> to vector<16x16x4xbf16>
    %75 = vector.shape_cast %74 : vector<16x16x4xbf16> to vector<256x4xbf16>
    %c6 = arith.constant 6 : index
    %c0_37 = arith.constant 0 : index
    %c0_38 = arith.constant 0 : index
    %76 = vector.load %arg3[%c6, %c0_37, %c0_38] : memref<9x4x4xbf16, #tpu.memory_space<vmem>>, vector<1x4x4xbf16>
    %77 = vector.shape_cast %76 : vector<1x4x4xbf16> to vector<4x4xbf16>
    %cst_39 = arith.constant dense<0.000000e+00> : vector<256x4xf32>
    %78 = tpu.matmul %75, %77, %cst_39 {dimension_numbers = #tpu.dot_dimension_numbers<[1], [0], [0], [1], [0, 0, 1, 1], [], []>} : vector<256x4xbf16>, vector<4x4xbf16>, vector<256x4xf32> -> vector<256x4xf32>
    %79 = arith.addf %73, %78 : vector<256x4xf32>
    %c0_40 = arith.constant 0 : index
    %c1_41 = arith.constant 1 : index
    %c0_42 = arith.constant 0 : index
    %80 = vector.load %arg16[%c0_40, %c1_41, %c0_42] : memref<18x18x4xf32, #tpu.memory_space<vmem>>, vector<18x16x4xf32>
    %81 = arith.truncf %80 : vector<18x16x4xf32> to vector<18x16x4xbf16>
    %82 = vector.extract_strided_slice %81 {offsets = [0, 0, 0], sizes = [16, 16, 4], strides = [1, 1, 1]} : vector<18x16x4xbf16> to vector<16x16x4xbf16>
    %83 = vector.shape_cast %82 : vector<16x16x4xbf16> to vector<256x4xbf16>
    %c1_43 = arith.constant 1 : index
    %c0_44 = arith.constant 0 : index
    %c0_45 = arith.constant 0 : index
    %84 = vector.load %arg3[%c1_43, %c0_44, %c0_45] : memref<9x4x4xbf16, #tpu.memory_space<vmem>>, vector<1x4x4xbf16>
    %85 = vector.shape_cast %84 : vector<1x4x4xbf16> to vector<4x4xbf16>
    %cst_46 = arith.constant dense<0.000000e+00> : vector<256x4xf32>
    %86 = tpu.matmul %83, %85, %cst_46 {dimension_numbers = #tpu.dot_dimension_numbers<[1], [0], [0], [1], [0, 0, 1, 1], [], []>} : vector<256x4xbf16>, vector<4x4xbf16>, vector<256x4xf32> -> vector<256x4xf32>
    %87 = arith.addf %79, %86 : vector<256x4xf32>
    %88 = vector.extract_strided_slice %81 {offsets = [1, 0, 0], sizes = [16, 16, 4], strides = [1, 1, 1]} : vector<18x16x4xbf16> to vector<16x16x4xbf16>
    %89 = vector.shape_cast %88 : vector<16x16x4xbf16> to vector<256x4xbf16>
    %c4 = arith.constant 4 : index
    %c0_47 = arith.constant 0 : index
    %c0_48 = arith.constant 0 : index
    %90 = vector.load %arg3[%c4, %c0_47, %c0_48] : memref<9x4x4xbf16, #tpu.memory_space<vmem>>, vector<1x4x4xbf16>
    %91 = vector.shape_cast %90 : vector<1x4x4xbf16> to vector<4x4xbf16>
    %cst_49 = arith.constant dense<0.000000e+00> : vector<256x4xf32>
    %92 = tpu.matmul %89, %91, %cst_49 {dimension_numbers = #tpu.dot_dimension_numbers<[1], [0], [0], [1], [0, 0, 1, 1], [], []>} : vector<256x4xbf16>, vector<4x4xbf16>, vector<256x4xf32> -> vector<256x4xf32>
    %93 = arith.addf %87, %92 : vector<256x4xf32>
    %94 = vector.extract_strided_slice %81 {offsets = [2, 0, 0], sizes = [16, 16, 4], strides = [1, 1, 1]} : vector<18x16x4xbf16> to vector<16x16x4xbf16>
    %95 = vector.shape_cast %94 : vector<16x16x4xbf16> to vector<256x4xbf16>
    %c7 = arith.constant 7 : index
    %c0_50 = arith.constant 0 : index
    %c0_51 = arith.constant 0 : index
    %96 = vector.load %arg3[%c7, %c0_50, %c0_51] : memref<9x4x4xbf16, #tpu.memory_space<vmem>>, vector<1x4x4xbf16>
    %97 = vector.shape_cast %96 : vector<1x4x4xbf16> to vector<4x4xbf16>
    %cst_52 = arith.constant dense<0.000000e+00> : vector<256x4xf32>
    %98 = tpu.matmul %95, %97, %cst_52 {dimension_numbers = #tpu.dot_dimension_numbers<[1], [0], [0], [1], [0, 0, 1, 1], [], []>} : vector<256x4xbf16>, vector<4x4xbf16>, vector<256x4xf32> -> vector<256x4xf32>
    %99 = arith.addf %93, %98 : vector<256x4xf32>
    %c0_53 = arith.constant 0 : index
    %c2 = arith.constant 2 : index
    %c0_54 = arith.constant 0 : index
    %100 = vector.load %arg16[%c0_53, %c2, %c0_54] : memref<18x18x4xf32, #tpu.memory_space<vmem>>, vector<18x16x4xf32>
    %101 = arith.truncf %100 : vector<18x16x4xf32> to vector<18x16x4xbf16>
    %102 = vector.extract_strided_slice %101 {offsets = [0, 0, 0], sizes = [16, 16, 4], strides = [1, 1, 1]} : vector<18x16x4xbf16> to vector<16x16x4xbf16>
    %103 = vector.shape_cast %102 : vector<16x16x4xbf16> to vector<256x4xbf16>
    %c2_55 = arith.constant 2 : index
    %c0_56 = arith.constant 0 : index
    %c0_57 = arith.constant 0 : index
    %104 = vector.load %arg3[%c2_55, %c0_56, %c0_57] : memref<9x4x4xbf16, #tpu.memory_space<vmem>>, vector<1x4x4xbf16>
    %105 = vector.shape_cast %104 : vector<1x4x4xbf16> to vector<4x4xbf16>
    %cst_58 = arith.constant dense<0.000000e+00> : vector<256x4xf32>
    %106 = tpu.matmul %103, %105, %cst_58 {dimension_numbers = #tpu.dot_dimension_numbers<[1], [0], [0], [1], [0, 0, 1, 1], [], []>} : vector<256x4xbf16>, vector<4x4xbf16>, vector<256x4xf32> -> vector<256x4xf32>
    %107 = arith.addf %99, %106 : vector<256x4xf32>
    %108 = vector.extract_strided_slice %101 {offsets = [1, 0, 0], sizes = [16, 16, 4], strides = [1, 1, 1]} : vector<18x16x4xbf16> to vector<16x16x4xbf16>
    %109 = vector.shape_cast %108 : vector<16x16x4xbf16> to vector<256x4xbf16>
    %c5 = arith.constant 5 : index
    %c0_59 = arith.constant 0 : index
    %c0_60 = arith.constant 0 : index
    %110 = vector.load %arg3[%c5, %c0_59, %c0_60] : memref<9x4x4xbf16, #tpu.memory_space<vmem>>, vector<1x4x4xbf16>
    %111 = vector.shape_cast %110 : vector<1x4x4xbf16> to vector<4x4xbf16>
    %cst_61 = arith.constant dense<0.000000e+00> : vector<256x4xf32>
    %112 = tpu.matmul %109, %111, %cst_61 {dimension_numbers = #tpu.dot_dimension_numbers<[1], [0], [0], [1], [0, 0, 1, 1], [], []>} : vector<256x4xbf16>, vector<4x4xbf16>, vector<256x4xf32> -> vector<256x4xf32>
    %113 = arith.addf %107, %112 : vector<256x4xf32>
    %114 = vector.extract_strided_slice %101 {offsets = [2, 0, 0], sizes = [16, 16, 4], strides = [1, 1, 1]} : vector<18x16x4xbf16> to vector<16x16x4xbf16>
    %115 = vector.shape_cast %114 : vector<16x16x4xbf16> to vector<256x4xbf16>
    %c8 = arith.constant 8 : index
    %c0_62 = arith.constant 0 : index
    %c0_63 = arith.constant 0 : index
    %116 = vector.load %arg3[%c8, %c0_62, %c0_63] : memref<9x4x4xbf16, #tpu.memory_space<vmem>>, vector<1x4x4xbf16>
    %117 = vector.shape_cast %116 : vector<1x4x4xbf16> to vector<4x4xbf16>
    %cst_64 = arith.constant dense<0.000000e+00> : vector<256x4xf32>
    %118 = tpu.matmul %115, %117, %cst_64 {dimension_numbers = #tpu.dot_dimension_numbers<[1], [0], [0], [1], [0, 0, 1, 1], [], []>} : vector<256x4xbf16>, vector<4x4xbf16>, vector<256x4xf32> -> vector<256x4xf32>
    %119 = arith.addf %113, %118 : vector<256x4xf32>
    %c0_65 = arith.constant 0 : index
    %c0_66 = arith.constant 0 : index
    %120 = vector.load %arg7[%c0_65, %c0_66] : memref<1x4xf32, #tpu.memory_space<vmem>>, vector<1x4xf32>
    %c0_67 = arith.constant 0 : index
    %c0_68 = arith.constant 0 : index
    %121 = vector.load %arg8[%c0_67, %c0_68] : memref<1x4xf32, #tpu.memory_space<vmem>>, vector<1x4xf32>
    %c0_69 = arith.constant 0 : index
    %c0_70 = arith.constant 0 : index
    %122 = vector.load %arg11[%c0_69, %c0_70] : memref<4x4xf32, #tpu.memory_space<vmem>>, vector<4x4xf32>
    %c0_71 = arith.constant 0 : index
    %c0_72 = arith.constant 0 : index
    %123 = vector.load %arg12[%c0_71, %c0_72] : memref<4x4xf32, #tpu.memory_space<vmem>>, vector<4x4xf32>
    %cst_73 = arith.constant dense<0.000000e+00> : vector<4xf32>
    %124 = vector.multi_reduction <add>, %119, %cst_73 [0] : vector<256x4xf32> to vector<4xf32>
    %125 = vector.shape_cast %124 : vector<4xf32> to vector<1x4xf32>
    %126 = arith.mulf %119, %119 : vector<256x4xf32>
    %cst_74 = arith.constant dense<0.000000e+00> : vector<4xf32>
    %127 = vector.multi_reduction <add>, %126, %cst_74 [0] : vector<256x4xf32> to vector<4xf32>
    %128 = vector.shape_cast %127 : vector<4xf32> to vector<1x4xf32>
    %129 = tpu.iota {dimensions = array<i32: 0>} : vector<2x1xi32>
    %c0_i32_75 = arith.constant 0 : i32
    %130 = vector.broadcast %c0_i32_75 : i32 to vector<2x1xi32>
    %131 = arith.cmpi eq, %129, %130 : vector<2x1xi32>
    %132 = vector.shape_cast %131 : vector<2x1xi1> to vector<2x1xi1>
    %133 = vector.broadcast %132 : vector<2x1xi1> to vector<2x4xi1>
    %134 = vector.shape_cast %125 : vector<1x4xf32> to vector<1x4xf32>
    %135 = vector.broadcast %134 : vector<1x4xf32> to vector<2x4xf32>
    %136 = vector.shape_cast %128 : vector<1x4xf32> to vector<1x4xf32>
    %137 = vector.broadcast %136 : vector<1x4xf32> to vector<2x4xf32>
    %138 = arith.select %133, %135, %137 : vector<2x4xi1>, vector<2x4xf32>
    %cst_76 = arith.constant dense<0.000000e+00> : vector<2x4xf32>
    %139 = tpu.matmul %138, %122, %cst_76 {dimension_numbers = #tpu.dot_dimension_numbers<[1], [0], [0], [1], [0, 0, 1, 1], [], []>} : vector<2x4xf32>, vector<4x4xf32>, vector<2x4xf32> -> vector<2x4xf32>
    %cst_77 = arith.constant 3.906250e-03 : f32
    %140 = vector.broadcast %cst_77 : f32 to vector<2x4xf32>
    %141 = arith.mulf %139, %140 : vector<2x4xf32>
    %142 = vector.extract_strided_slice %141 {offsets = [0, 0], sizes = [1, 4], strides = [1, 1]} : vector<2x4xf32> to vector<1x4xf32>
    %143 = vector.extract_strided_slice %141 {offsets = [1, 0], sizes = [1, 4], strides = [1, 1]} : vector<2x4xf32> to vector<1x4xf32>
    %144 = arith.mulf %142, %142 : vector<1x4xf32>
    %145 = arith.subf %143, %144 : vector<1x4xf32>
    %cst_78 = arith.constant 9.99999974E-6 : f32
    %146 = vector.broadcast %cst_78 : f32 to vector<1x4xf32>
    %147 = arith.addf %145, %146 : vector<1x4xf32>
    %148 = math.rsqrt %147 : vector<1x4xf32>
    %c0_i32_79 = arith.constant 0 : i32
    %149 = vector.broadcast %c0_i32_79 : i32 to vector<2x1xi32>
    %150 = arith.cmpi eq, %129, %149 : vector<2x1xi32>
    %151 = vector.shape_cast %150 : vector<2x1xi1> to vector<2x1xi1>
    %152 = vector.broadcast %151 : vector<2x1xi1> to vector<2x4xi1>
    %153 = vector.shape_cast %142 : vector<1x4xf32> to vector<1x4xf32>
    %154 = vector.broadcast %153 : vector<1x4xf32> to vector<2x4xf32>
    %155 = vector.shape_cast %148 : vector<1x4xf32> to vector<1x4xf32>
    %156 = vector.broadcast %155 : vector<1x4xf32> to vector<2x4xf32>
    %157 = arith.select %152, %154, %156 : vector<2x4xi1>, vector<2x4xf32>
    %cst_80 = arith.constant dense<0.000000e+00> : vector<2x4xf32>
    %158 = tpu.matmul %157, %123, %cst_80 {dimension_numbers = #tpu.dot_dimension_numbers<[1], [0], [0], [1], [0, 0, 1, 1], [], []>} : vector<2x4xf32>, vector<4x4xf32>, vector<2x4xf32> -> vector<2x4xf32>
    %159 = vector.extract_strided_slice %158 {offsets = [1, 0], sizes = [1, 4], strides = [1, 1]} : vector<2x4xf32> to vector<1x4xf32>
    %160 = arith.mulf %159, %120 : vector<1x4xf32>
    %161 = vector.extract_strided_slice %158 {offsets = [0, 0], sizes = [1, 4], strides = [1, 1]} : vector<2x4xf32> to vector<1x4xf32>
    %162 = arith.mulf %161, %160 : vector<1x4xf32>
    %163 = arith.subf %121, %162 : vector<1x4xf32>
    %164 = vector.broadcast %160 : vector<1x4xf32> to vector<256x4xf32>
    %165 = arith.mulf %119, %164 : vector<256x4xf32>
    %166 = vector.broadcast %163 : vector<1x4xf32> to vector<256x4xf32>
    %167 = arith.addf %165, %166 : vector<256x4xf32>
    %cst_81 = arith.constant 0.000000e+00 : f32
    %168 = vector.broadcast %cst_81 : f32 to vector<256x4xf32>
    %169 = arith.maximumf %167, %168 : vector<256x4xf32>
    %170 = arith.truncf %169 : vector<256x4xf32> to vector<256x4xbf16>
    %c0_82 = arith.constant 0 : index
    %c0_83 = arith.constant 0 : index
    %171 = vector.load %arg4[%c0_82, %c0_83] : memref<4x16xbf16, #tpu.memory_space<vmem>>, vector<4x16xbf16>
    %cst_84 = arith.constant dense<0.000000e+00> : vector<256x16xf32>
    %172 = tpu.matmul %170, %171, %cst_84 {dimension_numbers = #tpu.dot_dimension_numbers<[1], [0], [0], [1], [0, 0, 1, 1], [], []>} : vector<256x4xbf16>, vector<4x16xbf16>, vector<256x16xf32> -> vector<256x16xf32>
    %c0_85 = arith.constant 0 : index
    %c0_86 = arith.constant 0 : index
    %173 = vector.load %arg9[%c0_85, %c0_86] : memref<1x16xf32, #tpu.memory_space<vmem>>, vector<1x16xf32>
    %c0_87 = arith.constant 0 : index
    %c0_88 = arith.constant 0 : index
    %174 = vector.load %arg10[%c0_87, %c0_88] : memref<1x16xf32, #tpu.memory_space<vmem>>, vector<1x16xf32>
    %c0_89 = arith.constant 0 : index
    %c0_90 = arith.constant 0 : index
    %175 = vector.load %arg13[%c0_89, %c0_90] : memref<16x16xf32, #tpu.memory_space<vmem>>, vector<16x16xf32>
    %c0_91 = arith.constant 0 : index
    %c0_92 = arith.constant 0 : index
    %176 = vector.load %arg14[%c0_91, %c0_92] : memref<16x16xf32, #tpu.memory_space<vmem>>, vector<16x16xf32>
    %cst_93 = arith.constant dense<0.000000e+00> : vector<16xf32>
    %177 = vector.multi_reduction <add>, %172, %cst_93 [0] : vector<256x16xf32> to vector<16xf32>
    %178 = vector.shape_cast %177 : vector<16xf32> to vector<1x16xf32>
    %179 = arith.mulf %172, %172 : vector<256x16xf32>
    %cst_94 = arith.constant dense<0.000000e+00> : vector<16xf32>
    %180 = vector.multi_reduction <add>, %179, %cst_94 [0] : vector<256x16xf32> to vector<16xf32>
    %181 = vector.shape_cast %180 : vector<16xf32> to vector<1x16xf32>
    %182 = tpu.iota {dimensions = array<i32: 0>} : vector<2x1xi32>
    %c0_i32_95 = arith.constant 0 : i32
    %183 = vector.broadcast %c0_i32_95 : i32 to vector<2x1xi32>
    %184 = arith.cmpi eq, %182, %183 : vector<2x1xi32>
    %185 = vector.shape_cast %184 : vector<2x1xi1> to vector<2x1xi1>
    %186 = vector.broadcast %185 : vector<2x1xi1> to vector<2x16xi1>
    %187 = vector.shape_cast %178 : vector<1x16xf32> to vector<1x16xf32>
    %188 = vector.broadcast %187 : vector<1x16xf32> to vector<2x16xf32>
    %189 = vector.shape_cast %181 : vector<1x16xf32> to vector<1x16xf32>
    %190 = vector.broadcast %189 : vector<1x16xf32> to vector<2x16xf32>
    %191 = arith.select %186, %188, %190 : vector<2x16xi1>, vector<2x16xf32>
    %cst_96 = arith.constant dense<0.000000e+00> : vector<2x16xf32>
    %192 = tpu.matmul %191, %175, %cst_96 {dimension_numbers = #tpu.dot_dimension_numbers<[1], [0], [0], [1], [0, 0, 1, 1], [], []>} : vector<2x16xf32>, vector<16x16xf32>, vector<2x16xf32> -> vector<2x16xf32>
    %cst_97 = arith.constant 3.906250e-03 : f32
    %193 = vector.broadcast %cst_97 : f32 to vector<2x16xf32>
    %194 = arith.mulf %192, %193 : vector<2x16xf32>
    %195 = vector.extract_strided_slice %194 {offsets = [0, 0], sizes = [1, 16], strides = [1, 1]} : vector<2x16xf32> to vector<1x16xf32>
    %196 = vector.extract_strided_slice %194 {offsets = [1, 0], sizes = [1, 16], strides = [1, 1]} : vector<2x16xf32> to vector<1x16xf32>
    %197 = arith.mulf %195, %195 : vector<1x16xf32>
    %198 = arith.subf %196, %197 : vector<1x16xf32>
    %cst_98 = arith.constant 9.99999974E-6 : f32
    %199 = vector.broadcast %cst_98 : f32 to vector<1x16xf32>
    %200 = arith.addf %198, %199 : vector<1x16xf32>
    %201 = math.rsqrt %200 : vector<1x16xf32>
    %c0_i32_99 = arith.constant 0 : i32
    %202 = vector.broadcast %c0_i32_99 : i32 to vector<2x1xi32>
    %203 = arith.cmpi eq, %182, %202 : vector<2x1xi32>
    %204 = vector.shape_cast %203 : vector<2x1xi1> to vector<2x1xi1>
    %205 = vector.broadcast %204 : vector<2x1xi1> to vector<2x16xi1>
    %206 = vector.shape_cast %195 : vector<1x16xf32> to vector<1x16xf32>
    %207 = vector.broadcast %206 : vector<1x16xf32> to vector<2x16xf32>
    %208 = vector.shape_cast %201 : vector<1x16xf32> to vector<1x16xf32>
    %209 = vector.broadcast %208 : vector<1x16xf32> to vector<2x16xf32>
    %210 = arith.select %205, %207, %209 : vector<2x16xi1>, vector<2x16xf32>
    %cst_100 = arith.constant dense<0.000000e+00> : vector<2x16xf32>
    %211 = tpu.matmul %210, %176, %cst_100 {dimension_numbers = #tpu.dot_dimension_numbers<[1], [0], [0], [1], [0, 0, 1, 1], [], []>} : vector<2x16xf32>, vector<16x16xf32>, vector<2x16xf32> -> vector<2x16xf32>
    %212 = vector.extract_strided_slice %211 {offsets = [1, 0], sizes = [1, 16], strides = [1, 1]} : vector<2x16xf32> to vector<1x16xf32>
    %213 = arith.mulf %212, %173 : vector<1x16xf32>
    %214 = vector.extract_strided_slice %211 {offsets = [0, 0], sizes = [1, 16], strides = [1, 1]} : vector<2x16xf32> to vector<1x16xf32>
    %215 = arith.mulf %214, %213 : vector<1x16xf32>
    %216 = arith.subf %174, %215 : vector<1x16xf32>
    %217 = vector.broadcast %213 : vector<1x16xf32> to vector<256x16xf32>
    %218 = arith.mulf %172, %217 : vector<256x16xf32>
    %219 = vector.broadcast %216 : vector<1x16xf32> to vector<256x16xf32>
    %220 = arith.addf %218, %219 : vector<256x16xf32>
    %221 = arith.addf %220, %1 : vector<256x16xf32>
    %cst_101 = arith.constant 0.000000e+00 : f32
    %222 = vector.broadcast %cst_101 : f32 to vector<256x16xf32>
    %223 = arith.maximumf %221, %222 : vector<256x16xf32>
    %c0_102 = arith.constant 0 : index
    %c0_103 = arith.constant 0 : index
    %c0_104 = arith.constant 0 : index
    %224 = vector.load %arg15[%c0_102, %c0_103, %c0_104] : memref<1x256x16xf32, #tpu.memory_space<vmem>>, vector<1x256x16xf32>
    %225 = vector.shape_cast %224 : vector<1x256x16xf32> to vector<256x16xf32>
    %226 = vector.shape_cast %223 : vector<256x16xf32> to vector<1x256x16xf32>
    tpu.vector_store %arg15[%c0_102, %c0_103, %c0_104], %226 {strides = array<i32>} : memref<1x256x16xf32, #tpu.memory_space<vmem>>, vector<1x256x16xf32>,
    return
  }
  func.func @transform_0(%arg0: i32) -> (i32, i32, i32) {
    %c0_i32 = arith.constant 0 : i32
    %c0_i32_0 = arith.constant 0 : i32
    %c0_i32_1 = arith.constant 0 : i32
    return %arg0, %c0_i32, %c0_i32_0 : i32, i32, i32
  }
  func.func @transform_1(%arg0: i32) -> (i32, i32) {
    %c0_i32 = arith.constant 0 : i32
    %c0_i32_0 = arith.constant 0 : i32
    %c0_i32_1 = arith.constant 0 : i32
    return %c0_i32, %c0_i32_0 : i32, i32
  }
  func.func @transform_2(%arg0: i32) -> (i32, i32, i32) {
    %c0_i32 = arith.constant 0 : i32
    %c0_i32_0 = arith.constant 0 : i32
    %c0_i32_1 = arith.constant 0 : i32
    %c0_i32_2 = arith.constant 0 : i32
    return %c0_i32, %c0_i32_0, %c0_i32_1 : i32, i32, i32
  }
  func.func @transform_3(%arg0: i32) -> (i32, i32) {
    %c0_i32 = arith.constant 0 : i32
    %c0_i32_0 = arith.constant 0 : i32
    %c0_i32_1 = arith.constant 0 : i32
    return %c0_i32, %c0_i32_0 : i32, i32
  }
  func.func @transform_4(%arg0: i32) -> (i32, i32) {
    %c0_i32 = arith.constant 0 : i32
    %c0_i32_0 = arith.constant 0 : i32
    %c0_i32_1 = arith.constant 0 : i32
    return %c0_i32, %c0_i32_0 : i32, i32
  }
  func.func @transform_5(%arg0: i32) -> (i32, i32) {
    %c0_i32 = arith.constant 0 : i32
    %c0_i32_0 = arith.constant 0 : i32
    %c0_i32_1 = arith.constant 0 : i32
    return %c0_i32, %c0_i32_0 : i32, i32
  }
  func.func @transform_6(%arg0: i32) -> (i32, i32) {
    %c0_i32 = arith.constant 0 : i32
    %c0_i32_0 = arith.constant 0 : i32
    %c0_i32_1 = arith.constant 0 : i32
    return %c0_i32, %c0_i32_0 : i32, i32
  }
  func.func @transform_7(%arg0: i32) -> (i32, i32) {
    %c0_i32 = arith.constant 0 : i32
    %c0_i32_0 = arith.constant 0 : i32
    %c0_i32_1 = arith.constant 0 : i32
    return %c0_i32, %c0_i32_0 : i32, i32
  }
  func.func @transform_8(%arg0: i32) -> (i32, i32) {
    %c0_i32 = arith.constant 0 : i32
    %c0_i32_0 = arith.constant 0 : i32
    %c0_i32_1 = arith.constant 0 : i32
    return %c0_i32, %c0_i32_0 : i32, i32
  }
  func.func @transform_9(%arg0: i32) -> (i32, i32) {
    %c0_i32 = arith.constant 0 : i32
    %c0_i32_0 = arith.constant 0 : i32
    %c0_i32_1 = arith.constant 0 : i32
    return %c0_i32, %c0_i32_0 : i32, i32
  }
  func.func @transform_10(%arg0: i32) -> (i32, i32) {
    %c0_i32 = arith.constant 0 : i32
    %c0_i32_0 = arith.constant 0 : i32
    %c0_i32_1 = arith.constant 0 : i32
    return %c0_i32, %c0_i32_0 : i32, i32
  }
  func.func @transform_11(%arg0: i32) -> (i32, i32) {
    %c0_i32 = arith.constant 0 : i32
    %c0_i32_0 = arith.constant 0 : i32
    %c0_i32_1 = arith.constant 0 : i32
    return %c0_i32, %c0_i32_0 : i32, i32
  }
  func.func @transform_12(%arg0: i32) -> (i32, i32) {
    %c0_i32 = arith.constant 0 : i32
    %c0_i32_0 = arith.constant 0 : i32
    %c0_i32_1 = arith.constant 0 : i32
    return %c0_i32, %c0_i32_0 : i32, i32
  }
  func.func @transform_13(%arg0: i32) -> (i32, i32) {
    %c0_i32 = arith.constant 0 : i32
    %c0_i32_0 = arith.constant 0 : i32
    %c0_i32_1 = arith.constant 0 : i32
    return %c0_i32, %c0_i32_0 : i32, i32
  }
  func.func @transform_14(%arg0: i32) -> (i32, i32, i32) {
    %c0_i32 = arith.constant 0 : i32
    %c0_i32_0 = arith.constant 0 : i32
    %c0_i32_1 = arith.constant 0 : i32
    return %arg0, %c0_i32, %c0_i32_0 : i32, i32, i32
  }
}

</mosaic_0001>

<llo_original>
// kernel: tpu_custom_call.1
$region0: #{tpu_custom_call.1}
  #allocation0 [shape = 'u32[]', space=smem, size = 0x4, offset = 0x4, fixed_abs, tag = 'smem constant byte address 0x4 - core index']
  #allocation1 [shape = 'u32[72,128]{1,0:T(1,128)}', space=vmem, size = 0x9000, scoped, tag = 'internal scratch']
  #allocation2 [shape = 'f32[18,18,4]{2,1,0:T(8,128)}', space=vmem, size = 0x36000, scoped, tag = 'scratch operand']
  %s0 = inlined_call_operand.vmem [shape: f32[2,256,16], index: 0, kind: input, shape index: {}]
  %s1 = inlined_call_operand.vmem [shape: bf16[16,4], index: 1, kind: input, shape index: {}]
  %s2 = inlined_call_operand.vmem [shape: bf16[9,4,4], index: 2, kind: input, shape index: {}]
  %s3 = inlined_call_operand.vmem [shape: bf16[4,16], index: 3, kind: input, shape index: {}]
  %s4 = inlined_call_operand.vmem [shape: f32[1,4], index: 4, kind: input, shape index: {}]
  %s5 = inlined_call_operand.vmem [shape: f32[1,4], index: 5, kind: input, shape index: {}]
  %s6 = inlined_call_operand.vmem [shape: f32[1,4], index: 6, kind: input, shape index: {}]
  %s7 = inlined_call_operand.vmem [shape: f32[1,4], index: 7, kind: input, shape index: {}]
  %s8 = inlined_call_operand.vmem [shape: f32[1,16], index: 8, kind: input, shape index: {}]
  %s9 = inlined_call_operand.vmem [shape: f32[1,16], index: 9, kind: input, shape index: {}]
  %s10 = inlined_call_operand.vmem [shape: f32[4,4], index: 10, kind: input, shape index: {}]
  %s11 = inlined_call_operand.vmem [shape: f32[4,4], index: 11, kind: input, shape index: {}]
  %s12 = inlined_call_operand.vmem [shape: f32[16,16], index: 12, kind: input, shape index: {}]
  %s13 = inlined_call_operand.vmem [shape: f32[16,16], index: 13, kind: input, shape index: {}]
  %s14 = inlined_call_operand.vmem [shape: f32[2,256,16], index: 14, kind: output, shape index: {}]
  %s15 = sld [smem:[#allocation0]]
  $region89: #{tpu_custom_call.1} parent=0
    _
  %s17 = ssub.s32 1, %s15
  %s18 = scalar_select 0, %s17, %s15
  loop: start=0, step=1, limit=4
  $region2: #{tpu_custom_call.1} parent=0 // loop_pre_header
    _
  $region3: #{tpu_custom_call.1} parent=0 // loop_header
    %s20 = sphi 0, %s24
    %p21 = scmp.ge.s32.totalorder %s20, 4
    %s30 = sphi 0, %s32
    %s33 = sphi 0, %s30
    %s34 = sphi 0, %s33
    %s50 = sphi 0, %s34
    %s54 = sphi 0, %s54
    %s56 = sphi 0, %s54
    %s57 = sphi 0, %s56
    %s71 = sphi 0, %s57
    %s75 = sphi 0, %s75
    %s77 = sphi 0, %s75
    %s78 = sphi 0, %s77
    %s92 = sphi 0, %s78
    %s96 = sphi 0, %s96
    %s98 = sphi 0, %s96
    %s99 = sphi 0, %s98
    %s113 = sphi 0, %s99
    %s117 = sphi 0, %s117
    %s119 = sphi 0, %s117
    %s120 = sphi 0, %s119
    %s134 = sphi 0, %s120
    %s138 = sphi 0, %s138
    %s140 = sphi 0, %s138
    %s141 = sphi 0, %s140
    %s155 = sphi 0, %s141
    %s159 = sphi 0, %s159
    %s161 = sphi 0, %s159
    %s162 = sphi 0, %s161
    %s176 = sphi 0, %s162
    %s180 = sphi 0, %s180
    %s182 = sphi 0, %s180
    %s183 = sphi 0, %s182
    %s197 = sphi 0, %s183
    %s201 = sphi 0, %s201
    %s203 = sphi 0, %s201
    %s204 = sphi 0, %s203
    %s218 = sphi 0, %s204
    %s222 = sphi 0, %s222
    %s224 = sphi 0, %s222
    %s225 = sphi 0, %s224
    %s239 = sphi 0, %s225
    %s243 = sphi 0, %s243
    %s245 = sphi 0, %s243
    %s246 = sphi 0, %s245
    %s260 = sphi 0, %s246
    %s264 = sphi 0, %s264
    %s266 = sphi 0, %s264
    %s267 = sphi 0, %s266
    %s281 = sphi 0, %s267
    %s285 = sphi 0, %s285
    %s287 = sphi 0, %s285
    %s288 = sphi 0, %s287
    %s302 = sphi 0, %s288
    %s306 = sphi 0, %s306
    %s308 = sphi 0, %s306
    %s309 = sphi 0, %s308
    %s323 = sphi 0, %s309
    %s329 = sphi 0, %s331
    %s332 = sphi 0, %s329
    %s333 = sphi 0, %s332
    %s349 = sphi 0, %s333
  $region4: #{tpu_custom_call.1} parent=0 // loop_header_branch
    %23 = sbr.rel (%p21) target = $region8
  $region5: #{tpu_custom_call.1} parent=0 // loop_body
    %s25 = ssub.s32 %s20, 1
    %s26 = ssub.s32 %s20, 2
    %s27 = sadd.s32 %s20, 1
    %s28 = ssub.s32 %s20, %s27
    %p29 = scmp.eq.s32.totalorder %s28, 0
    %s31 = sadd.s32 %s30, 1
    %s32 = scalar_select %p29, %s30, %s31
    %p35 = pneg %p29
    %p36 = scmp.eq.s32.totalorder %s20, 1
    %p37 = por %p35, %p36
    %p38 = scmp.ne.s32.totalorder %s30, %s33
    %p39 = scmp.eq.s32.totalorder %s20, 0
    %p40 = por %p38, %p39
    %p41 = scmp.ne.s32.totalorder %s30, %s33
    %p42 = scmp.eq.s32.totalorder %s25, 1
    %p43 = por %p41, %p42
    %p44 = scmp.ne.s32.totalorder %s33, %s34
    %p45 = scmp.eq.s32.totalorder %s25, 0
    %p46 = por %p44, %p45
    %p47 = scmp.ne.s32.totalorder %s33, %s34
    %p48 = scmp.eq.s32.totalorder %s26, 1
    %p49 = por %p47, %p48
    %p51 = scmp.ne.s32.totalorder %s34, %s50
    %p52 = scmp.eq.s32.totalorder %s26, 0
    %p53 = por %p51, %p52
    %s55 = sadd.s32 %s54, 1
    %p58 = scmp.eq.s32.totalorder %s20, 1
    %p59 = scmp.ne.s32.totalorder %s54, %s56
    %p60 = scmp.eq.s32.totalorder %s20, 0
    %p61 = por %p59, %p60
    %p62 = scmp.ne.s32.totalorder %s54, %s56
    %p63 = scmp.eq.s32.totalorder %s25, 1
    %p64 = por %p62, %p63
    %p65 = scmp.ne.s32.totalorder %s56, %s57
    %p66 = scmp.eq.s32.totalorder %s25, 0
    %p67 = por %p65, %p66
    %p68 = scmp.ne.s32.totalorder %s56, %s57
    %p69 = scmp.eq.s32.totalorder %s26, 1
    %p70 = por %p68, %p69
    %p72 = scmp.ne.s32.totalorder %s57, %s71
    %p73 = scmp.eq.s32.totalorder %s26, 0
    %p74 = por %p72, %p73
    %s76 = sadd.s32 %s75, 1
    %p79 = scmp.eq.s32.totalorder %s20, 1
    %p80 = scmp.ne.s32.totalorder %s75, %s77
    %p81 = scmp.eq.s32.totalorder %s20, 0
    %p82 = por %p80, %p81
    %p83 = scmp.ne.s32.totalorder %s75, %s77
    %p84 = scmp.eq.s32.totalorder %s25, 1
    %p85 = por %p83, %p84
    %p86 = scmp.ne.s32.totalorder %s77, %s78
    %p87 = scmp.eq.s32.totalorder %s25, 0
    %p88 = por %p86, %p87
    %p89 = scmp.ne.s32.totalorder %s77, %s78
    %p90 = scmp.eq.s32.totalorder %s26, 1
    %p91 = por %p89, %p90
    %p93 = scmp.ne.s32.totalorder %s78, %s92
    %p94 = scmp.eq.s32.totalorder %s26, 0
    %p95 = por %p93, %p94
    %s97 = sadd.s32 %s96, 1
    %p100 = scmp.eq.s32.totalorder %s20, 1
    %p101 = scmp.ne.s32.totalorder %s96, %s98
    %p102 = scmp.eq.s32.totalorder %s20, 0
    %p103 = por %p101, %p102
    %p104 = scmp.ne.s32.totalorder %s96, %s98
    %p105 = scmp.eq.s32.totalorder %s25, 1
    %p106 = por %p104, %p105
    %p107 = scmp.ne.s32.totalorder %s98, %s99
    %p108 = scmp.eq.s32.totalorder %s25, 0
    %p109 = por %p107, %p108
    %p110 = scmp.ne.s32.totalorder %s98, %s99
    %p111 = scmp.eq.s32.totalorder %s26, 1
    %p112 = por %p110, %p111
    %p114 = scmp.ne.s32.totalorder %s99, %s113
    %p115 = scmp.eq.s32.totalorder %s26, 0
    %p116 = por %p114, %p115
    %s118 = sadd.s32 %s117, 1
    %p121 = scmp.eq.s32.totalorder %s20, 1
    %p122 = scmp.ne.s32.totalorder %s117, %s119
    %p123 = scmp.eq.s32.totalorder %s20, 0
    %p124 = por %p122, %p123
    %p125 = scmp.ne.s32.totalorder %s117, %s119
    %p126 = scmp.eq.s32.totalorder %s25, 1
    %p127 = por %p125, %p126
    %p128 = scmp.ne.s32.totalorder %s119, %s120
    %p129 = scmp.eq.s32.totalorder %s25, 0
    %p130 = por %p128, %p129
    %p131 = scmp.ne.s32.totalorder %s119, %s120
    %p132 = scmp.eq.s32.totalorder %s26, 1
    %p133 = por %p131, %p132
    %p135 = scmp.ne.s32.totalorder %s120, %s134
    %p136 = scmp.eq.s32.totalorder %s26, 0
    %p137 = por %p135, %p136
    %s139 = sadd.s32 %s138, 1
    %p142 = scmp.eq.s32.totalorder %s20, 1
    %p143 = scmp.ne.s32.totalorder %s138, %s140
    %p144 = scmp.eq.s32.totalorder %s20, 0
    %p145 = por %p143, %p144
    %p146 = scmp.ne.s32.totalorder %s138, %s140
    %p147 = scmp.eq.s32.totalorder %s25, 1
    %p148 = por %p146, %p147
    %p149 = scmp.ne.s32.totalorder %s140, %s141
    %p150 = scmp.eq.s32.totalorder %s25, 0
    %p151 = por %p149, %p150
    %p152 = scmp.ne.s32.totalorder %s140, %s141
    %p153 = scmp.eq.s32.totalorder %s26, 1
    %p154 = por %p152, %p153
    %p156 = scmp.ne.s32.totalorder %s141, %s155
    %p157 = scmp.eq.s32.totalorder %s26, 0
    %p158 = por %p156, %p157
    %s160 = sadd.s32 %s159, 1
    %p163 = scmp.eq.s32.totalorder %s20, 1
    %p164 = scmp.ne.s32.totalorder %s159, %s161
    %p165 = scmp.eq.s32.totalorder %s20, 0
    %p166 = por %p164, %p165
    %p167 = scmp.ne.s32.totalorder %s159, %s161
    %p168 = scmp.eq.s32.totalorder %s25, 1
    %p169 = por %p167, %p168
    %p170 = scmp.ne.s32.totalorder %s161, %s162
    %p171 = scmp.eq.s32.totalorder %s25, 0
    %p172 = por %p170, %p171
    %p173 = scmp.ne.s32.totalorder %s161, %s162
    %p174 = scmp.eq.s32.totalorder %s26, 1
    %p175 = por %p173, %p174
    %p177 = scmp.ne.s32.totalorder %s162, %s176
    %p178 = scmp.eq.s32.totalorder %s26, 0
    %p179 = por %p177, %p178
    %s181 = sadd.s32 %s180, 1
    %p184 = scmp.eq.s32.totalorder %s20, 1
    %p185 = scmp.ne.s32.totalorder %s180, %s182
    %p186 = scmp.eq.s32.totalorder %s20, 0
    %p187 = por %p185, %p186
    %p188 = scmp.ne.s32.totalorder %s180, %s182
    %p189 = scmp.eq.s32.totalorder %s25, 1
    %p190 = por %p188, %p189
    %p191 = scmp.ne.s32.totalorder %s182, %s183
    %p192 = scmp.eq.s32.totalorder %s25, 0
    %p193 = por %p191, %p192
    %p194 = scmp.ne.s32.totalorder %s182, %s183
    %p195 = scmp.eq.s32.totalorder %s26, 1
    %p196 = por %p194, %p195
    %p198 = scmp.ne.s32.totalorder %s183, %s197
    %p199 = scmp.eq.s32.totalorder %s26, 0
    %p200 = por %p198, %p199
    %s202 = sadd.s32 %s201, 1
    %p205 = scmp.eq.s32.totalorder %s20, 1
    %p206 = scmp.ne.s32.totalorder %s201, %s203
    %p207 = scmp.eq.s32.totalorder %s20, 0
    %p208 = por %p206, %p207
    %p209 = scmp.ne.s32.totalorder %s201, %s203
    %p210 = scmp.eq.s32.totalorder %s25, 1
    %p211 = por %p209, %p210
    %p212 = scmp.ne.s32.totalorder %s203, %s204
    %p213 = scmp.eq.s32.totalorder %s25, 0
    %p214 = por %p212, %p213
    %p215 = scmp.ne.s32.totalorder %s203, %s204
    %p216 = scmp.eq.s32.totalorder %s26, 1
    %p217 = por %p215, %p216
    %p219 = scmp.ne.s32.totalorder %s204, %s218
    %p220 = scmp.eq.s32.totalorder %s26, 0
    %p221 = por %p219, %p220
    %s223 = sadd.s32 %s222, 1
    %p226 = scmp.eq.s32.totalorder %s20, 1
    %p227 = scmp.ne.s32.totalorder %s222, %s224
    %p228 = scmp.eq.s32.totalorder %s20, 0
    %p229 = por %p227, %p228
    %p230 = scmp.ne.s32.totalorder %s222, %s224
    %p231 = scmp.eq.s32.totalorder %s25, 1
    %p232 = por %p230, %p231
    %p233 = scmp.ne.s32.totalorder %s224, %s225
    %p234 = scmp.eq.s32.totalorder %s25, 0
    %p235 = por %p233, %p234
    %p236 = scmp.ne.s32.totalorder %s224, %s225
    %p237 = scmp.eq.s32.totalorder %s26, 1
    %p238 = por %p236, %p237
    %p240 = scmp.ne.s32.totalorder %s225, %s239
    %p241 = scmp.eq.s32.totalorder %s26, 0
    %p242 = por %p240, %p241
    %s244 = sadd.s32 %s243, 1
    %p247 = scmp.eq.s32.totalorder %s20, 1
    %p248 = scmp.ne.s32.totalorder %s243, %s245
    %p249 = scmp.eq.s32.totalorder %s20, 0
    %p250 = por %p248, %p249
    %p251 = scmp.ne.s32.totalorder %s243, %s245
    %p252 = scmp.eq.s32.totalorder %s25, 1
    %p253 = por %p251, %p252
    %p254 = scmp.ne.s32.totalorder %s245, %s246
    %p255 = scmp.eq.s32.totalorder %s25, 0
    %p256 = por %p254, %p255
    %p257 = scmp.ne.s32.totalorder %s245, %s246
    %p258 = scmp.eq.s32.totalorder %s26, 1
    %p259 = por %p257, %p258
    %p261 = scmp.ne.s32.totalorder %s246, %s260
    %p262 = scmp.eq.s32.totalorder %s26, 0
    %p263 = por %p261, %p262
    %s265 = sadd.s32 %s264, 1
    %p268 = scmp.eq.s32.totalorder %s20, 1
    %p269 = scmp.ne.s32.totalorder %s264, %s266
    %p270 = scmp.eq.s32.totalorder %s20, 0
    %p271 = por %p269, %p270
    %p272 = scmp.ne.s32.totalorder %s264, %s266
    %p273 = scmp.eq.s32.totalorder %s25, 1
    %p274 = por %p272, %p273
    %p275 = scmp.ne.s32.totalorder %s266, %s267
    %p276 = scmp.eq.s32.totalorder %s25, 0
    %p277 = por %p275, %p276
    %p278 = scmp.ne.s32.totalorder %s266, %s267
    %p279 = scmp.eq.s32.totalorder %s26, 1
    %p280 = por %p278, %p279
    %p282 = scmp.ne.s32.totalorder %s267, %s281
    %p283 = scmp.eq.s32.totalorder %s26, 0
    %p284 = por %p282, %p283
    %s286 = sadd.s32 %s285, 1
    %p289 = scmp.eq.s32.totalorder %s20, 1
    %p290 = scmp.ne.s32.totalorder %s285, %s287
    %p291 = scmp.eq.s32.totalorder %s20, 0
    %p292 = por %p290, %p291
    %p293 = scmp.ne.s32.totalorder %s285, %s287
    %p294 = scmp.eq.s32.totalorder %s25, 1
    %p295 = por %p293, %p294
    %p296 = scmp.ne.s32.totalorder %s287, %s288
    %p297 = scmp.eq.s32.totalorder %s25, 0
    %p298 = por %p296, %p297
    %p299 = scmp.ne.s32.totalorder %s287, %s288
    %p300 = scmp.eq.s32.totalorder %s26, 1
    %p301 = por %p299, %p300
    %p303 = scmp.ne.s32.totalorder %s288, %s302
    %p304 = scmp.eq.s32.totalorder %s26, 0
    %p305 = por %p303, %p304
    %s307 = sadd.s32 %s306, 1
    %p310 = scmp.eq.s32.totalorder %s20, 1
    %p311 = scmp.ne.s32.totalorder %s306, %s308
    %p312 = scmp.eq.s32.totalorder %s20, 0
    %p313 = por %p311, %p312
    %p314 = scmp.ne.s32.totalorder %s306, %s308
    %p315 = scmp.eq.s32.totalorder %s25, 1
    %p316 = por %p314, %p315
    %p317 = scmp.ne.s32.totalorder %s308, %s309
    %p318 = scmp.eq.s32.totalorder %s25, 0
    %p319 = por %p317, %p318
    %p320 = scmp.ne.s32.totalorder %s308, %s309
    %p321 = scmp.eq.s32.totalorder %s26, 1
    %p322 = por %p320, %p321
    %p324 = scmp.ne.s32.totalorder %s309, %s323
    %p325 = scmp.eq.s32.totalorder %s26, 0
    %p326 = por %p324, %p325
    %s327 = ssub.s32 %s20, %s27
    %p328 = scmp.eq.s32.totalorder %s327, 0
    %s330 = sadd.s32 %s329, 1
    %s331 = scalar_select %p328, %s329, %s330
    %p334 = pneg %p328
    %p335 = scmp.eq.s32.totalorder %s20, 1
    %p336 = por %p334, %p335
    %p337 = scmp.ne.s32.totalorder %s329, %s332
    %p338 = scmp.eq.s32.totalorder %s20, 0
    %p339 = por %p337, %p338
    %p340 = scmp.ne.s32.totalorder %s329, %s332
    %p341 = scmp.eq.s32.totalorder %s25, 1
    %p342 = por %p340, %p341
    %p343 = scmp.ne.s32.totalorder %s332, %s333
    %p344 = scmp.eq.s32.totalorder %s25, 0
    %p345 = por %p343, %p344
    %p346 = scmp.ne.s32.totalorder %s332, %s333
    %p347 = scmp.eq.s32.totalorder %s26, 1
    %p348 = por %p346, %p347
    %p350 = scmp.ne.s32.totalorder %s333, %s349
    %p351 = scmp.eq.s32.totalorder %s26, 0
    %p352 = por %p350, %p351
    %p353 = scmp.le.s32.totalorder 1, %s20
    %p354 = scmp.lt.s32.totalorder %s20, 3
    %p355 = pnand %p353, %p354
    %p356 = pneg %p355
    // Predicated region
    $region9: #{tpu_custom_call.1} parent=5 // pred_check
      _
    $region10: #{tpu_custom_call.1} parent=5 // pred_check_branch
      %358 = sbr.rel (%p355) target = $region12
    $region11: #{tpu_custom_call.1} parent=5 // pred_region
      %s359 = ssub.s32 %s20, 1
      // Predicated region
      $region13: #{tpu_custom_call.1} parent=11 // pred_check
        %p360 = pneg %p67
      $region14: #{tpu_custom_call.1} parent=11 // pred_check_branch
        %362 = sbr.rel (%p360) target = $region16
      $region15: #{tpu_custom_call.1} parent=11 // pred_region
        _
      $region16: #{tpu_custom_call.1} parent=11 // pred_fallthru
        _
      // Predicated region
      $region17: #{tpu_custom_call.1} parent=11 // pred_check
        %p363 = pneg %p88
      $region18: #{tpu_custom_call.1} parent=11 // pred_check_branch
        %365 = sbr.rel (%p363) target = $region20
      $region19: #{tpu_custom_call.1} parent=11 // pred_region
        _
      $region20: #{tpu_custom_call.1} parent=11 // pred_fallthru
        _
      // Predicated region
      $region21: #{tpu_custom_call.1} parent=11 // pred_check
        %p366 = pneg %p109
      $region22: #{tpu_custom_call.1} parent=11 // pred_check_branch
        %368 = sbr.rel (%p366) target = $region24
      $region23: #{tpu_custom_call.1} parent=11 // pred_region
        _
      $region24: #{tpu_custom_call.1} parent=11 // pred_fallthru
        _
      // Predicated region
      $region25: #{tpu_custom_call.1} parent=11 // pred_check
        %p369 = pneg %p130
      $region26: #{tpu_custom_call.1} parent=11 // pred_check_branch
        %371 = sbr.rel (%p369) target = $region28
      $region27: #{tpu_custom_call.1} parent=11 // pred_region
        _
      $region28: #{tpu_custom_call.1} parent=11 // pred_fallthru
        _
      // Predicated region
      $region29: #{tpu_custom_call.1} parent=11 // pred_check
        %p372 = pneg %p151
      $region30: #{tpu_custom_call.1} parent=11 // pred_check_branch
        %374 = sbr.rel (%p372) target = $region32
      $region31: #{tpu_custom_call.1} parent=11 // pred_region
        _
      $region32: #{tpu_custom_call.1} parent=11 // pred_fallthru
        _
      // Predicated region
      $region33: #{tpu_custom_call.1} parent=11 // pred_check
        %p375 = pneg %p172
      $region34: #{tpu_custom_call.1} parent=11 // pred_check_branch
        %377 = sbr.rel (%p375) target = $region36
      $region35: #{tpu_custom_call.1} parent=11 // pred_region
        _
      $region36: #{tpu_custom_call.1} parent=11 // pred_fallthru
        _
      // Predicated region
      $region37: #{tpu_custom_call.1} parent=11 // pred_check
        %p378 = pneg %p193
      $region38: #{tpu_custom_call.1} parent=11 // pred_check_branch
        %380 = sbr.rel (%p378) target = $region40
      $region39: #{tpu_custom_call.1} parent=11 // pred_region
        _
      $region40: #{tpu_custom_call.1} parent=11 // pred_fallthru
        _
      // Predicated region
      $region41: #{tpu_custom_call.1} parent=11 // pred_check
        %p381 = pneg %p214
      $region42: #{tpu_custom_call.1} parent=11 // pred_check_branch
        %383 = sbr.rel (%p381) target = $region44
      $region43: #{tpu_custom_call.1} parent=11 // pred_region
        _
      $region44: #{tpu_custom_call.1} parent=11 // pred_fallthru
        _
      // Predicated region
      $region45: #{tpu_custom_call.1} parent=11 // pred_check
        %p384 = pneg %p235
      $region46: #{tpu_custom_call.1} parent=11 // pred_check_branch
        %386 = sbr.rel (%p384) target = $region48
      $region47: #{tpu_custom_call.1} parent=11 // pred_region
        _
      $region48: #{tpu_custom_call.1} parent=11 // pred_fallthru
        _
      // Predicated region
      $region49: #{tpu_custom_call.1} parent=11 // pred_check
        %p387 = pneg %p256
      $region50: #{tpu_custom_call.1} parent=11 // pred_check_branch
        %389 = sbr.rel (%p387) target = $region52
      $region51: #{tpu_custom_call.1} parent=11 // pred_region
        _
      $region52: #{tpu_custom_call.1} parent=11 // pred_fallthru
        _
      // Predicated region
      $region53: #{tpu_custom_call.1} parent=11 // pred_check
        %p390 = pneg %p277
      $region54: #{tpu_custom_call.1} parent=11 // pred_check_branch
        %392 = sbr.rel (%p390) target = $region56
      $region55: #{tpu_custom_call.1} parent=11 // pred_region
        _
      $region56: #{tpu_custom_call.1} parent=11 // pred_fallthru
        _
      // Predicated region
      $region57: #{tpu_custom_call.1} parent=11 // pred_check
        %p393 = pneg %p298
      $region58: #{tpu_custom_call.1} parent=11 // pred_check_branch
        %395 = sbr.rel (%p393) target = $region60
      $region59: #{tpu_custom_call.1} parent=11 // pred_region
        _
      $region60: #{tpu_custom_call.1} parent=11 // pred_fallthru
        _
      // Predicated region
      $region61: #{tpu_custom_call.1} parent=11 // pred_check
        %p396 = pneg %p319
      $region62: #{tpu_custom_call.1} parent=11 // pred_check_branch
        %398 = sbr.rel (%p396) target = $region64
      $region63: #{tpu_custom_call.1} parent=11 // pred_region
        _
      $region64: #{tpu_custom_call.1} parent=11 // pred_fallthru
        _
    $region12: #{tpu_custom_call.1} parent=5 // pred_fallthru
      _
    %p399 = scmp.lt.s32.totalorder %s20, 2
    // Predicated region
    $region65: #{tpu_custom_call.1} parent=5 // pred_check
      %p400 = pneg %p399
    $region66: #{tpu_custom_call.1} parent=5 // pred_check_branch
      %402 = sbr.rel (%p400) target = $region68
    $region67: #{tpu_custom_call.1} parent=5 // pred_region
      // Predicated region
      $region69: #{tpu_custom_call.1} parent=67 // pred_check
        %p403 = pneg %p40
      $region70: #{tpu_custom_call.1} parent=67 // pred_check_branch
        %405 = sbr.rel (%p403) target = $region72
      $region71: #{tpu_custom_call.1} parent=67 // pred_region
        %p406 = scmp.lt.s32.totalorder %s20, 1
        %s407 = scalar_select %p406, %s20, 1
        %s408 = smul.addr %s407, 32
        %s409 = smul.addr %s408, 8
        %s410 = scalar_lea.vmem %s0, %s409
      $region72: #{tpu_custom_call.1} parent=67 // pred_fallthru
        _
    $region68: #{tpu_custom_call.1} parent=5 // pred_fallthru
      _
    %p411 = scmp.le.s32.totalorder 1, %s20
    %p412 = scmp.lt.s32.totalorder %s20, 3
    %p413 = pnand %p411, %p412
    %p414 = pneg %p413
    // Predicated region
    $region73: #{tpu_custom_call.1} parent=5 // pred_check
      _
    $region74: #{tpu_custom_call.1} parent=5 // pred_check_branch
      %416 = sbr.rel (%p413) target = $region76
    $region75: #{tpu_custom_call.1} parent=5 // pred_region
      %s417 = ssub.s32 %s20, 1
      %p418 = scmp.lt.s32.totalorder %s25, 1
      %s419 = scalar_select %p418, %s25, 1
      %s420 = smul.addr %s419, 32
      %s421 = smul.addr %s420, 8
      %s422 = scalar_lea.vmem %s0, %s421
      %p423 = pneg %p46
      %p424 = pneg %p43
      %p425 = pneg %p67
      %p426 = pneg %p64
      %p427 = pneg %p88
      %p428 = pneg %p85
      %p429 = pneg %p109
      %p430 = pneg %p106
      %p431 = pneg %p130
      %p432 = pneg %p127
      %p433 = pneg %p151
      %p434 = pneg %p148
      %p435 = pneg %p172
      %p436 = pneg %p169
      %p437 = pneg %p193
      %p438 = pneg %p190
      %p439 = pneg %p214
      %p440 = pneg %p211
      %p441 = pneg %p235
      %p442 = pneg %p232
      %p443 = pneg %p256
      %p444 = pneg %p253
      %p445 = pneg %p277
      %p446 = pneg %p274
      %p447 = pneg %p298
      %p448 = pneg %p295
      %p449 = pneg %p319
      %p450 = pneg %p316
      %p451 = pneg %p345
      %p452 = pneg %p342
      %p453 = scmp.lt.s32.totalorder %s25, 1
      %s454 = scalar_select %p453, %s25, 1
      %s455 = smul.addr %s454, 32
      %s456 = smul.addr %s455, 8
      %s457 = scalar_lea.vmem %s14, %s456
      %p458 = scmp.lt.s32.totalorder %s25, 1
      %s459 = scalar_select %p458, %s25, 1
      %s460 = smul.addr %s459, 32
      %s461 = smul.addr %s460, 8
      %s462 = scalar_lea.vmem %s0, %s461
      %p463 = scmp.lt.s32.totalorder %s25, 1
      %s464 = scalar_select %p463, %s25, 1
      %s465 = smul.addr %s464, 32
      %s466 = smul.addr %s465, 8
      %s467 = scalar_lea.vmem %s14, %s466
      %v469 = vld [vmem:[%s462] sm:$0xff]
      %v470 = vld [vmem:[%s462 + $0x8] sm:$0xff]
      %v471 = vld [vmem:[%s462 + $0x10] sm:$0xff]
      %v472 = vld [vmem:[%s462 + $0x18] sm:$0xff]
      %v473 = vld [vmem:[%s462 + $0x20] sm:$0xff]
      %v474 = vld [vmem:[%s462 + $0x28] sm:$0xff]
      %v475 = vld [vmem:[%s462 + $0x30] sm:$0xff]
      %v476 = vld [vmem:[%s462 + $0x38] sm:$0xff]
      %v477 = vld [vmem:[%s462 + $0x40] sm:$0xff]
      %v478 = vld [vmem:[%s462 + $0x48] sm:$0xff]
      %v479 = vld [vmem:[%s462 + $0x50] sm:$0xff]
      %v480 = vld [vmem:[%s462 + $0x58] sm:$0xff]
      %v481 = vld [vmem:[%s462 + $0x60] sm:$0xff]
      %v482 = vld [vmem:[%s462 + $0x68] sm:$0xff]
      %v483 = vld [vmem:[%s462 + $0x70] sm:$0xff]
      %v484 = vld [vmem:[%s462 + $0x78] sm:$0xff]
      %v485 = vld [vmem:[%s462 + $0x80] sm:$0xff]
      %v486 = vld [vmem:[%s462 + $0x88] sm:$0xff]
      %v487 = vld [vmem:[%s462 + $0x90] sm:$0xff]
      %v488 = vld [vmem:[%s462 + $0x98] sm:$0xff]
      %v489 = vld [vmem:[%s462 + $0xa0] sm:$0xff]
      %v490 = vld [vmem:[%s462 + $0xa8] sm:$0xff]
      %v491 = vld [vmem:[%s462 + $0xb0] sm:$0xff]
      %v492 = vld [vmem:[%s462 + $0xb8] sm:$0xff]
      %v493 = vld [vmem:[%s462 + $0xc0] sm:$0xff]
      %v494 = vld [vmem:[%s462 + $0xc8] sm:$0xff]
      %v495 = vld [vmem:[%s462 + $0xd0] sm:$0xff]
      %v496 = vld [vmem:[%s462 + $0xd8] sm:$0xff]
      %v497 = vld [vmem:[%s462 + $0xe0] sm:$0xff]
      %v498 = vld [vmem:[%s462 + $0xe8] sm:$0xff]
      %v499 = vld [vmem:[%s462 + $0xf0] sm:$0xff]
      %v500 = vld [vmem:[%s462 + $0xf8] sm:$0xff]
      %v501 = vpack.c.bf16 %v470, %v469
      %v502 = vpack.c.bf16 %v472, %v471
      %v503 = vpack.c.bf16 %v474, %v473
      %v504 = vpack.c.bf16 %v476, %v475
      %v505 = vpack.c.bf16 %v478, %v477
      %v506 = vpack.c.bf16 %v480, %v479
      %v507 = vpack.c.bf16 %v482, %v481
      %v508 = vpack.c.bf16 %v484, %v483
      %v509 = vpack.c.bf16 %v486, %v485
      %v510 = vpack.c.bf16 %v488, %v487
      %v511 = vpack.c.bf16 %v490, %v489
      %v512 = vpack.c.bf16 %v492, %v491
      %v513 = vpack.c.bf16 %v494, %v493
      %v514 = vpack.c.bf16 %v496, %v495
      %v515 = vpack.c.bf16 %v498, %v497
      %v516 = vpack.c.bf16 %v500, %v499
      %v517 = vld [vmem:[%s1] sm:$0xf]
      %v518 = vld [vmem:[%s1 + $0x4] sm:$0xf]
      %v521 = vunpack.c.l.b16 %v517
      %v522 = vunpack.c.l.b16 %v518
      %v523 = vpack.c.b16 %v522, %v521
      %vm525 = vcmask 130048
      %v527 = vsel %vm525, %v501, 0
      %v530 = vsel %vm525, %v502, 0
      %v533 = vsel %vm525, %v503, 0
      %v536 = vsel %vm525, %v504, 0
      %v539 = vsel %vm525, %v505, 0
      %v542 = vsel %vm525, %v506, 0
      %v545 = vsel %vm525, %v507, 0
      %v548 = vsel %vm525, %v508, 0
      %v551 = vsel %vm525, %v509, 0
      %v554 = vsel %vm525, %v510, 0
      %v557 = vsel %vm525, %v511, 0
      %v560 = vsel %vm525, %v512, 0
      %v563 = vsel %vm525, %v513, 0
      %v566 = vsel %vm525, %v514, 0
      %v569 = vsel %vm525, %v515, 0
      %v572 = vsel %vm525, %v516, 0
      %574 = vmatpush.bf16.msra.mxu0 0
      %575 = vmatpush.bf16.msra.mxu0 0
      %576 = vmatpush.bf16.msra.mxu0 0
      %577 = vmatpush.bf16.msra.mxu0 0
      %578 = vmatpush.bf16.msra.mxu0 0
      %579 = vmatpush.bf16.msra.mxu0 0
      %580 = vmatpush.bf16.msra.mxu0 0
      %581 = vmatpush.bf16.msra.mxu0 %v523
      %582 = vmatmul.bf16.gmra.mxu0 %v527
      %v583 = vpop.f32.mrf.mxu0
      %v584 = vadd.f32 0.0, %v583
      %v585 = vpop.f32.mrf.mxu0
      %v586 = vadd.f32 0.0, %v585
      %587 = vmatmul.bf16.gmra.mxu0 %v530
      %v588 = vpop.f32.mrf.mxu0
      %v589 = vadd.f32 0.0, %v588
      %v590 = vpop.f32.mrf.mxu0
      %v591 = vadd.f32 0.0, %v590
      %592 = vmatmul.bf16.gmra.mxu0 %v533
      %v593 = vpop.f32.mrf.mxu0
      %v594 = vadd.f32 0.0, %v593
      %v595 = vpop.f32.mrf.mxu0
      %v596 = vadd.f32 0.0, %v595
      %597 = vmatmul.bf16.gmra.mxu0 %v536
      %v598 = vpop.f32.mrf.mxu0
      %v599 = vadd.f32 0.0, %v598
      %v600 = vpop.f32.mrf.mxu0
      %v601 = vadd.f32 0.0, %v600
      %602 = vmatmul.bf16.gmra.mxu0 %v539
      %v603 = vpop.f32.mrf.mxu0
      %v604 = vadd.f32 0.0, %v603
      %v605 = vpop.f32.mrf.mxu0
      %v606 = vadd.f32 0.0, %v605
      %607 = vmatmul.bf16.gmra.mxu0 %v542
      %v608 = vpop.f32.mrf.mxu0
      %v609 = vadd.f32 0.0, %v608
      %v610 = vpop.f32.mrf.mxu0
      %v611 = vadd.f32 0.0, %v610
      %612 = vmatmul.bf16.gmra.mxu0 %v545
      %v613 = vpop.f32.mrf.mxu0
      %v614 = vadd.f32 0.0, %v613
      %v615 = vpop.f32.mrf.mxu0
      %v616 = vadd.f32 0.0, %v615
      %617 = vmatmul.bf16.gmra.mxu0 %v548
      %v618 = vpop.f32.mrf.mxu0
      %v619 = vadd.f32 0.0, %v618
      %v620 = vpop.f32.mrf.mxu0
      %v621 = vadd.f32 0.0, %v620
      %622 = vmatmul.bf16.gmra.mxu0 %v551
      %v623 = vpop.f32.mrf.mxu0
      %v624 = vadd.f32 0.0, %v623
      %v625 = vpop.f32.mrf.mxu0
      %v626 = vadd.f32 0.0, %v625
      %627 = vmatmul.bf16.gmra.mxu0 %v554
      %v628 = vpop.f32.mrf.mxu0
      %v629 = vadd.f32 0.0, %v628
      %v630 = vpop.f32.mrf.mxu0
      %v631 = vadd.f32 0.0, %v630
      %632 = vmatmul.bf16.gmra.mxu0 %v557
      %v633 = vpop.f32.mrf.mxu0
      %v634 = vadd.f32 0.0, %v633
      %v635 = vpop.f32.mrf.mxu0
      %v636 = vadd.f32 0.0, %v635
      %637 = vmatmul.bf16.gmra.mxu0 %v560
      %v638 = vpop.f32.mrf.mxu0
      %v639 = vadd.f32 0.0, %v638
      %v640 = vpop.f32.mrf.mxu0
      %v641 = vadd.f32 0.0, %v640
      %642 = vmatmul.bf16.gmra.mxu0 %v563
      %v643 = vpop.f32.mrf.mxu0
      %v644 = vadd.f32 0.0, %v643
      %v645 = vpop.f32.mrf.mxu0
      %v646 = vadd.f32 0.0, %v645
      %647 = vmatmul.bf16.gmra.mxu0 %v566
      %v648 = vpop.f32.mrf.mxu0
      %v649 = vadd.f32 0.0, %v648
      %v650 = vpop.f32.mrf.mxu0
      %v651 = vadd.f32 0.0, %v650
      %652 = vmatmul.bf16.gmra.mxu0 %v569
      %v653 = vpop.f32.mrf.mxu0
      %v654 = vadd.f32 0.0, %v653
      %v655 = vpop.f32.mrf.mxu0
      %v656 = vadd.f32 0.0, %v655
      %657 = vmatmul.bf16.gmra.mxu0 %v572
      %v658 = vpop.f32.mrf.mxu0
      %v659 = vadd.f32 0.0, %v658
      %v660 = vpop.f32.mrf.mxu0
      %v661 = vadd.f32 0.0, %v660
      %662 = vdwg.mxu0
      %v663 = vld [vmem:[%s4] sm:$0x1]
      %v664 = vld [vmem:[%s5] sm:$0x1]
      %v665 = vld [vmem:[%s10] sm:$0xf]
      %v666 = vld [vmem:[%s11] sm:$0xf]
      %vm667 = vcmask 31744
      %v668 = vsel %vm667, %v584, 0.0
      %v669 = vsel %vm667, %v586, 0.0
      %v670 = vadd.f32 %v668, %v669
      %v671 = vsel %vm667, %v589, 0.0
      %v672 = vadd.f32 %v670, %v671
      %v673 = vsel %vm667, %v591, 0.0
      %v674 = vadd.f32 %v672, %v673
      %v675 = vsel %vm667, %v594, 0.0
      %v676 = vadd.f32 %v674, %v675
      %v677 = vsel %vm667, %v596, 0.0
      %v678 = vadd.f32 %v676, %v677
      %v679 = vsel %vm667, %v599, 0.0
      %v680 = vadd.f32 %v678, %v679
      %v681 = vsel %vm667, %v601, 0.0
      %v682 = vadd.f32 %v680, %v681
      %v683 = vsel %vm667, %v604, 0.0
      %v684 = vadd.f32 %v682, %v683
      %v685 = vsel %vm667, %v606, 0.0
      %v686 = vadd.f32 %v684, %v685
      %v687 = vsel %vm667, %v609, 0.0
      %v688 = vadd.f32 %v686, %v687
      %v689 = vsel %vm667, %v611, 0.0
      %v690 = vadd.f32 %v688, %v689
      %v691 = vsel %vm667, %v614, 0.0
      %v692 = vadd.f32 %v690, %v691
      %v693 = vsel %vm667, %v616, 0.0
      %v694 = vadd.f32 %v692, %v693
      %v695 = vsel %vm667, %v619, 0.0
      %v696 = vadd.f32 %v694, %v695
      %v697 = vsel %vm667, %v621, 0.0
      %v698 = vadd.f32 %v696, %v697
      %v699 = vsel %vm667, %v624, 0.0
      %v700 = vadd.f32 %v698, %v699
      %v701 = vsel %vm667, %v626, 0.0
      %v702 = vadd.f32 %v700, %v701
      %v703 = vsel %vm667, %v629, 0.0
      %v704 = vadd.f32 %v702, %v703
      %v705 = vsel %vm667, %v631, 0.0
      %v706 = vadd.f32 %v704, %v705
      %v707 = vsel %vm667, %v634, 0.0
      %v708 = vadd.f32 %v706, %v707
      %v709 = vsel %vm667, %v636, 0.0
      %v710 = vadd.f32 %v708, %v709
      %v711 = vsel %vm667, %v639, 0.0
      %v712 = vadd.f32 %v710, %v711
      %v713 = vsel %vm667, %v641, 0.0
      %v714 = vadd.f32 %v712, %v713
      %v715 = vsel %vm667, %v644, 0.0
      %v716 = vadd.f32 %v714, %v715
      %v717 = vsel %vm667, %v646, 0.0
      %v718 = vadd.f32 %v716, %v717
      %v719 = vsel %vm667, %v649, 0.0
      %v720 = vadd.f32 %v718, %v719
      %v721 = vsel %vm667, %v651, 0.0
      %v722 = vadd.f32 %v720, %v721
      %v723 = vsel %vm667, %v654, 0.0
      %v724 = vadd.f32 %v722, %v723
      %v725 = vsel %vm667, %v656, 0.0
      %v726 = vadd.f32 %v724, %v725
      %v727 = vsel %vm667, %v659, 0.0
      %v728 = vadd.f32 %v726, %v727
      %v729 = vsel %vm667, %v661, 0.0
      %v730 = vadd.f32 %v728, %v729
      %v731 = vrot.slane %v730, 4
      %v732 = vadd.f32 %v730, %v731
      %v733 = vrot.slane %v732, 2
      %v734 = vadd.f32 %v732, %v733
      %v735 = vrot.slane %v734, 1
      %v736 = vadd.f32 %v734, %v735
      %v737 = vmul.f32 %v584, %v584
      %v738 = vmul.f32 %v586, %v586
      %v739 = vmul.f32 %v589, %v589
      %v740 = vmul.f32 %v591, %v591
      %v741 = vmul.f32 %v594, %v594
      %v742 = vmul.f32 %v596, %v596
      %v743 = vmul.f32 %v599, %v599
      %v744 = vmul.f32 %v601, %v601
      %v745 = vmul.f32 %v604, %v604
      %v746 = vmul.f32 %v606, %v606
      %v747 = vmul.f32 %v609, %v609
      %v748 = vmul.f32 %v611, %v611
      %v749 = vmul.f32 %v614, %v614
      %v750 = vmul.f32 %v616, %v616
      %v751 = vmul.f32 %v619, %v619
      %v752 = vmul.f32 %v621, %v621
      %v753 = vmul.f32 %v624, %v624
      %v754 = vmul.f32 %v626, %v626
      %v755 = vmul.f32 %v629, %v629
      %v756 = vmul.f32 %v631, %v631
      %v757 = vmul.f32 %v634, %v634
      %v758 = vmul.f32 %v636, %v636
      %v759 = vmul.f32 %v639, %v639
      %v760 = vmul.f32 %v641, %v641
      %v761 = vmul.f32 %v644, %v644
      %v762 = vmul.f32 %v646, %v646
      %v763 = vmul.f32 %v649, %v649
      %v764 = vmul.f32 %v651, %v651
      %v765 = vmul.f32 %v654, %v654
      %v766 = vmul.f32 %v656, %v656
      %v767 = vmul.f32 %v659, %v659
      %v768 = vmul.f32 %v661, %v661
      %v769 = vsel %vm667, %v737, 0.0
      %v770 = vsel %vm667, %v738, 0.0
      %v771 = vadd.f32 %v769, %v770
      %v772 = vsel %vm667, %v739, 0.0
      %v773 = vadd.f32 %v771, %v772
      %v774 = vsel %vm667, %v740, 0.0
      %v775 = vadd.f32 %v773, %v774
      %v776 = vsel %vm667, %v741, 0.0
      %v777 = vadd.f32 %v775, %v776
      %v778 = vsel %vm667, %v742, 0.0
      %v779 = vadd.f32 %v777, %v778
      %v780 = vsel %vm667, %v743, 0.0
      %v781 = vadd.f32 %v779, %v780
      %v782 = vsel %vm667, %v744, 0.0
      %v783 = vadd.f32 %v781, %v782
      %v784 = vsel %vm667, %v745, 0.0
      %v785 = vadd.f32 %v783, %v784
      %v786 = vsel %vm667, %v746, 0.0
      %v787 = vadd.f32 %v785, %v786
      %v788 = vsel %vm667, %v747, 0.0
      %v789 = vadd.f32 %v787, %v788
      %v790 = vsel %vm667, %v748, 0.0
      %v791 = vadd.f32 %v789, %v790
      %v792 = vsel %vm667, %v749, 0.0
      %v793 = vadd.f32 %v791, %v792
      %v794 = vsel %vm667, %v750, 0.0
      %v795 = vadd.f32 %v793, %v794
      %v796 = vsel %vm667, %v751, 0.0
      %v797 = vadd.f32 %v795, %v796
      %v798 = vsel %vm667, %v752, 0.0
      %v799 = vadd.f32 %v797, %v798
      %v800 = vsel %vm667, %v753, 0.0
      %v801 = vadd.f32 %v799, %v800
      %v802 = vsel %vm667, %v754, 0.0
      %v803 = vadd.f32 %v801, %v802
      %v804 = vsel %vm667, %v755, 0.0
      %v805 = vadd.f32 %v803, %v804
      %v806 = vsel %vm667, %v756, 0.0
      %v807 = vadd.f32 %v805, %v806
      %v808 = vsel %vm667, %v757, 0.0
      %v809 = vadd.f32 %v807, %v808
      %v810 = vsel %vm667, %v758, 0.0
      %v811 = vadd.f32 %v809, %v810
      %v812 = vsel %vm667, %v759, 0.0
      %v813 = vadd.f32 %v811, %v812
      %v814 = vsel %vm667, %v760, 0.0
      %v815 = vadd.f32 %v813, %v814
      %v816 = vsel %vm667, %v761, 0.0
      %v817 = vadd.f32 %v815, %v816
      %v818 = vsel %vm667, %v762, 0.0
      %v819 = vadd.f32 %v817, %v818
      %v820 = vsel %vm667, %v763, 0.0
      %v821 = vadd.f32 %v819, %v820
      %v822 = vsel %vm667, %v764, 0.0
      %v823 = vadd.f32 %v821, %v822
      %v824 = vsel %vm667, %v765, 0.0
      %v825 = vadd.f32 %v823, %v824
      %v826 = vsel %vm667, %v766, 0.0
      %v827 = vadd.f32 %v825, %v826
      %v828 = vsel %vm667, %v767, 0.0
      %v829 = vadd.f32 %v827, %v828
      %v830 = vsel %vm667, %v768, 0.0
      %v831 = vadd.f32 %v829, %v830
      %v832 = vrot.slane %v831, 4
      %v833 = vadd.f32 %v831, %v832
      %v834 = vrot.slane %v833, 2
      %v835 = vadd.f32 %v833, %v834
      %v836 = vrot.slane %v835, 1
      %v837 = vadd.f32 %v835, %v836
      %v838 = vlaneseq
      %v839 = vshrl.u32 %v838, 7
      %vm840 = vcmp.eq.s32.totalorder %v839, 0
      %v841 = vsel %vm840, 1, 0
      %vm842 = vcmp.eq.s32.totalorder %v841, 1
      %v843 = vsel %vm842, %v736, %v837
      %v845 = vsel %vm667, %v843, 0
      %vm847 = vcmask 1043456
      %v849 = vsel %vm847, %v665, 0
      %851 = vmatpush.msra.mxu0 0.0
      %852 = vmatpush.msra.mxu0 0.0
      %853 = vmatpush.msra.mxu0 0.0
      %854 = vmatpush.msra.mxu0 0.0
      %855 = vmatpush.msra.mxu0 0.0
      %856 = vmatpush.msra.mxu0 0.0
      %857 = vmatpush.msra.mxu0 0.0
      %858 = vmatpush.msra.mxu0 0.0
      %859 = vmatpush.msra.mxu0 0.0
      %860 = vmatpush.msra.mxu0 0.0
      %861 = vmatpush.msra.mxu0 0.0
      %862 = vmatpush.msra.mxu0 0.0
      %863 = vmatpush.msra.mxu0 0.0
      %864 = vmatpush.msra.mxu0 0.0
      %865 = vmatpush.msra.mxu0 0.0
      %866 = vmatpush.msra.mxu0 %v849
      %867 = vmatmul.f32.gmra.mxu0 %v845
      %v868 = vpop.f32.mrf.mxu0
      %v869 = vadd.f32 0.0, %v868
      %870 = vdwg.mxu0
      %v871 = vmul.f32 %v869, 0.00390625
      %v872 = vmul.f32 %v871, %v871
      %v874 = vrot.slane %v872, 7
      %v876 = vsub.f32 %v871, %v874
      %v877 = vadd.f32 %v876, 1e-05
      %v878 = vrsqrt.pop %v877
      %v879 = vmul.f32 %v878, %v877
      %v880 = vmul.f32 %v879, %v878
      %v881 = vmul.f32 0.5, %v880
      %v882 = vsub.f32 1.5, %v881
      %v883 = vmul.f32 %v878, %v882
      %vm884 = vweird.f32 %v877
      %vm885 = vweird.f32 %v878
      %vm886 = vmor %vm884, %vm885
      %v887 = vsel %vm886, %v878, %v883
      %v888 = vperm.slane %v871, 0
      %v889 = vperm.slane %v887, 1
      %v890 = vsel %vm842, %v888, %v889
      %v892 = vsel %vm667, %v890, 0
      %v895 = vsel %vm847, %v666, 0
      %897 = vmatpush.msra.mxu0 0.0
      %898 = vmatpush.msra.mxu0 0.0
      %899 = vmatpush.msra.mxu0 0.0
      %900 = vmatpush.msra.mxu0 0.0
      %901 = vmatpush.msra.mxu0 0.0
      %902 = vmatpush.msra.mxu0 0.0
      %903 = vmatpush.msra.mxu0 0.0
      %904 = vmatpush.msra.mxu0 0.0
      %905 = vmatpush.msra.mxu0 0.0
      %906 = vmatpush.msra.mxu0 0.0
      %907 = vmatpush.msra.mxu0 0.0
      %908 = vmatpush.msra.mxu0 0.0
      %909 = vmatpush.msra.mxu0 0.0
      %910 = vmatpush.msra.mxu0 0.0
      %911 = vmatpush.msra.mxu0 0.0
      %912 = vmatpush.msra.mxu0 %v895
      %913 = vmatmul.f32.gmra.mxu0 %v892
      %v914 = vpop.f32.mrf.mxu0
      %v915 = vadd.f32 0.0, %v914
      %916 = vdwg.mxu0
      %v918 = vperm.slane %v663, 0
      %v920 = vmul.f32 %v915, %v918
      %v922 = vrot.slane %v920, 1
      %v924 = vmul.f32 %v915, %v922
      %v925 = vsub.f32 %v664, %v924
      %v926 = vperm.slane %v920, 1
      %v927 = vmul.f32 %v584, %v926
      %v928 = vmul.f32 %v586, %v926
      %v929 = vmul.f32 %v589, %v926
      %v930 = vmul.f32 %v591, %v926
      %v931 = vmul.f32 %v594, %v926
      %v932 = vmul.f32 %v596, %v926
      %v933 = vmul.f32 %v599, %v926
      %v934 = vmul.f32 %v601, %v926
      %v935 = vmul.f32 %v604, %v926
      %v936 = vmul.f32 %v606, %v926
      %v937 = vmul.f32 %v609, %v926
      %v938 = vmul.f32 %v611, %v926
      %v939 = vmul.f32 %v614, %v926
      %v940 = vmul.f32 %v616, %v926
      %v941 = vmul.f32 %v619, %v926
      %v942 = vmul.f32 %v621, %v926
      %v943 = vmul.f32 %v624, %v926
      %v944 = vmul.f32 %v626, %v926
      %v945 = vmul.f32 %v629, %v926
      %v946 = vmul.f32 %v631, %v926
      %v947 = vmul.f32 %v634, %v926
      %v948 = vmul.f32 %v636, %v926
      %v949 = vmul.f32 %v639, %v926
      %v950 = vmul.f32 %v641, %v926
      %v951 = vmul.f32 %v644, %v926
      %v952 = vmul.f32 %v646, %v926
      %v953 = vmul.f32 %v649, %v926
      %v954 = vmul.f32 %v651, %v926
      %v955 = vmul.f32 %v654, %v926
      %v956 = vmul.f32 %v656, %v926
      %v957 = vmul.f32 %v659, %v926
      %v958 = vmul.f32 %v661, %v926
      %v960 = vperm.slane %v925, 0
      %v962 = vadd.f32 %v927, %v960
      %v963 = vadd.f32 %v928, %v960
      %v964 = vadd.f32 %v929, %v960
      %v965 = vadd.f32 %v930, %v960
      %v966 = vadd.f32 %v931, %v960
      %v967 = vadd.f32 %v932, %v960
      %v968 = vadd.f32 %v933, %v960
      %v969 = vadd.f32 %v934, %v960
      %v970 = vadd.f32 %v935, %v960
      %v971 = vadd.f32 %v936, %v960
      %v972 = vadd.f32 %v937, %v960
      %v973 = vadd.f32 %v938, %v960
      %v974 = vadd.f32 %v939, %v960
      %v975 = vadd.f32 %v940, %v960
      %v976 = vadd.f32 %v941, %v960
      %v977 = vadd.f32 %v942, %v960
      %v978 = vadd.f32 %v943, %v960
      %v979 = vadd.f32 %v944, %v960
      %v980 = vadd.f32 %v945, %v960
      %v981 = vadd.f32 %v946, %v960
      %v982 = vadd.f32 %v947, %v960
      %v983 = vadd.f32 %v948, %v960
      %v984 = vadd.f32 %v949, %v960
      %v985 = vadd.f32 %v950, %v960
      %v986 = vadd.f32 %v951, %v960
      %v987 = vadd.f32 %v952, %v960
      %v988 = vadd.f32 %v953, %v960
      %v989 = vadd.f32 %v954, %v960
      %v990 = vadd.f32 %v955, %v960
      %v991 = vadd.f32 %v956, %v960
      %v992 = vadd.f32 %v957, %v960
      %v993 = vadd.f32 %v958, %v960
      %v994 = vmax.f32 %v962, 0.0
      %v995 = vmax.f32 %v963, 0.0
      %v996 = vmax.f32 %v964, 0.0
      %v997 = vmax.f32 %v965, 0.0
      %v998 = vmax.f32 %v966, 0.0
      %v999 = vmax.f32 %v967, 0.0
      %v1000 = vmax.f32 %v968, 0.0
      %v1001 = vmax.f32 %v969, 0.0
      %v1002 = vmax.f32 %v970, 0.0
      %v1003 = vmax.f32 %v971, 0.0
      %v1004 = vmax.f32 %v972, 0.0
      %v1005 = vmax.f32 %v973, 0.0
      %v1006 = vmax.f32 %v974, 0.0
      %v1007 = vmax.f32 %v975, 0.0
      %v1008 = vmax.f32 %v976, 0.0
      %v1009 = vmax.f32 %v977, 0.0
      %v1010 = vmax.f32 %v978, 0.0
      %v1011 = vmax.f32 %v979, 0.0
      %v1012 = vmax.f32 %v980, 0.0
      %v1013 = vmax.f32 %v981, 0.0
      %v1014 = vmax.f32 %v982, 0.0
      %v1015 = vmax.f32 %v983, 0.0
      %v1016 = vmax.f32 %v984, 0.0
      %v1017 = vmax.f32 %v985, 0.0
      %v1018 = vmax.f32 %v986, 0.0
      %v1019 = vmax.f32 %v987, 0.0
      %v1020 = vmax.f32 %v988, 0.0
      %v1021 = vmax.f32 %v989, 0.0
      %v1022 = vmax.f32 %v990, 0.0
      %v1023 = vmax.f32 %v991, 0.0
      %v1024 = vmax.f32 %v992, 0.0
      %v1025 = vmax.f32 %v993, 0.0
      %1026 = vst.msk [vmem:[#allocation2] sm:$0xff] %vm667, 0.0
      %1027 = vst.msk [vmem:[#allocation2 + $0x8] sm:$0xff] %vm667, 0.0
      %vm1028 = vcmask 25600
      %1029 = vst.msk [vmem:[#allocation2 + $0x10] sm:$0x3] %vm1028, 0.0
      %1030 = vst.msk [vmem:[#allocation2 + $0x18] sm:$0xff] %vm667, 0.0
      %1031 = vst.msk [vmem:[#allocation2 + $0x20] sm:$0xff] %vm667, 0.0
      %1032 = vst.msk [vmem:[#allocation2 + $0x28] sm:$0x3] %vm1028, 0.0
      %1033 = vst.msk [vmem:[#allocation2 + $0x30] sm:$0xff] %vm667, 0.0
      %1034 = vst.msk [vmem:[#allocation2 + $0x38] sm:$0xff] %vm667, 0.0
      %1035 = vst.msk [vmem:[#allocation2 + $0x40] sm:$0x3] %vm1028, 0.0
      %1036 = vst.msk [vmem:[#allocation2 + $0x48] sm:$0xff] %vm667, 0.0
      %1037 = vst.msk [vmem:[#allocation2 + $0x50] sm:$0xff] %vm667, 0.0
      %1038 = vst.msk [vmem:[#allocation2 + $0x58] sm:$0x3] %vm1028, 0.0
      %1039 = vst.msk [vmem:[#allocation2 + $0x60] sm:$0xff] %vm667, 0.0
      %1040 = vst.msk [vmem:[#allocation2 + $0x68] sm:$0xff] %vm667, 0.0
      %1041 = vst.msk [vmem:[#allocation2 + $0x70] sm:$0x3] %vm1028, 0.0
      %1042 = vst.msk [vmem:[#allocation2 + $0x78] sm:$0xff] %vm667, 0.0
      %1043 = vst.msk [vmem:[#allocation2 + $0x80] sm:$0xff] %vm667, 0.0
      %1044 = vst.msk [vmem:[#allocation2 + $0x88] sm:$0x3] %vm1028, 0.0
      %1045 = vst.msk [vmem:[#allocation2 + $0x90] sm:$0xff] %vm667, 0.0
      %1046 = vst.msk [vmem:[#allocation2 + $0x98] sm:$0xff] %vm667, 0.0
      %1047 = vst.msk [vmem:[#allocation2 + $0xa0] sm:$0x3] %vm1028, 0.0
      %1048 = vst.msk [vmem:[#allocation2 + $0xa8] sm:$0xff] %vm667, 0.0
      %1049 = vst.msk [vmem:[#allocation2 + $0xb0] sm:$0xff] %vm667, 0.0
      %1050 = vst.msk [vmem:[#allocation2 + $0xb8] sm:$0x3] %vm1028, 0.0
      %1051 = vst.msk [vmem:[#allocation2 + $0xc0] sm:$0xff] %vm667, 0.0
      %1052 = vst.msk [vmem:[#allocation2 + $0xc8] sm:$0xff] %vm667, 0.0
      %1053 = vst.msk [vmem:[#allocation2 + $0xd0] sm:$0x3] %vm1028, 0.0
      %1054 = vst.msk [vmem:[#allocation2 + $0xd8] sm:$0xff] %vm667, 0.0
      %1055 = vst.msk [vmem:[#allocation2 + $0xe0] sm:$0xff] %vm667, 0.0
      %1056 = vst.msk [vmem:[#allocation2 + $0xe8] sm:$0x3] %vm1028, 0.0
      %1057 = vst.msk [vmem:[#allocation2 + $0xf0] sm:$0xff] %vm667, 0.0
      %1058 = vst.msk [vmem:[#allocation2 + $0xf8] sm:$0xff] %vm667, 0.0
      %1059 = vst.msk [vmem:[#allocation2 + $0x100] sm:$0x3] %vm1028, 0.0
      %1060 = vst.msk [vmem:[#allocation2 + $0x108] sm:$0xff] %vm667, 0.0
      %1061 = vst.msk [vmem:[#allocation2 + $0x110] sm:$0xff] %vm667, 0.0
      %1062 = vst.msk [vmem:[#allocation2 + $0x118] sm:$0x3] %vm1028, 0.0
      %1063 = vst.msk [vmem:[#allocation2 + $0x120] sm:$0xff] %vm667, 0.0
      %1064 = vst.msk [vmem:[#allocation2 + $0x128] sm:$0xff] %vm667, 0.0
      %1065 = vst.msk [vmem:[#allocation2 + $0x130] sm:$0x3] %vm1028, 0.0
      %1066 = vst.msk [vmem:[#allocation2 + $0x138] sm:$0xff] %vm667, 0.0
      %1067 = vst.msk [vmem:[#allocation2 + $0x140] sm:$0xff] %vm667, 0.0
      %1068 = vst.msk [vmem:[#allocation2 + $0x148] sm:$0x3] %vm1028, 0.0
      %1069 = vst.msk [vmem:[#allocation2 + $0x150] sm:$0xff] %vm667, 0.0
      %1070 = vst.msk [vmem:[#allocation2 + $0x158] sm:$0xff] %vm667, 0.0
      %1071 = vst.msk [vmem:[#allocation2 + $0x160] sm:$0x3] %vm1028, 0.0
      %1072 = vst.msk [vmem:[#allocation2 + $0x168] sm:$0xff] %vm667, 0.0
      %1073 = vst.msk [vmem:[#allocation2 + $0x170] sm:$0xff] %vm667, 0.0
      %1074 = vst.msk [vmem:[#allocation2 + $0x178] sm:$0x3] %vm1028, 0.0
      %1075 = vst.msk [vmem:[#allocation2 + $0x180] sm:$0xff] %vm667, 0.0
      %1076 = vst.msk [vmem:[#allocation2 + $0x188] sm:$0xff] %vm667, 0.0
      %1077 = vst.msk [vmem:[#allocation2 + $0x190] sm:$0x3] %vm1028, 0.0
      %1078 = vst.msk [vmem:[#allocation2 + $0x198] sm:$0xff] %vm667, 0.0
      %1079 = vst.msk [vmem:[#allocation2 + $0x1a0] sm:$0xff] %vm667, 0.0
      %1080 = vst.msk [vmem:[#allocation2 + $0x1a8] sm:$0x3] %vm1028, 0.0
      %s1081 = scalar_lea.vmem [#allocation2], 24
      %1082 = vst.msk [vmem:[%s1081 + $0x1] sm:$0xff] %vm667, %v994
      %1083 = vst.msk [vmem:[%s1081 + $0x9] sm:$0xff] %vm667, %v995
      %1084 = vst.msk [vmem:[%s1081 + $0x19] sm:$0xff] %vm667, %v996
      %1085 = vst.msk [vmem:[%s1081 + $0x21] sm:$0xff] %vm667, %v997
      %1086 = vst.msk [vmem:[%s1081 + $0x31] sm:$0xff] %vm667, %v998
      %1087 = vst.msk [vmem:[%s1081 + $0x39] sm:$0xff] %vm667, %v999
      %1088 = vst.msk [vmem:[%s1081 + $0x49] sm:$0xff] %vm667, %v1000
      %1089 = vst.msk [vmem:[%s1081 + $0x51] sm:$0xff] %vm667, %v1001
      %1090 = vst.msk [vmem:[%s1081 + $0x61] sm:$0xff] %vm667, %v1002
      %1091 = vst.msk [vmem:[%s1081 + $0x69] sm:$0xff] %vm667, %v1003
      %1092 = vst.msk [vmem:[%s1081 + $0x79] sm:$0xff] %vm667, %v1004
      %1093 = vst.msk [vmem:[%s1081 + $0x81] sm:$0xff] %vm667, %v1005
      %1094 = vst.msk [vmem:[%s1081 + $0x91] sm:$0xff] %vm667, %v1006
      %1095 = vst.msk [vmem:[%s1081 + $0x99] sm:$0xff] %vm667, %v1007
      %1096 = vst.msk [vmem:[%s1081 + $0xa9] sm:$0xff] %vm667, %v1008
      %1097 = vst.msk [vmem:[%s1081 + $0xb1] sm:$0xff] %vm667, %v1009
      %1098 = vst.msk [vmem:[%s1081 + $0xc1] sm:$0xff] %vm667, %v1010
      %1099 = vst.msk [vmem:[%s1081 + $0xc9] sm:$0xff] %vm667, %v1011
      %1100 = vst.msk [vmem:[%s1081 + $0xd9] sm:$0xff] %vm667, %v1012
      %1101 = vst.msk [vmem:[%s1081 + $0xe1] sm:$0xff] %vm667, %v1013
      %1102 = vst.msk [vmem:[%s1081 + $0xf1] sm:$0xff] %vm667, %v1014
      %1103 = vst.msk [vmem:[%s1081 + $0xf9] sm:$0xff] %vm667, %v1015
      %1104 = vst.msk [vmem:[%s1081 + $0x109] sm:$0xff] %vm667, %v1016
      %1105 = vst.msk [vmem:[%s1081 + $0x111] sm:$0xff] %vm667, %v1017
      %1106 = vst.msk [vmem:[%s1081 + $0x121] sm:$0xff] %vm667, %v1018
      %1107 = vst.msk [vmem:[%s1081 + $0x129] sm:$0xff] %vm667, %v1019
      %1108 = vst.msk [vmem:[%s1081 + $0x139] sm:$0xff] %vm667, %v1020
      %1109 = vst.msk [vmem:[%s1081 + $0x141] sm:$0xff] %vm667, %v1021
      %1110 = vst.msk [vmem:[%s1081 + $0x151] sm:$0xff] %vm667, %v1022
      %1111 = vst.msk [vmem:[%s1081 + $0x159] sm:$0xff] %vm667, %v1023
      %1112 = vst.msk [vmem:[%s1081 + $0x169] sm:$0xff] %vm667, %v1024
      %1113 = vst.msk [vmem:[%s1081 + $0x171] sm:$0xff] %vm667, %v1025
      %v1114 = vld [vmem:[#allocation2] sm:$0xff]
      %v1115 = vld [vmem:[#allocation2 + $0x8] sm:$0xff]
      %v1116 = vld [vmem:[#allocation2 + $0x18] sm:$0xff]
      %v1117 = vld [vmem:[#allocation2 + $0x20] sm:$0xff]
      %v1118 = vld [vmem:[#allocation2 + $0x30] sm:$0xff]
      %v1119 = vld [vmem:[#allocation2 + $0x38] sm:$0xff]
      %v1120 = vld [vmem:[#allocation2 + $0x48] sm:$0xff]
      %v1121 = vld [vmem:[#allocation2 + $0x50] sm:$0xff]
      %v1122 = vld [vmem:[#allocation2 + $0x60] sm:$0xff]
      %v1123 = vld [vmem:[#allocation2 + $0x68] sm:$0xff]
      %v1124 = vld [vmem:[#allocation2 + $0x78] sm:$0xff]
      %v1125 = vld [vmem:[#allocation2 + $0x80] sm:$0xff]
      %v1126 = vld [vmem:[#allocation2 + $0x90] sm:$0xff]
      %v1127 = vld [vmem:[#allocation2 + $0x98] sm:$0xff]
      %v1128 = vld [vmem:[#allocation2 + $0xa8] sm:$0xff]
      %v1129 = vld [vmem:[#allocation2 + $0xb0] sm:$0xff]
      %v1130 = vld [vmem:[#allocation2 + $0xc0] sm:$0xff]
      %v1131 = vld [vmem:[#allocation2 + $0xc8] sm:$0xff]
      %v1132 = vld [vmem:[#allocation2 + $0xd8] sm:$0xff]
      %v1133 = vld [vmem:[#allocation2 + $0xe0] sm:$0xff]
      %v1134 = vld [vmem:[#allocation2 + $0xf0] sm:$0xff]
      %v1135 = vld [vmem:[#allocation2 + $0xf8] sm:$0xff]
      %v1136 = vld [vmem:[#allocation2 + $0x108] sm:$0xff]
      %v1137 = vld [vmem:[#allocation2 + $0x110] sm:$0xff]
      %v1138 = vld [vmem:[#allocation2 + $0x120] sm:$0xff]
      %v1139 = vld [vmem:[#allocation2 + $0x128] sm:$0xff]
      %v1140 = vld [vmem:[#allocation2 + $0x138] sm:$0xff]
      %v1141 = vld [vmem:[#allocation2 + $0x140] sm:$0xff]
      %v1142 = vld [vmem:[#allocation2 + $0x150] sm:$0xff]
      %v1143 = vld [vmem:[#allocation2 + $0x158] sm:$0xff]
      %v1144 = vld [vmem:[#allocation2 + $0x168] sm:$0xff]
      %v1145 = vld [vmem:[#allocation2 + $0x170] sm:$0xff]
      %v1146 = vld [vmem:[#allocation2 + $0x180] sm:$0xff]
      %v1147 = vld [vmem:[#allocation2 + $0x188] sm:$0xff]
      %v1148 = vld [vmem:[#allocation2 + $0x198] sm:$0xff]
      %v1149 = vld [vmem:[#allocation2 + $0x1a0] sm:$0xff]
      %v1150 = vpack.c.bf16 %v1114, %v1114
      %v1151 = vpack.c.bf16 %v1115, %v1115
      %v1152 = vpack.c.bf16 %v1116, %v1116
      %v1153 = vpack.c.bf16 %v1117, %v1117
      %v1154 = vpack.c.bf16 %v1118, %v1118
      %v1155 = vpack.c.bf16 %v1119, %v1119
      %v1156 = vpack.c.bf16 %v1120, %v1120
      %v1157 = vpack.c.bf16 %v1121, %v1121
      %v1158 = vpack.c.bf16 %v1122, %v1122
      %v1159 = vpack.c.bf16 %v1123, %v1123
      %v1160 = vpack.c.bf16 %v1124, %v1124
      %v1161 = vpack.c.bf16 %v1125, %v1125
      %v1162 = vpack.c.bf16 %v1126, %v1126
      %v1163 = vpack.c.bf16 %v1127, %v1127
      %v1164 = vpack.c.bf16 %v1128, %v1128
      %v1165 = vpack.c.bf16 %v1129, %v1129
      %v1166 = vpack.c.bf16 %v1130, %v1130
      %v1167 = vpack.c.bf16 %v1131, %v1131
      %v1168 = vpack.c.bf16 %v1132, %v1132
      %v1169 = vpack.c.bf16 %v1133, %v1133
      %v1170 = vpack.c.bf16 %v1134, %v1134
      %v1171 = vpack.c.bf16 %v1135, %v1135
      %v1172 = vpack.c.bf16 %v1136, %v1136
      %v1173 = vpack.c.bf16 %v1137, %v1137
      %v1174 = vpack.c.bf16 %v1138, %v1138
      %v1175 = vpack.c.bf16 %v1139, %v1139
      %v1176 = vpack.c.bf16 %v1140, %v1140
      %v1177 = vpack.c.bf16 %v1141, %v1141
      %v1178 = vpack.c.bf16 %v1142, %v1142
      %v1179 = vpack.c.bf16 %v1143, %v1143
      %v1180 = vpack.c.bf16 %v1144, %v1144
      %v1181 = vpack.c.bf16 %v1145, %v1145
      %v1182 = vpack.c.bf16 %v1146, %v1146
      %v1183 = vpack.c.bf16 %v1147, %v1147
      %v1184 = vpack.c.bf16 %v1148, %v1148
      %v1185 = vpack.c.bf16 %v1149, %v1149
      %v1186 = vld [vmem:[%s2] sm:$0x3]
      %s1187 = scalar_lea.vmem %s2, 6
      %v1188 = vld [vmem:[%s1187] sm:$0x3]
      %v1221 = vunpack.c.l.b16 %v1152
      %v1222 = vunpack.c.l.b16 %v1153
      %v1223 = vunpack.c.l.b16 %v1154
      %v1224 = vunpack.c.l.b16 %v1155
      %v1225 = vunpack.c.l.b16 %v1156
      %v1226 = vunpack.c.l.b16 %v1157
      %v1227 = vunpack.c.l.b16 %v1158
      %v1228 = vunpack.c.l.b16 %v1159
      %v1229 = vunpack.c.l.b16 %v1160
      %v1230 = vunpack.c.l.b16 %v1161
      %v1231 = vunpack.c.l.b16 %v1162
      %v1232 = vunpack.c.l.b16 %v1163
      %v1233 = vunpack.c.l.b16 %v1164
      %v1234 = vunpack.c.l.b16 %v1165
      %v1235 = vunpack.c.l.b16 %v1166
      %v1236 = vunpack.c.l.b16 %v1167
      %v1237 = vunpack.c.l.b16 %v1168
      %v1238 = vunpack.c.l.b16 %v1169
      %v1239 = vunpack.c.l.b16 %v1170
      %v1240 = vunpack.c.l.b16 %v1171
      %v1241 = vunpack.c.l.b16 %v1172
      %v1242 = vunpack.c.l.b16 %v1173
      %v1243 = vunpack.c.l.b16 %v1174
      %v1244 = vunpack.c.l.b16 %v1175
      %v1245 = vunpack.c.l.b16 %v1176
      %v1246 = vunpack.c.l.b16 %v1177
      %v1247 = vunpack.c.l.b16 %v1178
      %v1248 = vunpack.c.l.b16 %v1179
      %v1249 = vunpack.c.l.b16 %v1180
      %v1250 = vunpack.c.l.b16 %v1181
      %v1251 = vunpack.c.l.b16 %v1182
      %v1252 = vunpack.c.l.b16 %v1183
      %v1253 = vpack.c.b16 %v1222, %v1221
      %v1254 = vpack.c.b16 %v1224, %v1223
      %v1255 = vpack.c.b16 %v1226, %v1225
      %v1256 = vpack.c.b16 %v1228, %v1227
      %v1257 = vpack.c.b16 %v1230, %v1229
      %v1258 = vpack.c.b16 %v1232, %v1231
      %v1259 = vpack.c.b16 %v1234, %v1233
      %v1260 = vpack.c.b16 %v1236, %v1235
      %v1261 = vpack.c.b16 %v1238, %v1237
      %v1262 = vpack.c.b16 %v1240, %v1239
      %v1263 = vpack.c.b16 %v1242, %v1241
      %v1264 = vpack.c.b16 %v1244, %v1243
      %v1265 = vpack.c.b16 %v1246, %v1245
      %v1266 = vpack.c.b16 %v1248, %v1247
      %v1267 = vpack.c.b16 %v1250, %v1249
      %v1268 = vpack.c.b16 %v1252, %v1251
      %v1270 = vsel %vm667, %v1253, 0
      %v1273 = vsel %vm667, %v1254, 0
      %v1276 = vsel %vm667, %v1255, 0
      %v1279 = vsel %vm667, %v1256, 0
      %v1282 = vsel %vm667, %v1257, 0
      %v1285 = vsel %vm667, %v1258, 0
      %v1288 = vsel %vm667, %v1259, 0
      %v1291 = vsel %vm667, %v1260, 0
      %v1294 = vsel %vm667, %v1261, 0
      %v1297 = vsel %vm667, %v1262, 0
      %v1300 = vsel %vm667, %v1263, 0
      %v1303 = vsel %vm667, %v1264, 0
      %v1306 = vsel %vm667, %v1265, 0
      %v1309 = vsel %vm667, %v1266, 0
      %v1312 = vsel %vm667, %v1267, 0
      %v1315 = vsel %vm667, %v1268, 0
      %vm1317 = vcmask 1041408
      %v1319 = vsel %vm1317, %v1188, 0
      %1321 = vmatpush.bf16.msra.mxu0 0
      %1322 = vmatpush.bf16.msra.mxu0 0
      %1323 = vmatpush.bf16.msra.mxu0 0
      %1324 = vmatpush.bf16.msra.mxu0 0
      %1325 = vmatpush.bf16.msra.mxu0 0
      %1326 = vmatpush.bf16.msra.mxu0 0
      %1327 = vmatpush.bf16.msra.mxu0 0
      %1328 = vmatpush.bf16.msra.mxu0 %v1319
      %1329 = vmatmul.bf16.gmra.mxu0 %v1270
      %v1330 = vpop.f32.mrf.mxu0
      %v1331 = vadd.f32 0.0, %v1330
      %v1332 = vpop.f32.mrf.mxu0
      %v1333 = vadd.f32 0.0, %v1332
      %1334 = vmatmul.bf16.gmra.mxu0 %v1273
      %v1335 = vpop.f32.mrf.mxu0
      %v1336 = vadd.f32 0.0, %v1335
      %v1337 = vpop.f32.mrf.mxu0
      %v1338 = vadd.f32 0.0, %v1337
      %1339 = vmatmul.bf16.gmra.mxu0 %v1276
      %v1340 = vpop.f32.mrf.mxu0
      %v1341 = vadd.f32 0.0, %v1340
      %v1342 = vpop.f32.mrf.mxu0
      %v1343 = vadd.f32 0.0, %v1342
      %1344 = vmatmul.bf16.gmra.mxu0 %v1279
      %v1345 = vpop.f32.mrf.mxu0
      %v1346 = vadd.f32 0.0, %v1345
      %v1347 = vpop.f32.mrf.mxu0
      %v1348 = vadd.f32 0.0, %v1347
      %1349 = vmatmul.bf16.gmra.mxu0 %v1282
      %v1350 = vpop.f32.mrf.mxu0
      %v1351 = vadd.f32 0.0, %v1350
      %v1352 = vpop.f32.mrf.mxu0
      %v1353 = vadd.f32 0.0, %v1352
      %1354 = vmatmul.bf16.gmra.mxu0 %v1285
      %v1355 = vpop.f32.mrf.mxu0
      %v1356 = vadd.f32 0.0, %v1355
      %v1357 = vpop.f32.mrf.mxu0
      %v1358 = vadd.f32 0.0, %v1357
      %1359 = vmatmul.bf16.gmra.mxu0 %v1288
      %v1360 = vpop.f32.mrf.mxu0
      %v1361 = vadd.f32 0.0, %v1360
      %v1362 = vpop.f32.mrf.mxu0
      %v1363 = vadd.f32 0.0, %v1362
      %1364 = vmatmul.bf16.gmra.mxu0 %v1291
      %v1365 = vpop.f32.mrf.mxu0
      %v1366 = vadd.f32 0.0, %v1365
      %v1367 = vpop.f32.mrf.mxu0
      %v1368 = vadd.f32 0.0, %v1367
      %1369 = vmatmul.bf16.gmra.mxu0 %v1294
      %v1370 = vpop.f32.mrf.mxu0
      %v1371 = vadd.f32 0.0, %v1370
      %v1372 = vpop.f32.mrf.mxu0
      %v1373 = vadd.f32 0.0, %v1372
      %1374 = vmatmul.bf16.gmra.mxu0 %v1297
      %v1375 = vpop.f32.mrf.mxu0
      %v1376 = vadd.f32 0.0, %v1375
      %v1377 = vpop.f32.mrf.mxu0
      %v1378 = vadd.f32 0.0, %v1377
      %1379 = vmatmul.bf16.gmra.mxu0 %v1300
      %v1380 = vpop.f32.mrf.mxu0
      %v1381 = vadd.f32 0.0, %v1380
      %v1382 = vpop.f32.mrf.mxu0
      %v1383 = vadd.f32 0.0, %v1382
      %1384 = vmatmul.bf16.gmra.mxu0 %v1303
      %v1385 = vpop.f32.mrf.mxu0
      %v1386 = vadd.f32 0.0, %v1385
      %v1387 = vpop.f32.mrf.mxu0
      %v1388 = vadd.f32 0.0, %v1387
      %1389 = vmatmul.bf16.gmra.mxu0 %v1306
      %v1390 = vpop.f32.mrf.mxu0
      %v1391 = vadd.f32 0.0, %v1390
      %v1392 = vpop.f32.mrf.mxu0
      %v1393 = vadd.f32 0.0, %v1392
      %1394 = vmatmul.bf16.gmra.mxu0 %v1309
      %v1395 = vpop.f32.mrf.mxu0
      %v1396 = vadd.f32 0.0, %v1395
      %v1397 = vpop.f32.mrf.mxu0
      %v1398 = vadd.f32 0.0, %v1397
      %1399 = vmatmul.bf16.gmra.mxu0 %v1312
      %v1400 = vpop.f32.mrf.mxu0
      %v1401 = vadd.f32 0.0, %v1400
      %v1402 = vpop.f32.mrf.mxu0
      %v1403 = vadd.f32 0.0, %v1402
      %1404 = vmatmul.bf16.gmra.mxu0 %v1315
      %v1405 = vpop.f32.mrf.mxu0
      %v1406 = vadd.f32 0.0, %v1405
      %v1407 = vpop.f32.mrf.mxu0
      %v1408 = vadd.f32 0.0, %v1407
      %1409 = vdwg.mxu0
      %v1412 = vunpack.c.l.b16 %v1150
      %v1413 = vunpack.c.l.b16 %v1151
      %v1414 = vpack.c.b16 %v1413, %v1412
      %v1416 = vsel %vm667, %v1414, 0
      %v1419 = vsel %vm1317, %v1186, 0
      %1421 = vmatpush.bf16.msra.mxu0 0
      %1422 = vmatpush.bf16.msra.mxu0 0
      %1423 = vmatpush.bf16.msra.mxu0 0
      %1424 = vmatpush.bf16.msra.mxu0 0
      %1425 = vmatpush.bf16.msra.mxu0 0
      %1426 = vmatpush.bf16.msra.mxu0 0
      %1427 = vmatpush.bf16.msra.mxu0 0
      %1428 = vmatpush.bf16.msra.mxu0 %v1419
      %1429 = vmatmul.bf16.gmra.mxu0 %v1416
      %v1430 = vpop.f32.mrf.mxu0
      %v1431 = vadd.f32 %v1331, %v1430
      %v1432 = vpop.f32.mrf.mxu0
      %v1433 = vadd.f32 %v1333, %v1432
      %1434 = vmatmul.bf16.gmra.mxu0 %v1270
      %v1435 = vpop.f32.mrf.mxu0
      %v1436 = vadd.f32 %v1336, %v1435
      %v1437 = vpop.f32.mrf.mxu0
      %v1438 = vadd.f32 %v1338, %v1437
      %1439 = vmatmul.bf16.gmra.mxu0 %v1273
      %v1440 = vpop.f32.mrf.mxu0
      %v1441 = vadd.f32 %v1341, %v1440
      %v1442 = vpop.f32.mrf.mxu0
      %v1443 = vadd.f32 %v1343, %v1442
      %1444 = vmatmul.bf16.gmra.mxu0 %v1276
      %v1445 = vpop.f32.mrf.mxu0
      %v1446 = vadd.f32 %v1346, %v1445
      %v1447 = vpop.f32.mrf.mxu0
      %v1448 = vadd.f32 %v1348, %v1447
      %1449 = vmatmul.bf16.gmra.mxu0 %v1279
      %v1450 = vpop.f32.mrf.mxu0
      %v1451 = vadd.f32 %v1351, %v1450
      %v1452 = vpop.f32.mrf.mxu0
      %v1453 = vadd.f32 %v1353, %v1452
      %1454 = vmatmul.bf16.gmra.mxu0 %v1282
      %v1455 = vpop.f32.mrf.mxu0
      %v1456 = vadd.f32 %v1356, %v1455
      %v1457 = vpop.f32.mrf.mxu0
      %v1458 = vadd.f32 %v1358, %v1457
      %1459 = vmatmul.bf16.gmra.mxu0 %v1285
      %v1460 = vpop.f32.mrf.mxu0
      %v1461 = vadd.f32 %v1361, %v1460
      %v1462 = vpop.f32.mrf.mxu0
      %v1463 = vadd.f32 %v1363, %v1462
      %1464 = vmatmul.bf16.gmra.mxu0 %v1288
      %v1465 = vpop.f32.mrf.mxu0
      %v1466 = vadd.f32 %v1366, %v1465
      %v1467 = vpop.f32.mrf.mxu0
      %v1468 = vadd.f32 %v1368, %v1467
      %1469 = vmatmul.bf16.gmra.mxu0 %v1291
      %v1470 = vpop.f32.mrf.mxu0
      %v1471 = vadd.f32 %v1371, %v1470
      %v1472 = vpop.f32.mrf.mxu0
      %v1473 = vadd.f32 %v1373, %v1472
      %1474 = vmatmul.bf16.gmra.mxu0 %v1294
      %v1475 = vpop.f32.mrf.mxu0
      %v1476 = vadd.f32 %v1376, %v1475
      %v1477 = vpop.f32.mrf.mxu0
      %v1478 = vadd.f32 %v1378, %v1477
      %1479 = vmatmul.bf16.gmra.mxu0 %v1297
      %v1480 = vpop.f32.mrf.mxu0
      %v1481 = vadd.f32 %v1381, %v1480
      %v1482 = vpop.f32.mrf.mxu0
      %v1483 = vadd.f32 %v1383, %v1482
      %1484 = vmatmul.bf16.gmra.mxu0 %v1300
      %v1485 = vpop.f32.mrf.mxu0
      %v1486 = vadd.f32 %v1386, %v1485
      %v1487 = vpop.f32.mrf.mxu0
      %v1488 = vadd.f32 %v1388, %v1487
      %1489 = vmatmul.bf16.gmra.mxu0 %v1303
      %v1490 = vpop.f32.mrf.mxu0
      %v1491 = vadd.f32 %v1391, %v1490
      %v1492 = vpop.f32.mrf.mxu0
      %v1493 = vadd.f32 %v1393, %v1492
      %1494 = vmatmul.bf16.gmra.mxu0 %v1306
      %v1495 = vpop.f32.mrf.mxu0
      %v1496 = vadd.f32 %v1396, %v1495
      %v1497 = vpop.f32.mrf.mxu0
      %v1498 = vadd.f32 %v1398, %v1497
      %1499 = vmatmul.bf16.gmra.mxu0 %v1309
      %v1500 = vpop.f32.mrf.mxu0
      %v1501 = vadd.f32 %v1401, %v1500
      %v1502 = vpop.f32.mrf.mxu0
      %v1503 = vadd.f32 %v1403, %v1502
      %1504 = vmatmul.bf16.gmra.mxu0 %v1312
      %v1505 = vpop.f32.mrf.mxu0
      %v1506 = vadd.f32 %v1406, %v1505
      %v1507 = vpop.f32.mrf.mxu0
      %v1508 = vadd.f32 %v1408, %v1507
      %1509 = vdwg.mxu0
      %s1510 = scalar_lea.vmem %s2, 12
      %v1511 = vld [vmem:[%s1510] sm:$0x3]
      %v1514 = vunpack.c.l.b16 %v1184
      %v1515 = vunpack.c.l.b16 %v1185
      %v1516 = vpack.c.b16 %v1515, %v1514
      %v1518 = vsel %vm667, %v1516, 0
      %v1521 = vsel %vm1317, %v1511, 0
      %1523 = vmatpush.bf16.msra.mxu0 0
      %1524 = vmatpush.bf16.msra.mxu0 0
      %1525 = vmatpush.bf16.msra.mxu0 0
      %1526 = vmatpush.bf16.msra.mxu0 0
      %1527 = vmatpush.bf16.msra.mxu0 0
      %1528 = vmatpush.bf16.msra.mxu0 0
      %1529 = vmatpush.bf16.msra.mxu0 0
      %1530 = vmatpush.bf16.msra.mxu0 %v1521
      %1531 = vmatmul.bf16.gmra.mxu0 %v1273
      %v1532 = vpop.f32.mrf.mxu0
      %v1533 = vadd.f32 0.0, %v1532
      %v1534 = vpop.f32.mrf.mxu0
      %v1535 = vadd.f32 0.0, %v1534
      %1536 = vmatmul.bf16.gmra.mxu0 %v1276
      %v1537 = vpop.f32.mrf.mxu0
      %v1538 = vadd.f32 0.0, %v1537
      %v1539 = vpop.f32.mrf.mxu0
      %v1540 = vadd.f32 0.0, %v1539
      %1541 = vmatmul.bf16.gmra.mxu0 %v1279
      %v1542 = vpop.f32.mrf.mxu0
      %v1543 = vadd.f32 0.0, %v1542
      %v1544 = vpop.f32.mrf.mxu0
      %v1545 = vadd.f32 0.0, %v1544
      %1546 = vmatmul.bf16.gmra.mxu0 %v1282
      %v1547 = vpop.f32.mrf.mxu0
      %v1548 = vadd.f32 0.0, %v1547
      %v1549 = vpop.f32.mrf.mxu0
      %v1550 = vadd.f32 0.0, %v1549
      %1551 = vmatmul.bf16.gmra.mxu0 %v1285
      %v1552 = vpop.f32.mrf.mxu0
      %v1553 = vadd.f32 0.0, %v1552
      %v1554 = vpop.f32.mrf.mxu0
      %v1555 = vadd.f32 0.0, %v1554
      %1556 = vmatmul.bf16.gmra.mxu0 %v1288
      %v1557 = vpop.f32.mrf.mxu0
      %v1558 = vadd.f32 0.0, %v1557
      %v1559 = vpop.f32.mrf.mxu0
      %v1560 = vadd.f32 0.0, %v1559
      %1561 = vmatmul.bf16.gmra.mxu0 %v1291
      %v1562 = vpop.f32.mrf.mxu0
      %v1563 = vadd.f32 0.0, %v1562
      %v1564 = vpop.f32.mrf.mxu0
      %v1565 = vadd.f32 0.0, %v1564
      %1566 = vmatmul.bf16.gmra.mxu0 %v1294
      %v1567 = vpop.f32.mrf.mxu0
      %v1568 = vadd.f32 0.0, %v1567
      %v1569 = vpop.f32.mrf.mxu0
      %v1570 = vadd.f32 0.0, %v1569
      %1571 = vmatmul.bf16.gmra.mxu0 %v1297
      %v1572 = vpop.f32.mrf.mxu0
      %v1573 = vadd.f32 0.0, %v1572
      %v1574 = vpop.f32.mrf.mxu0
      %v1575 = vadd.f32 0.0, %v1574
      %1576 = vmatmul.bf16.gmra.mxu0 %v1300
      %v1577 = vpop.f32.mrf.mxu0
      %v1578 = vadd.f32 0.0, %v1577
      %v1579 = vpop.f32.mrf.mxu0
      %v1580 = vadd.f32 0.0, %v1579
      %1581 = vmatmul.bf16.gmra.mxu0 %v1303
      %v1582 = vpop.f32.mrf.mxu0
      %v1583 = vadd.f32 0.0, %v1582
      %v1584 = vpop.f32.mrf.mxu0
      %v1585 = vadd.f32 0.0, %v1584
      %1586 = vmatmul.bf16.gmra.mxu0 %v1306
      %v1587 = vpop.f32.mrf.mxu0
      %v1588 = vadd.f32 0.0, %v1587
      %v1589 = vpop.f32.mrf.mxu0
      %v1590 = vadd.f32 0.0, %v1589
      %1591 = vmatmul.bf16.gmra.mxu0 %v1309
      %v1592 = vpop.f32.mrf.mxu0
      %v1593 = vadd.f32 0.0, %v1592
      %v1594 = vpop.f32.mrf.mxu0
      %v1595 = vadd.f32 0.0, %v1594
      %1596 = vmatmul.bf16.gmra.mxu0 %v1312
      %v1597 = vpop.f32.mrf.mxu0
      %v1598 = vadd.f32 0.0, %v1597
      %v1599 = vpop.f32.mrf.mxu0
      %v1600 = vadd.f32 0.0, %v1599
      %1601 = vmatmul.bf16.gmra.mxu0 %v1315
      %v1602 = vpop.f32.mrf.mxu0
      %v1603 = vadd.f32 0.0, %v1602
      %v1604 = vpop.f32.mrf.mxu0
      %v1605 = vadd.f32 0.0, %v1604
      %1606 = vmatmul.bf16.gmra.mxu0 %v1518
      %v1607 = vpop.f32.mrf.mxu0
      %v1608 = vadd.f32 0.0, %v1607
      %v1609 = vpop.f32.mrf.mxu0
      %v1610 = vadd.f32 0.0, %v1609
      %1611 = vdwg.mxu0
      %v1612 = vadd.f32 %v1431, %v1533
      %v1613 = vadd.f32 %v1433, %v1535
      %v1614 = vadd.f32 %v1436, %v1538
      %v1615 = vadd.f32 %v1438, %v1540
      %v1616 = vadd.f32 %v1441, %v1543
      %v1617 = vadd.f32 %v1443, %v1545
      %v1618 = vadd.f32 %v1446, %v1548
      %v1619 = vadd.f32 %v1448, %v1550
      %v1620 = vadd.f32 %v1451, %v1553
      %v1621 = vadd.f32 %v1453, %v1555
      %v1622 = vadd.f32 %v1456, %v1558
      %v1623 = vadd.f32 %v1458, %v1560
      %v1624 = vadd.f32 %v1461, %v1563
      %v1625 = vadd.f32 %v1463, %v1565
      %v1626 = vadd.f32 %v1466, %v1568
      %v1627 = vadd.f32 %v1468, %v1570
      %v1628 = vadd.f32 %v1471, %v1573
      %v1629 = vadd.f32 %v1473, %v1575
      %v1630 = vadd.f32 %v1476, %v1578
      %v1631 = vadd.f32 %v1478, %v1580
      %v1632 = vadd.f32 %v1481, %v1583
      %v1633 = vadd.f32 %v1483, %v1585
      %v1634 = vadd.f32 %v1486, %v1588
      %v1635 = vadd.f32 %v1488, %v1590
      %v1636 = vadd.f32 %v1491, %v1593
      %v1637 = vadd.f32 %v1493, %v1595
      %v1638 = vadd.f32 %v1496, %v1598
      %v1639 = vadd.f32 %v1498, %v1600
      %v1640 = vadd.f32 %v1501, %v1603
      %v1641 = vadd.f32 %v1503, %v1605
      %v1642 = vadd.f32 %v1506, %v1608
      %v1643 = vadd.f32 %v1508, %v1610
      %v1644 = vld [vmem:[#allocation2 + $0x1] sm:$0xff]
      %v1645 = vld [vmem:[#allocation2 + $0x9] sm:$0xff]
      %v1646 = vld [vmem:[#allocation2 + $0x19] sm:$0xff]
      %v1647 = vld [vmem:[#allocation2 + $0x21] sm:$0xff]
      %v1648 = vld [vmem:[#allocation2 + $0x31] sm:$0xff]
      %v1649 = vld [vmem:[#allocation2 + $0x39] sm:$0xff]
      %v1650 = vld [vmem:[#allocation2 + $0x49] sm:$0xff]
      %v1651 = vld [vmem:[#allocation2 + $0x51] sm:$0xff]
      %v1652 = vld [vmem:[#allocation2 + $0x61] sm:$0xff]
      %v1653 = vld [vmem:[#allocation2 + $0x69] sm:$0xff]
      %v1654 = vld [vmem:[#allocation2 + $0x79] sm:$0xff]
      %v1655 = vld [vmem:[#allocation2 + $0x81] sm:$0xff]
      %v1656 = vld [vmem:[#allocation2 + $0x91] sm:$0xff]
      %v1657 = vld [vmem:[#allocation2 + $0x99] sm:$0xff]
      %v1658 = vld [vmem:[#allocation2 + $0xa9] sm:$0xff]
      %v1659 = vld [vmem:[#allocation2 + $0xb1] sm:$0xff]
      %v1660 = vld [vmem:[#allocation2 + $0xc1] sm:$0xff]
      %v1661 = vld [vmem:[#allocation2 + $0xc9] sm:$0xff]
      %v1662 = vld [vmem:[#allocation2 + $0xd9] sm:$0xff]
      %v1663 = vld [vmem:[#allocation2 + $0xe1] sm:$0xff]
      %v1664 = vld [vmem:[#allocation2 + $0xf1] sm:$0xff]
      %v1665 = vld [vmem:[#allocation2 + $0xf9] sm:$0xff]
      %v1666 = vld [vmem:[#allocation2 + $0x109] sm:$0xff]
      %v1667 = vld [vmem:[#allocation2 + $0x111] sm:$0xff]
      %v1668 = vld [vmem:[#allocation2 + $0x121] sm:$0xff]
      %v1669 = vld [vmem:[#allocation2 + $0x129] sm:$0xff]
      %v1670 = vld [vmem:[#allocation2 + $0x139] sm:$0xff]
      %v1671 = vld [vmem:[#allocation2 + $0x141] sm:$0xff]
      %v1672 = vld [vmem:[#allocation2 + $0x151] sm:$0xff]
      %v1673 = vld [vmem:[#allocation2 + $0x159] sm:$0xff]
      %v1674 = vld [vmem:[#allocation2 + $0x169] sm:$0xff]
      %v1675 = vld [vmem:[#allocation2 + $0x171] sm:$0xff]
      %v1676 = vld [vmem:[#allocation2 + $0x181] sm:$0xff]
      %v1677 = vld [vmem:[#allocation2 + $0x189] sm:$0xff]
      %v1678 = vld [vmem:[#allocation2 + $0x199] sm:$0xff]
      %v1679 = vld [vmem:[#allocation2 + $0x1a1] sm:$0xff]
      %v1680 = vpack.c.bf16 %v1644, %v1644
      %v1681 = vpack.c.bf16 %v1645, %v1645
      %v1682 = vpack.c.bf16 %v1646, %v1646
      %v1683 = vpack.c.bf16 %v1647, %v1647
      %v1684 = vpack.c.bf16 %v1648, %v1648
      %v1685 = vpack.c.bf16 %v1649, %v1649
      %v1686 = vpack.c.bf16 %v1650, %v1650
      %v1687 = vpack.c.bf16 %v1651, %v1651
      %v1688 = vpack.c.bf16 %v1652, %v1652
      %v1689 = vpack.c.bf16 %v1653, %v1653
      %v1690 = vpack.c.bf16 %v1654, %v1654
      %v1691 = vpack.c.bf16 %v1655, %v1655
      %v1692 = vpack.c.bf16 %v1656, %v1656
      %v1693 = vpack.c.bf16 %v1657, %v1657
      %v1694 = vpack.c.bf16 %v1658, %v1658
      %v1695 = vpack.c.bf16 %v1659, %v1659
      %v1696 = vpack.c.bf16 %v1660, %v1660
      %v1697 = vpack.c.bf16 %v1661, %v1661
      %v1698 = vpack.c.bf16 %v1662, %v1662
      %v1699 = vpack.c.bf16 %v1663, %v1663
      %v1700 = vpack.c.bf16 %v1664, %v1664
      %v1701 = vpack.c.bf16 %v1665, %v1665
      %v1702 = vpack.c.bf16 %v1666, %v1666
      %v1703 = vpack.c.bf16 %v1667, %v1667
      %v1704 = vpack.c.bf16 %v1668, %v1668
      %v1705 = vpack.c.bf16 %v1669, %v1669
      %v1706 = vpack.c.bf16 %v1670, %v1670
      %v1707 = vpack.c.bf16 %v1671, %v1671
      %v1708 = vpack.c.bf16 %v1672, %v1672
      %v1709 = vpack.c.bf16 %v1673, %v1673
      %v1710 = vpack.c.bf16 %v1674, %v1674
      %v1711 = vpack.c.bf16 %v1675, %v1675
      %v1712 = vpack.c.bf16 %v1676, %v1676
      %v1713 = vpack.c.bf16 %v1677, %v1677
      %v1714 = vpack.c.bf16 %v1678, %v1678
      %v1715 = vpack.c.bf16 %v1679, %v1679
      %s1716 = scalar_lea.vmem %s2, 2
      %v1717 = vld [vmem:[%s1716] sm:$0x3]
      %v1750 = vunpack.c.l.b16 %v1680
      %v1751 = vunpack.c.l.b16 %v1681
      %v1752 = vunpack.c.l.b16 %v1682
      %v1753 = vunpack.c.l.b16 %v1683
      %v1754 = vunpack.c.l.b16 %v1684
      %v1755 = vunpack.c.l.b16 %v1685
      %v1756 = vunpack.c.l.b16 %v1686
      %v1757 = vunpack.c.l.b16 %v1687
      %v1758 = vunpack.c.l.b16 %v1688
      %v1759 = vunpack.c.l.b16 %v1689
      %v1760 = vunpack.c.l.b16 %v1690
      %v1761 = vunpack.c.l.b16 %v1691
      %v1762 = vunpack.c.l.b16 %v1692
      %v1763 = vunpack.c.l.b16 %v1693
      %v1764 = vunpack.c.l.b16 %v1694
      %v1765 = vunpack.c.l.b16 %v1695
      %v1766 = vunpack.c.l.b16 %v1696
      %v1767 = vunpack.c.l.b16 %v1697
      %v1768 = vunpack.c.l.b16 %v1698
      %v1769 = vunpack.c.l.b16 %v1699
      %v1770 = vunpack.c.l.b16 %v1700
      %v1771 = vunpack.c.l.b16 %v1701
      %v1772 = vunpack.c.l.b16 %v1702
      %v1773 = vunpack.c.l.b16 %v1703
      %v1774 = vunpack.c.l.b16 %v1704
      %v1775 = vunpack.c.l.b16 %v1705
      %v1776 = vunpack.c.l.b16 %v1706
      %v1777 = vunpack.c.l.b16 %v1707
      %v1778 = vunpack.c.l.b16 %v1708
      %v1779 = vunpack.c.l.b16 %v1709
      %v1780 = vunpack.c.l.b16 %v1710
      %v1781 = vunpack.c.l.b16 %v1711
      %v1782 = vpack.c.b16 %v1751, %v1750
      %v1783 = vpack.c.b16 %v1753, %v1752
      %v1784 = vpack.c.b16 %v1755, %v1754
      %v1785 = vpack.c.b16 %v1757, %v1756
      %v1786 = vpack.c.b16 %v1759, %v1758
      %v1787 = vpack.c.b16 %v1761, %v1760
      %v1788 = vpack.c.b16 %v1763, %v1762
      %v1789 = vpack.c.b16 %v1765, %v1764
      %v1790 = vpack.c.b16 %v1767, %v1766
      %v1791 = vpack.c.b16 %v1769, %v1768
      %v1792 = vpack.c.b16 %v1771, %v1770
      %v1793 = vpack.c.b16 %v1773, %v1772
      %v1794 = vpack.c.b16 %v1775, %v1774
      %v1795 = vpack.c.b16 %v1777, %v1776
      %v1796 = vpack.c.b16 %v1779, %v1778
      %v1797 = vpack.c.b16 %v1781, %v1780
      %v1799 = vsel %vm667, %v1782, 0
      %v1802 = vsel %vm667, %v1783, 0
      %v1805 = vsel %vm667, %v1784, 0
      %v1808 = vsel %vm667, %v1785, 0
      %v1811 = vsel %vm667, %v1786, 0
      %v1814 = vsel %vm667, %v1787, 0
      %v1817 = vsel %vm667, %v1788, 0
      %v1820 = vsel %vm667, %v1789, 0
      %v1823 = vsel %vm667, %v1790, 0
      %v1826 = vsel %vm667, %v1791, 0
      %v1829 = vsel %vm667, %v1792, 0
      %v1832 = vsel %vm667, %v1793, 0
      %v1835 = vsel %vm667, %v1794, 0
      %v1838 = vsel %vm667, %v1795, 0
      %v1841 = vsel %vm667, %v1796, 0
      %v1844 = vsel %vm667, %v1797, 0
      %v1847 = vsel %vm1317, %v1717, 0
      %1849 = vmatpush.bf16.msra.mxu0 0
      %1850 = vmatpush.bf16.msra.mxu0 0
      %1851 = vmatpush.bf16.msra.mxu0 0
      %1852 = vmatpush.bf16.msra.mxu0 0
      %1853 = vmatpush.bf16.msra.mxu0 0
      %1854 = vmatpush.bf16.msra.mxu0 0
      %1855 = vmatpush.bf16.msra.mxu0 0
      %1856 = vmatpush.bf16.msra.mxu0 %v1847
      %1857 = vmatmul.bf16.gmra.mxu0 %v1799
      %v1858 = vpop.f32.mrf.mxu0
      %v1859 = vadd.f32 0.0, %v1858
      %v1860 = vpop.f32.mrf.mxu0
      %v1861 = vadd.f32 0.0, %v1860
      %1862 = vmatmul.bf16.gmra.mxu0 %v1802
      %v1863 = vpop.f32.mrf.mxu0
      %v1864 = vadd.f32 0.0, %v1863
      %v1865 = vpop.f32.mrf.mxu0
      %v1866 = vadd.f32 0.0, %v1865
      %1867 = vmatmul.bf16.gmra.mxu0 %v1805
      %v1868 = vpop.f32.mrf.mxu0
      %v1869 = vadd.f32 0.0, %v1868
      %v1870 = vpop.f32.mrf.mxu0
      %v1871 = vadd.f32 0.0, %v1870
      %1872 = vmatmul.bf16.gmra.mxu0 %v1808
      %v1873 = vpop.f32.mrf.mxu0
      %v1874 = vadd.f32 0.0, %v1873
      %v1875 = vpop.f32.mrf.mxu0
      %v1876 = vadd.f32 0.0, %v1875
      %1877 = vmatmul.bf16.gmra.mxu0 %v1811
      %v1878 = vpop.f32.mrf.mxu0
      %v1879 = vadd.f32 0.0, %v1878
      %v1880 = vpop.f32.mrf.mxu0
      %v1881 = vadd.f32 0.0, %v1880
      %1882 = vmatmul.bf16.gmra.mxu0 %v1814
      %v1883 = vpop.f32.mrf.mxu0
      %v1884 = vadd.f32 0.0, %v1883
      %v1885 = vpop.f32.mrf.mxu0
      %v1886 = vadd.f32 0.0, %v1885
      %1887 = vmatmul.bf16.gmra.mxu0 %v1817
      %v1888 = vpop.f32.mrf.mxu0
      %v1889 = vadd.f32 0.0, %v1888
      %v1890 = vpop.f32.mrf.mxu0
      %v1891 = vadd.f32 0.0, %v1890
      %1892 = vmatmul.bf16.gmra.mxu0 %v1820
      %v1893 = vpop.f32.mrf.mxu0
      %v1894 = vadd.f32 0.0, %v1893
      %v1895 = vpop.f32.mrf.mxu0
      %v1896 = vadd.f32 0.0, %v1895
      %1897 = vmatmul.bf16.gmra.mxu0 %v1823
      %v1898 = vpop.f32.mrf.mxu0
      %v1899 = vadd.f32 0.0, %v1898
      %v1900 = vpop.f32.mrf.mxu0
      %v1901 = vadd.f32 0.0, %v1900
      %1902 = vmatmul.bf16.gmra.mxu0 %v1826
      %v1903 = vpop.f32.mrf.mxu0
      %v1904 = vadd.f32 0.0, %v1903
      %v1905 = vpop.f32.mrf.mxu0
      %v1906 = vadd.f32 0.0, %v1905
      %1907 = vmatmul.bf16.gmra.mxu0 %v1829
      %v1908 = vpop.f32.mrf.mxu0
      %v1909 = vadd.f32 0.0, %v1908
      %v1910 = vpop.f32.mrf.mxu0
      %v1911 = vadd.f32 0.0, %v1910
      %1912 = vmatmul.bf16.gmra.mxu0 %v1832
      %v1913 = vpop.f32.mrf.mxu0
      %v1914 = vadd.f32 0.0, %v1913
      %v1915 = vpop.f32.mrf.mxu0
      %v1916 = vadd.f32 0.0, %v1915
      %1917 = vmatmul.bf16.gmra.mxu0 %v1835
      %v1918 = vpop.f32.mrf.mxu0
      %v1919 = vadd.f32 0.0, %v1918
      %v1920 = vpop.f32.mrf.mxu0
      %v1921 = vadd.f32 0.0, %v1920
      %1922 = vmatmul.bf16.gmra.mxu0 %v1838
      %v1923 = vpop.f32.mrf.mxu0
      %v1924 = vadd.f32 0.0, %v1923
      %v1925 = vpop.f32.mrf.mxu0
      %v1926 = vadd.f32 0.0, %v1925
      %1927 = vmatmul.bf16.gmra.mxu0 %v1841
      %v1928 = vpop.f32.mrf.mxu0
      %v1929 = vadd.f32 0.0, %v1928
      %v1930 = vpop.f32.mrf.mxu0
      %v1931 = vadd.f32 0.0, %v1930
      %1932 = vmatmul.bf16.gmra.mxu0 %v1844
      %v1933 = vpop.f32.mrf.mxu0
      %v1934 = vadd.f32 0.0, %v1933
      %v1935 = vpop.f32.mrf.mxu0
      %v1936 = vadd.f32 0.0, %v1935
      %1937 = vdwg.mxu0
      %v1938 = vadd.f32 %v1612, %v1859
      %v1939 = vadd.f32 %v1613, %v1861
      %v1940 = vadd.f32 %v1614, %v1864
      %v1941 = vadd.f32 %v1615, %v1866
      %v1942 = vadd.f32 %v1616, %v1869
      %v1943 = vadd.f32 %v1617, %v1871
      %v1944 = vadd.f32 %v1618, %v1874
      %v1945 = vadd.f32 %v1619, %v1876
      %v1946 = vadd.f32 %v1620, %v1879
      %v1947 = vadd.f32 %v1621, %v1881
      %v1948 = vadd.f32 %v1622, %v1884
      %v1949 = vadd.f32 %v1623, %v1886
      %v1950 = vadd.f32 %v1624, %v1889
      %v1951 = vadd.f32 %v1625, %v1891
      %v1952 = vadd.f32 %v1626, %v1894
      %v1953 = vadd.f32 %v1627, %v1896
      %v1954 = vadd.f32 %v1628, %v1899
      %v1955 = vadd.f32 %v1629, %v1901
      %v1956 = vadd.f32 %v1630, %v1904
      %v1957 = vadd.f32 %v1631, %v1906
      %v1958 = vadd.f32 %v1632, %v1909
      %v1959 = vadd.f32 %v1633, %v1911
      %v1960 = vadd.f32 %v1634, %v1914
      %v1961 = vadd.f32 %v1635, %v1916
      %v1962 = vadd.f32 %v1636, %v1919
      %v1963 = vadd.f32 %v1637, %v1921
      %v1964 = vadd.f32 %v1638, %v1924
      %v1965 = vadd.f32 %v1639, %v1926
      %v1966 = vadd.f32 %v1640, %v1929
      %v1967 = vadd.f32 %v1641, %v1931
      %v1968 = vadd.f32 %v1642, %v1934
      %v1969 = vadd.f32 %v1643, %v1936
      %s1970 = scalar_lea.vmem %s2, 8
      %v1971 = vld [vmem:[%s1970] sm:$0x3]
      %v1974 = vunpack.c.l.b16 %v1712
      %v1975 = vunpack.c.l.b16 %v1713
      %v1976 = vpack.c.b16 %v1975, %v1974
      %v1978 = vsel %vm667, %v1976, 0
      %v1981 = vsel %vm1317, %v1971, 0
      %1983 = vmatpush.bf16.msra.mxu0 0
      %1984 = vmatpush.bf16.msra.mxu0 0
      %1985 = vmatpush.bf16.msra.mxu0 0
      %1986 = vmatpush.bf16.msra.mxu0 0
      %1987 = vmatpush.bf16.msra.mxu0 0
      %1988 = vmatpush.bf16.msra.mxu0 0
      %1989 = vmatpush.bf16.msra.mxu0 0
      %1990 = vmatpush.bf16.msra.mxu0 %v1981
      %1991 = vmatmul.bf16.gmra.mxu0 %v1802
      %v1992 = vpop.f32.mrf.mxu0
      %v1993 = vadd.f32 0.0, %v1992
      %v1994 = vpop.f32.mrf.mxu0
      %v1995 = vadd.f32 0.0, %v1994
      %1996 = vmatmul.bf16.gmra.mxu0 %v1805
      %v1997 = vpop.f32.mrf.mxu0
      %v1998 = vadd.f32 0.0, %v1997
      %v1999 = vpop.f32.mrf.mxu0
      %v2000 = vadd.f32 0.0, %v1999
      %2001 = vmatmul.bf16.gmra.mxu0 %v1808
      %v2002 = vpop.f32.mrf.mxu0
      %v2003 = vadd.f32 0.0, %v2002
      %v2004 = vpop.f32.mrf.mxu0
      %v2005 = vadd.f32 0.0, %v2004
      %2006 = vmatmul.bf16.gmra.mxu0 %v1811
      %v2007 = vpop.f32.mrf.mxu0
      %v2008 = vadd.f32 0.0, %v2007
      %v2009 = vpop.f32.mrf.mxu0
      %v2010 = vadd.f32 0.0, %v2009
      %2011 = vmatmul.bf16.gmra.mxu0 %v1814
      %v2012 = vpop.f32.mrf.mxu0
      %v2013 = vadd.f32 0.0, %v2012
      %v2014 = vpop.f32.mrf.mxu0
      %v2015 = vadd.f32 0.0, %v2014
      %2016 = vmatmul.bf16.gmra.mxu0 %v1817
      %v2017 = vpop.f32.mrf.mxu0
      %v2018 = vadd.f32 0.0, %v2017
      %v2019 = vpop.f32.mrf.mxu0
      %v2020 = vadd.f32 0.0, %v2019
      %2021 = vmatmul.bf16.gmra.mxu0 %v1820
      %v2022 = vpop.f32.mrf.mxu0
      %v2023 = vadd.f32 0.0, %v2022
      %v2024 = vpop.f32.mrf.mxu0
      %v2025 = vadd.f32 0.0, %v2024
      %2026 = vmatmul.bf16.gmra.mxu0 %v1823
      %v2027 = vpop.f32.mrf.mxu0
      %v2028 = vadd.f32 0.0, %v2027
      %v2029 = vpop.f32.mrf.mxu0
      %v2030 = vadd.f32 0.0, %v2029
      %2031 = vmatmul.bf16.gmra.mxu0 %v1826
      %v2032 = vpop.f32.mrf.mxu0
      %v2033 = vadd.f32 0.0, %v2032
      %v2034 = vpop.f32.mrf.mxu0
      %v2035 = vadd.f32 0.0, %v2034
      %2036 = vmatmul.bf16.gmra.mxu0 %v1829
      %v2037 = vpop.f32.mrf.mxu0
      %v2038 = vadd.f32 0.0, %v2037
      %v2039 = vpop.f32.mrf.mxu0
      %v2040 = vadd.f32 0.0, %v2039
      %2041 = vmatmul.bf16.gmra.mxu0 %v1832
      %v2042 = vpop.f32.mrf.mxu0
      %v2043 = vadd.f32 0.0, %v2042
      %v2044 = vpop.f32.mrf.mxu0
      %v2045 = vadd.f32 0.0, %v2044
      %2046 = vmatmul.bf16.gmra.mxu0 %v1835
      %v2047 = vpop.f32.mrf.mxu0
      %v2048 = vadd.f32 0.0, %v2047
      %v2049 = vpop.f32.mrf.mxu0
      %v2050 = vadd.f32 0.0, %v2049
      %2051 = vmatmul.bf16.gmra.mxu0 %v1838
      %v2052 = vpop.f32.mrf.mxu0
      %v2053 = vadd.f32 0.0, %v2052
      %v2054 = vpop.f32.mrf.mxu0
      %v2055 = vadd.f32 0.0, %v2054
      %2056 = vmatmul.bf16.gmra.mxu0 %v1841
      %v2057 = vpop.f32.mrf.mxu0
      %v2058 = vadd.f32 0.0, %v2057
      %v2059 = vpop.f32.mrf.mxu0
      %v2060 = vadd.f32 0.0, %v2059
      %2061 = vmatmul.bf16.gmra.mxu0 %v1844
      %v2062 = vpop.f32.mrf.mxu0
      %v2063 = vadd.f32 0.0, %v2062
      %v2064 = vpop.f32.mrf.mxu0
      %v2065 = vadd.f32 0.0, %v2064
      %2066 = vmatmul.bf16.gmra.mxu0 %v1978
      %v2067 = vpop.f32.mrf.mxu0
      %v2068 = vadd.f32 0.0, %v2067
      %v2069 = vpop.f32.mrf.mxu0
      %v2070 = vadd.f32 0.0, %v2069
      %2071 = vdwg.mxu0
      %v2072 = vadd.f32 %v1938, %v1993
      %v2073 = vadd.f32 %v1939, %v1995
      %v2074 = vadd.f32 %v1940, %v1998
      %v2075 = vadd.f32 %v1941, %v2000
      %v2076 = vadd.f32 %v1942, %v2003
      %v2077 = vadd.f32 %v1943, %v2005
      %v2078 = vadd.f32 %v1944, %v2008
      %v2079 = vadd.f32 %v1945, %v2010
      %v2080 = vadd.f32 %v1946, %v2013
      %v2081 = vadd.f32 %v1947, %v2015
      %v2082 = vadd.f32 %v1948, %v2018
      %v2083 = vadd.f32 %v1949, %v2020
      %v2084 = vadd.f32 %v1950, %v2023
      %v2085 = vadd.f32 %v1951, %v2025
      %v2086 = vadd.f32 %v1952, %v2028
      %v2087 = vadd.f32 %v1953, %v2030
      %v2088 = vadd.f32 %v1954, %v2033
      %v2089 = vadd.f32 %v1955, %v2035
      %v2090 = vadd.f32 %v1956, %v2038
      %v2091 = vadd.f32 %v1957, %v2040
      %v2092 = vadd.f32 %v1958, %v2043
      %v2093 = vadd.f32 %v1959, %v2045
      %v2094 = vadd.f32 %v1960, %v2048
      %v2095 = vadd.f32 %v1961, %v2050
      %v2096 = vadd.f32 %v1962, %v2053
      %v2097 = vadd.f32 %v1963, %v2055
      %v2098 = vadd.f32 %v1964, %v2058
      %v2099 = vadd.f32 %v1965, %v2060
      %v2100 = vadd.f32 %v1966, %v2063
      %v2101 = vadd.f32 %v1967, %v2065
      %v2102 = vadd.f32 %v1968, %v2068
      %v2103 = vadd.f32 %v1969, %v2070
      %s2104 = scalar_lea.vmem %s2, 14
      %v2105 = vld [vmem:[%s2104] sm:$0x3]
      %v2108 = vunpack.c.l.b16 %v1714
      %v2109 = vunpack.c.l.b16 %v1715
      %v2110 = vpack.c.b16 %v2109, %v2108
      %v2112 = vsel %vm667, %v2110, 0
      %v2115 = vsel %vm1317, %v2105, 0
      %2117 = vmatpush.bf16.msra.mxu0 0
      %2118 = vmatpush.bf16.msra.mxu0 0
      %2119 = vmatpush.bf16.msra.mxu0 0
      %2120 = vmatpush.bf16.msra.mxu0 0
      %2121 = vmatpush.bf16.msra.mxu0 0
      %2122 = vmatpush.bf16.msra.mxu0 0
      %2123 = vmatpush.bf16.msra.mxu0 0
      %2124 = vmatpush.bf16.msra.mxu0 %v2115
      %2125 = vmatmul.bf16.gmra.mxu0 %v1805
      %v2126 = vpop.f32.mrf.mxu0
      %v2127 = vadd.f32 0.0, %v2126
      %v2128 = vpop.f32.mrf.mxu0
      %v2129 = vadd.f32 0.0, %v2128
      %2130 = vmatmul.bf16.gmra.mxu0 %v1808
      %v2131 = vpop.f32.mrf.mxu0
      %v2132 = vadd.f32 0.0, %v2131
      %v2133 = vpop.f32.mrf.mxu0
      %v2134 = vadd.f32 0.0, %v2133
      %2135 = vmatmul.bf16.gmra.mxu0 %v1811
      %v2136 = vpop.f32.mrf.mxu0
      %v2137 = vadd.f32 0.0, %v2136
      %v2138 = vpop.f32.mrf.mxu0
      %v2139 = vadd.f32 0.0, %v2138
      %2140 = vmatmul.bf16.gmra.mxu0 %v1814
      %v2141 = vpop.f32.mrf.mxu0
      %v2142 = vadd.f32 0.0, %v2141
      %v2143 = vpop.f32.mrf.mxu0
      %v2144 = vadd.f32 0.0, %v2143
      %2145 = vmatmul.bf16.gmra.mxu0 %v1817
      %v2146 = vpop.f32.mrf.mxu0
      %v2147 = vadd.f32 0.0, %v2146
      %v2148 = vpop.f32.mrf.mxu0
      %v2149 = vadd.f32 0.0, %v2148
      %2150 = vmatmul.bf16.gmra.mxu0 %v1820
      %v2151 = vpop.f32.mrf.mxu0
      %v2152 = vadd.f32 0.0, %v2151
      %v2153 = vpop.f32.mrf.mxu0
      %v2154 = vadd.f32 0.0, %v2153
      %2155 = vmatmul.bf16.gmra.mxu0 %v1823
      %v2156 = vpop.f32.mrf.mxu0
      %v2157 = vadd.f32 0.0, %v2156
      %v2158 = vpop.f32.mrf.mxu0
      %v2159 = vadd.f32 0.0, %v2158
      %2160 = vmatmul.bf16.gmra.mxu0 %v1826
      %v2161 = vpop.f32.mrf.mxu0
      %v2162 = vadd.f32 0.0, %v2161
      %v2163 = vpop.f32.mrf.mxu0
      %v2164 = vadd.f32 0.0, %v2163
      %2165 = vmatmul.bf16.gmra.mxu0 %v1829
      %v2166 = vpop.f32.mrf.mxu0
      %v2167 = vadd.f32 0.0, %v2166
      %v2168 = vpop.f32.mrf.mxu0
      %v2169 = vadd.f32 0.0, %v2168
      %2170 = vmatmul.bf16.gmra.mxu0 %v1832
      %v2171 = vpop.f32.mrf.mxu0
      %v2172 = vadd.f32 0.0, %v2171
      %v2173 = vpop.f32.mrf.mxu0
      %v2174 = vadd.f32 0.0, %v2173
      %2175 = vmatmul.bf16.gmra.mxu0 %v1835
      %v2176 = vpop.f32.mrf.mxu0
      %v2177 = vadd.f32 0.0, %v2176
      %v2178 = vpop.f32.mrf.mxu0
      %v2179 = vadd.f32 0.0, %v2178
      %2180 = vmatmul.bf16.gmra.mxu0 %v1838
      %v2181 = vpop.f32.mrf.mxu0
      %v2182 = vadd.f32 0.0, %v2181
      %v2183 = vpop.f32.mrf.mxu0
      %v2184 = vadd.f32 0.0, %v2183
      %2185 = vmatmul.bf16.gmra.mxu0 %v1841
      %v2186 = vpop.f32.mrf.mxu0
      %v2187 = vadd.f32 0.0, %v2186
      %v2188 = vpop.f32.mrf.mxu0
      %v2189 = vadd.f32 0.0, %v2188
      %2190 = vmatmul.bf16.gmra.mxu0 %v1844
      %v2191 = vpop.f32.mrf.mxu0
      %v2192 = vadd.f32 0.0, %v2191
      %v2193 = vpop.f32.mrf.mxu0
      %v2194 = vadd.f32 0.0, %v2193
      %2195 = vmatmul.bf16.gmra.mxu0 %v1978
      %v2196 = vpop.f32.mrf.mxu0
      %v2197 = vadd.f32 0.0, %v2196
      %v2198 = vpop.f32.mrf.mxu0
      %v2199 = vadd.f32 0.0, %v2198
      %2200 = vmatmul.bf16.gmra.mxu0 %v2112
      %v2201 = vpop.f32.mrf.mxu0
      %v2202 = vadd.f32 0.0, %v2201
      %v2203 = vpop.f32.mrf.mxu0
      %v2204 = vadd.f32 0.0, %v2203
      %2205 = vdwg.mxu0
      %v2206 = vadd.f32 %v2072, %v2127
      %v2207 = vadd.f32 %v2073, %v2129
      %v2208 = vadd.f32 %v2074, %v2132
      %v2209 = vadd.f32 %v2075, %v2134
      %v2210 = vadd.f32 %v2076, %v2137
      %v2211 = vadd.f32 %v2077, %v2139
      %v2212 = vadd.f32 %v2078, %v2142
      %v2213 = vadd.f32 %v2079, %v2144
      %v2214 = vadd.f32 %v2080, %v2147
      %v2215 = vadd.f32 %v2081, %v2149
      %v2216 = vadd.f32 %v2082, %v2152
      %v2217 = vadd.f32 %v2083, %v2154
      %v2218 = vadd.f32 %v2084, %v2157
      %v2219 = vadd.f32 %v2085, %v2159
      %v2220 = vadd.f32 %v2086, %v2162
      %v2221 = vadd.f32 %v2087, %v2164
      %v2222 = vadd.f32 %v2088, %v2167
      %v2223 = vadd.f32 %v2089, %v2169
      %v2224 = vadd.f32 %v2090, %v2172
      %v2225 = vadd.f32 %v2091, %v2174
      %v2226 = vadd.f32 %v2092, %v2177
      %v2227 = vadd.f32 %v2093, %v2179
      %v2228 = vadd.f32 %v2094, %v2182
      %v2229 = vadd.f32 %v2095, %v2184
      %v2230 = vadd.f32 %v2096, %v2187
      %v2231 = vadd.f32 %v2097, %v2189
      %v2232 = vadd.f32 %v2098, %v2192
      %v2233 = vadd.f32 %v2099, %v2194
      %v2234 = vadd.f32 %v2100, %v2197
      %v2235 = vadd.f32 %v2101, %v2199
      %v2236 = vadd.f32 %v2102, %v2202
      %v2237 = vadd.f32 %v2103, %v2204
      %v2238 = vld [vmem:[#allocation2 + $0x2] sm:$0xff]
      %v2239 = vld [vmem:[#allocation2 + $0xa] sm:$0xff]
      %v2240 = vld [vmem:[#allocation2 + $0x1a] sm:$0xff]
      %v2241 = vld [vmem:[#allocation2 + $0x22] sm:$0xff]
      %v2242 = vld [vmem:[#allocation2 + $0x32] sm:$0xff]
      %v2243 = vld [vmem:[#allocation2 + $0x3a] sm:$0xff]
      %v2244 = vld [vmem:[#allocation2 + $0x4a] sm:$0xff]
      %v2245 = vld [vmem:[#allocation2 + $0x52] sm:$0xff]
      %v2246 = vld [vmem:[#allocation2 + $0x62] sm:$0xff]
      %v2247 = vld [vmem:[#allocation2 + $0x6a] sm:$0xff]
      %v2248 = vld [vmem:[#allocation2 + $0x7a] sm:$0xff]
      %v2249 = vld [vmem:[#allocation2 + $0x82] sm:$0xff]
      %v2250 = vld [vmem:[#allocation2 + $0x92] sm:$0xff]
      %v2251 = vld [vmem:[#allocation2 + $0x9a] sm:$0xff]
      %v2252 = vld [vmem:[#allocation2 + $0xaa] sm:$0xff]
      %v2253 = vld [vmem:[#allocation2 + $0xb2] sm:$0xff]
      %v2254 = vld [vmem:[#allocation2 + $0xc2] sm:$0xff]
      %v2255 = vld [vmem:[#allocation2 + $0xca] sm:$0xff]
      %v2256 = vld [vmem:[#allocation2 + $0xda] sm:$0xff]
      %v2257 = vld [vmem:[#allocation2 + $0xe2] sm:$0xff]
      %v2258 = vld [vmem:[#allocation2 + $0xf2] sm:$0xff]
      %v2259 = vld [vmem:[#allocation2 + $0xfa] sm:$0xff]
      %v2260 = vld [vmem:[#allocation2 + $0x10a] sm:$0xff]
      %v2261 = vld [vmem:[#allocation2 + $0x112] sm:$0xff]
      %v2262 = vld [vmem:[#allocation2 + $0x122] sm:$0xff]
      %v2263 = vld [vmem:[#allocation2 + $0x12a] sm:$0xff]
      %v2264 = vld [vmem:[#allocation2 + $0x13a] sm:$0xff]
      %v2265 = vld [vmem:[#allocation2 + $0x142] sm:$0xff]
      %v2266 = vld [vmem:[#allocation2 + $0x152] sm:$0xff]
      %v2267 = vld [vmem:[#allocation2 + $0x15a] sm:$0xff]
      %v2268 = vld [vmem:[#allocation2 + $0x16a] sm:$0xff]
      %v2269 = vld [vmem:[#allocation2 + $0x172] sm:$0xff]
      %v2270 = vld [vmem:[#allocation2 + $0x182] sm:$0xff]
      %v2271 = vld [vmem:[#allocation2 + $0x18a] sm:$0xff]
      %v2272 = vld [vmem:[#allocation2 + $0x19a] sm:$0xff]
      %v2273 = vld [vmem:[#allocation2 + $0x1a2] sm:$0xff]
      %v2274 = vpack.c.bf16 %v2238, %v2238
      %v2275 = vpack.c.bf16 %v2239, %v2239
      %v2276 = vpack.c.bf16 %v2240, %v2240
      %v2277 = vpack.c.bf16 %v2241, %v2241
      %v2278 = vpack.c.bf16 %v2242, %v2242
      %v2279 = vpack.c.bf16 %v2243, %v2243
      %v2280 = vpack.c.bf16 %v2244, %v2244
      %v2281 = vpack.c.bf16 %v2245, %v2245
      %v2282 = vpack.c.bf16 %v2246, %v2246
      %v2283 = vpack.c.bf16 %v2247, %v2247
      %v2284 = vpack.c.bf16 %v2248, %v2248
      %v2285 = vpack.c.bf16 %v2249, %v2249
      %v2286 = vpack.c.bf16 %v2250, %v2250
      %v2287 = vpack.c.bf16 %v2251, %v2251
      %v2288 = vpack.c.bf16 %v2252, %v2252
      %v2289 = vpack.c.bf16 %v2253, %v2253
      %v2290 = vpack.c.bf16 %v2254, %v2254
      %v2291 = vpack.c.bf16 %v2255, %v2255
      %v2292 = vpack.c.bf16 %v2256, %v2256
      %v2293 = vpack.c.bf16 %v2257, %v2257
      %v2294 = vpack.c.bf16 %v2258, %v2258
      %v2295 = vpack.c.bf16 %v2259, %v2259
      %v2296 = vpack.c.bf16 %v2260, %v2260
      %v2297 = vpack.c.bf16 %v2261, %v2261
      %v2298 = vpack.c.bf16 %v2262, %v2262
      %v2299 = vpack.c.bf16 %v2263, %v2263
      %v2300 = vpack.c.bf16 %v2264, %v2264
      %v2301 = vpack.c.bf16 %v2265, %v2265
      %v2302 = vpack.c.bf16 %v2266, %v2266
      %v2303 = vpack.c.bf16 %v2267, %v2267
      %v2304 = vpack.c.bf16 %v2268, %v2268
      %v2305 = vpack.c.bf16 %v2269, %v2269
      %v2306 = vpack.c.bf16 %v2270, %v2270
      %v2307 = vpack.c.bf16 %v2271, %v2271
      %v2308 = vpack.c.bf16 %v2272, %v2272
      %v2309 = vpack.c.bf16 %v2273, %v2273
      %s2310 = scalar_lea.vmem %s2, 4
      %v2311 = vld [vmem:[%s2310] sm:$0x3]
      %v2344 = vunpack.c.l.b16 %v2274
      %v2345 = vunpack.c.l.b16 %v2275
      %v2346 = vunpack.c.l.b16 %v2276
      %v2347 = vunpack.c.l.b16 %v2277
      %v2348 = vunpack.c.l.b16 %v2278
      %v2349 = vunpack.c.l.b16 %v2279
      %v2350 = vunpack.c.l.b16 %v2280
      %v2351 = vunpack.c.l.b16 %v2281
      %v2352 = vunpack.c.l.b16 %v2282
      %v2353 = vunpack.c.l.b16 %v2283
      %v2354 = vunpack.c.l.b16 %v2284
      %v2355 = vunpack.c.l.b16 %v2285
      %v2356 = vunpack.c.l.b16 %v2286
      %v2357 = vunpack.c.l.b16 %v2287
      %v2358 = vunpack.c.l.b16 %v2288
      %v2359 = vunpack.c.l.b16 %v2289
      %v2360 = vunpack.c.l.b16 %v2290
      %v2361 = vunpack.c.l.b16 %v2291
      %v2362 = vunpack.c.l.b16 %v2292
      %v2363 = vunpack.c.l.b16 %v2293
      %v2364 = vunpack.c.l.b16 %v2294
      %v2365 = vunpack.c.l.b16 %v2295
      %v2366 = vunpack.c.l.b16 %v2296
      %v2367 = vunpack.c.l.b16 %v2297
      %v2368 = vunpack.c.l.b16 %v2298
      %v2369 = vunpack.c.l.b16 %v2299
      %v2370 = vunpack.c.l.b16 %v2300
      %v2371 = vunpack.c.l.b16 %v2301
      %v2372 = vunpack.c.l.b16 %v2302
      %v2373 = vunpack.c.l.b16 %v2303
      %v2374 = vunpack.c.l.b16 %v2304
      %v2375 = vunpack.c.l.b16 %v2305
      %v2376 = vpack.c.b16 %v2345, %v2344
      %v2377 = vpack.c.b16 %v2347, %v2346
      %v2378 = vpack.c.b16 %v2349, %v2348
      %v2379 = vpack.c.b16 %v2351, %v2350
      %v2380 = vpack.c.b16 %v2353, %v2352
      %v2381 = vpack.c.b16 %v2355, %v2354
      %v2382 = vpack.c.b16 %v2357, %v2356
      %v2383 = vpack.c.b16 %v2359, %v2358
      %v2384 = vpack.c.b16 %v2361, %v2360
      %v2385 = vpack.c.b16 %v2363, %v2362
      %v2386 = vpack.c.b16 %v2365, %v2364
      %v2387 = vpack.c.b16 %v2367, %v2366
      %v2388 = vpack.c.b16 %v2369, %v2368
      %v2389 = vpack.c.b16 %v2371, %v2370
      %v2390 = vpack.c.b16 %v2373, %v2372
      %v2391 = vpack.c.b16 %v2375, %v2374
      %v2393 = vsel %vm667, %v2376, 0
      %v2396 = vsel %vm667, %v2377, 0
      %v2399 = vsel %vm667, %v2378, 0
      %v2402 = vsel %vm667, %v2379, 0
      %v2405 = vsel %vm667, %v2380, 0
      %v2408 = vsel %vm667, %v2381, 0
      %v2411 = vsel %vm667, %v2382, 0
      %v2414 = vsel %vm667, %v2383, 0
      %v2417 = vsel %vm667, %v2384, 0
      %v2420 = vsel %vm667, %v2385, 0
      %v2423 = vsel %vm667, %v2386, 0
      %v2426 = vsel %vm667, %v2387, 0
      %v2429 = vsel %vm667, %v2388, 0
      %v2432 = vsel %vm667, %v2389, 0
      %v2435 = vsel %vm667, %v2390, 0
      %v2438 = vsel %vm667, %v2391, 0
      %v2441 = vsel %vm1317, %v2311, 0
      %2443 = vmatpush.bf16.msra.mxu0 0
      %2444 = vmatpush.bf16.msra.mxu0 0
      %2445 = vmatpush.bf16.msra.mxu0 0
      %2446 = vmatpush.bf16.msra.mxu0 0
      %2447 = vmatpush.bf16.msra.mxu0 0
      %2448 = vmatpush.bf16.msra.mxu0 0
      %2449 = vmatpush.bf16.msra.mxu0 0
      %2450 = vmatpush.bf16.msra.mxu0 %v2441
      %2451 = vmatmul.bf16.gmra.mxu0 %v2393
      %v2452 = vpop.f32.mrf.mxu0
      %v2453 = vadd.f32 0.0, %v2452
      %v2454 = vpop.f32.mrf.mxu0
      %v2455 = vadd.f32 0.0, %v2454
      %2456 = vmatmul.bf16.gmra.mxu0 %v2396
      %v2457 = vpop.f32.mrf.mxu0
      %v2458 = vadd.f32 0.0, %v2457
      %v2459 = vpop.f32.mrf.mxu0
      %v2460 = vadd.f32 0.0, %v2459
      %2461 = vmatmul.bf16.gmra.mxu0 %v2399
      %v2462 = vpop.f32.mrf.mxu0
      %v2463 = vadd.f32 0.0, %v2462
      %v2464 = vpop.f32.mrf.mxu0
      %v2465 = vadd.f32 0.0, %v2464
      %2466 = vmatmul.bf16.gmra.mxu0 %v2402
      %v2467 = vpop.f32.mrf.mxu0
      %v2468 = vadd.f32 0.0, %v2467
      %v2469 = vpop.f32.mrf.mxu0
      %v2470 = vadd.f32 0.0, %v2469
      %2471 = vmatmul.bf16.gmra.mxu0 %v2405
      %v2472 = vpop.f32.mrf.mxu0
      %v2473 = vadd.f32 0.0, %v2472
      %v2474 = vpop.f32.mrf.mxu0
      %v2475 = vadd.f32 0.0, %v2474
      %2476 = vmatmul.bf16.gmra.mxu0 %v2408
      %v2477 = vpop.f32.mrf.mxu0
      %v2478 = vadd.f32 0.0, %v2477
      %v2479 = vpop.f32.mrf.mxu0
      %v2480 = vadd.f32 0.0, %v2479
      %2481 = vmatmul.bf16.gmra.mxu0 %v2411
      %v2482 = vpop.f32.mrf.mxu0
      %v2483 = vadd.f32 0.0, %v2482
      %v2484 = vpop.f32.mrf.mxu0
      %v2485 = vadd.f32 0.0, %v2484
      %2486 = vmatmul.bf16.gmra.mxu0 %v2414
      %v2487 = vpop.f32.mrf.mxu0
      %v2488 = vadd.f32 0.0, %v2487
      %v2489 = vpop.f32.mrf.mxu0
      %v2490 = vadd.f32 0.0, %v2489
      %2491 = vmatmul.bf16.gmra.mxu0 %v2417
      %v2492 = vpop.f32.mrf.mxu0
      %v2493 = vadd.f32 0.0, %v2492
      %v2494 = vpop.f32.mrf.mxu0
      %v2495 = vadd.f32 0.0, %v2494
      %2496 = vmatmul.bf16.gmra.mxu0 %v2420
      %v2497 = vpop.f32.mrf.mxu0
      %v2498 = vadd.f32 0.0, %v2497
      %v2499 = vpop.f32.mrf.mxu0
      %v2500 = vadd.f32 0.0, %v2499
      %2501 = vmatmul.bf16.gmra.mxu0 %v2423
      %v2502 = vpop.f32.mrf.mxu0
      %v2503 = vadd.f32 0.0, %v2502
      %v2504 = vpop.f32.mrf.mxu0
      %v2505 = vadd.f32 0.0, %v2504
      %2506 = vmatmul.bf16.gmra.mxu0 %v2426
      %v2507 = vpop.f32.mrf.mxu0
      %v2508 = vadd.f32 0.0, %v2507
      %v2509 = vpop.f32.mrf.mxu0
      %v2510 = vadd.f32 0.0, %v2509
      %2511 = vmatmul.bf16.gmra.mxu0 %v2429
      %v2512 = vpop.f32.mrf.mxu0
      %v2513 = vadd.f32 0.0, %v2512
      %v2514 = vpop.f32.mrf.mxu0
      %v2515 = vadd.f32 0.0, %v2514
      %2516 = vmatmul.bf16.gmra.mxu0 %v2432
      %v2517 = vpop.f32.mrf.mxu0
      %v2518 = vadd.f32 0.0, %v2517
      %v2519 = vpop.f32.mrf.mxu0
      %v2520 = vadd.f32 0.0, %v2519
      %2521 = vmatmul.bf16.gmra.mxu0 %v2435
      %v2522 = vpop.f32.mrf.mxu0
      %v2523 = vadd.f32 0.0, %v2522
      %v2524 = vpop.f32.mrf.mxu0
      %v2525 = vadd.f32 0.0, %v2524
      %2526 = vmatmul.bf16.gmra.mxu0 %v2438
      %v2527 = vpop.f32.mrf.mxu0
      %v2528 = vadd.f32 0.0, %v2527
      %v2529 = vpop.f32.mrf.mxu0
      %v2530 = vadd.f32 0.0, %v2529
      %2531 = vdwg.mxu0
      %v2532 = vadd.f32 %v2206, %v2453
      %v2533 = vadd.f32 %v2207, %v2455
      %v2534 = vadd.f32 %v2208, %v2458
      %v2535 = vadd.f32 %v2209, %v2460
      %v2536 = vadd.f32 %v2210, %v2463
      %v2537 = vadd.f32 %v2211, %v2465
      %v2538 = vadd.f32 %v2212, %v2468
      %v2539 = vadd.f32 %v2213, %v2470
      %v2540 = vadd.f32 %v2214, %v2473
      %v2541 = vadd.f32 %v2215, %v2475
      %v2542 = vadd.f32 %v2216, %v2478
      %v2543 = vadd.f32 %v2217, %v2480
      %v2544 = vadd.f32 %v2218, %v2483
      %v2545 = vadd.f32 %v2219, %v2485
      %v2546 = vadd.f32 %v2220, %v2488
      %v2547 = vadd.f32 %v2221, %v2490
      %v2548 = vadd.f32 %v2222, %v2493
      %v2549 = vadd.f32 %v2223, %v2495
      %v2550 = vadd.f32 %v2224, %v2498
      %v2551 = vadd.f32 %v2225, %v2500
      %v2552 = vadd.f32 %v2226, %v2503
      %v2553 = vadd.f32 %v2227, %v2505
      %v2554 = vadd.f32 %v2228, %v2508
      %v2555 = vadd.f32 %v2229, %v2510
      %v2556 = vadd.f32 %v2230, %v2513
      %v2557 = vadd.f32 %v2231, %v2515
      %v2558 = vadd.f32 %v2232, %v2518
      %v2559 = vadd.f32 %v2233, %v2520
      %v2560 = vadd.f32 %v2234, %v2523
      %v2561 = vadd.f32 %v2235, %v2525
      %v2562 = vadd.f32 %v2236, %v2528
      %v2563 = vadd.f32 %v2237, %v2530
      %s2564 = scalar_lea.vmem %s2, 10
      %v2565 = vld [vmem:[%s2564] sm:$0x3]
      %v2568 = vunpack.c.l.b16 %v2306
      %v2569 = vunpack.c.l.b16 %v2307
      %v2570 = vpack.c.b16 %v2569, %v2568
      %v2572 = vsel %vm667, %v2570, 0
      %v2575 = vsel %vm1317, %v2565, 0
      %2577 = vmatpush.bf16.msra.mxu0 0
      %2578 = vmatpush.bf16.msra.mxu0 0
      %2579 = vmatpush.bf16.msra.mxu0 0
      %2580 = vmatpush.bf16.msra.mxu0 0
      %2581 = vmatpush.bf16.msra.mxu0 0
      %2582 = vmatpush.bf16.msra.mxu0 0
      %2583 = vmatpush.bf16.msra.mxu0 0
      %2584 = vmatpush.bf16.msra.mxu0 %v2575
      %2585 = vmatmul.bf16.gmra.mxu0 %v2396
      %v2586 = vpop.f32.mrf.mxu0
      %v2587 = vadd.f32 0.0, %v2586
      %v2588 = vpop.f32.mrf.mxu0
      %v2589 = vadd.f32 0.0, %v2588
      %2590 = vmatmul.bf16.gmra.mxu0 %v2399
      %v2591 = vpop.f32.mrf.mxu0
      %v2592 = vadd.f32 0.0, %v2591
      %v2593 = vpop.f32.mrf.mxu0
      %v2594 = vadd.f32 0.0, %v2593
      %2595 = vmatmul.bf16.gmra.mxu0 %v2402
      %v2596 = vpop.f32.mrf.mxu0
      %v2597 = vadd.f32 0.0, %v2596
      %v2598 = vpop.f32.mrf.mxu0
      %v2599 = vadd.f32 0.0, %v2598
      %2600 = vmatmul.bf16.gmra.mxu0 %v2405
      %v2601 = vpop.f32.mrf.mxu0
      %v2602 = vadd.f32 0.0, %v2601
      %v2603 = vpop.f32.mrf.mxu0
      %v2604 = vadd.f32 0.0, %v2603
      %2605 = vmatmul.bf16.gmra.mxu0 %v2408
      %v2606 = vpop.f32.mrf.mxu0
      %v2607 = vadd.f32 0.0, %v2606
      %v2608 = vpop.f32.mrf.mxu0
      %v2609 = vadd.f32 0.0, %v2608
      %2610 = vmatmul.bf16.gmra.mxu0 %v2411
      %v2611 = vpop.f32.mrf.mxu0
      %v2612 = vadd.f32 0.0, %v2611
      %v2613 = vpop.f32.mrf.mxu0
      %v2614 = vadd.f32 0.0, %v2613
      %2615 = vmatmul.bf16.gmra.mxu0 %v2414
      %v2616 = vpop.f32.mrf.mxu0
      %v2617 = vadd.f32 0.0, %v2616
      %v2618 = vpop.f32.mrf.mxu0
      %v2619 = vadd.f32 0.0, %v2618
      %2620 = vmatmul.bf16.gmra.mxu0 %v2417
      %v2621 = vpop.f32.mrf.mxu0
      %v2622 = vadd.f32 0.0, %v2621
      %v2623 = vpop.f32.mrf.mxu0
      %v2624 = vadd.f32 0.0, %v2623
      %2625 = vmatmul.bf16.gmra.mxu0 %v2420
      %v2626 = vpop.f32.mrf.mxu0
      %v2627 = vadd.f32 0.0, %v2626
      %v2628 = vpop.f32.mrf.mxu0
      %v2629 = vadd.f32 0.0, %v2628
      %2630 = vmatmul.bf16.gmra.mxu0 %v2423
      %v2631 = vpop.f32.mrf.mxu0
      %v2632 = vadd.f32 0.0, %v2631
      %v2633 = vpop.f32.mrf.mxu0
      %v2634 = vadd.f32 0.0, %v2633
      %2635 = vmatmul.bf16.gmra.mxu0 %v2426
      %v2636 = vpop.f32.mrf.mxu0
      %v2637 = vadd.f32 0.0, %v2636
      %v2638 = vpop.f32.mrf.mxu0
      %v2639 = vadd.f32 0.0, %v2638
      %2640 = vmatmul.bf16.gmra.mxu0 %v2429
      %v2641 = vpop.f32.mrf.mxu0
      %v2642 = vadd.f32 0.0, %v2641
      %v2643 = vpop.f32.mrf.mxu0
      %v2644 = vadd.f32 0.0, %v2643
      %2645 = vmatmul.bf16.gmra.mxu0 %v2432
      %v2646 = vpop.f32.mrf.mxu0
      %v2647 = vadd.f32 0.0, %v2646
      %v2648 = vpop.f32.mrf.mxu0
      %v2649 = vadd.f32 0.0, %v2648
      %2650 = vmatmul.bf16.gmra.mxu0 %v2435
      %v2651 = vpop.f32.mrf.mxu0
      %v2652 = vadd.f32 0.0, %v2651
      %v2653 = vpop.f32.mrf.mxu0
      %v2654 = vadd.f32 0.0, %v2653
      %2655 = vmatmul.bf16.gmra.mxu0 %v2438
      %v2656 = vpop.f32.mrf.mxu0
      %v2657 = vadd.f32 0.0, %v2656
      %v2658 = vpop.f32.mrf.mxu0
      %v2659 = vadd.f32 0.0, %v2658
      %2660 = vmatmul.bf16.gmra.mxu0 %v2572
      %v2661 = vpop.f32.mrf.mxu0
      %v2662 = vadd.f32 0.0, %v2661
      %v2663 = vpop.f32.mrf.mxu0
      %v2664 = vadd.f32 0.0, %v2663
      %2665 = vdwg.mxu0
      %v2666 = vadd.f32 %v2532, %v2587
      %v2667 = vadd.f32 %v2533, %v2589
      %v2668 = vadd.f32 %v2534, %v2592
      %v2669 = vadd.f32 %v2535, %v2594
      %v2670 = vadd.f32 %v2536, %v2597
      %v2671 = vadd.f32 %v2537, %v2599
      %v2672 = vadd.f32 %v2538, %v2602
      %v2673 = vadd.f32 %v2539, %v2604
      %v2674 = vadd.f32 %v2540, %v2607
      %v2675 = vadd.f32 %v2541, %v2609
      %v2676 = vadd.f32 %v2542, %v2612
      %v2677 = vadd.f32 %v2543, %v2614
      %v2678 = vadd.f32 %v2544, %v2617
      %v2679 = vadd.f32 %v2545, %v2619
      %v2680 = vadd.f32 %v2546, %v2622
      %v2681 = vadd.f32 %v2547, %v2624
      %v2682 = vadd.f32 %v2548, %v2627
      %v2683 = vadd.f32 %v2549, %v2629
      %v2684 = vadd.f32 %v2550, %v2632
      %v2685 = vadd.f32 %v2551, %v2634
      %v2686 = vadd.f32 %v2552, %v2637
      %v2687 = vadd.f32 %v2553, %v2639
      %v2688 = vadd.f32 %v2554, %v2642
      %v2689 = vadd.f32 %v2555, %v2644
      %v2690 = vadd.f32 %v2556, %v2647
      %v2691 = vadd.f32 %v2557, %v2649
      %v2692 = vadd.f32 %v2558, %v2652
      %v2693 = vadd.f32 %v2559, %v2654
      %v2694 = vadd.f32 %v2560, %v2657
      %v2695 = vadd.f32 %v2561, %v2659
      %v2696 = vadd.f32 %v2562, %v2662
      %v2697 = vadd.f32 %v2563, %v2664
      %s2698 = scalar_lea.vmem %s2, 16
      %v2699 = vld [vmem:[%s2698] sm:$0x3]
      %v2702 = vunpack.c.l.b16 %v2308
      %v2703 = vunpack.c.l.b16 %v2309
      %v2704 = vpack.c.b16 %v2703, %v2702
      %v2706 = vsel %vm667, %v2704, 0
      %v2709 = vsel %vm1317, %v2699, 0
      %2711 = vmatpush.bf16.msra.mxu0 0
      %2712 = vmatpush.bf16.msra.mxu0 0
      %2713 = vmatpush.bf16.msra.mxu0 0
      %2714 = vmatpush.bf16.msra.mxu0 0
      %2715 = vmatpush.bf16.msra.mxu0 0
      %2716 = vmatpush.bf16.msra.mxu0 0
      %2717 = vmatpush.bf16.msra.mxu0 0
      %2718 = vmatpush.bf16.msra.mxu0 %v2709
      %2719 = vmatmul.bf16.gmra.mxu0 %v2399
      %v2720 = vpop.f32.mrf.mxu0
      %v2721 = vadd.f32 0.0, %v2720
      %v2722 = vpop.f32.mrf.mxu0
      %v2723 = vadd.f32 0.0, %v2722
      %2724 = vmatmul.bf16.gmra.mxu0 %v2402
      %v2725 = vpop.f32.mrf.mxu0
      %v2726 = vadd.f32 0.0, %v2725
      %v2727 = vpop.f32.mrf.mxu0
      %v2728 = vadd.f32 0.0, %v2727
      %2729 = vmatmul.bf16.gmra.mxu0 %v2405
      %v2730 = vpop.f32.mrf.mxu0
      %v2731 = vadd.f32 0.0, %v2730
      %v2732 = vpop.f32.mrf.mxu0
      %v2733 = vadd.f32 0.0, %v2732
      %2734 = vmatmul.bf16.gmra.mxu0 %v2408
      %v2735 = vpop.f32.mrf.mxu0
      %v2736 = vadd.f32 0.0, %v2735
      %v2737 = vpop.f32.mrf.mxu0
      %v2738 = vadd.f32 0.0, %v2737
      %2739 = vmatmul.bf16.gmra.mxu0 %v2411
      %v2740 = vpop.f32.mrf.mxu0
      %v2741 = vadd.f32 0.0, %v2740
      %v2742 = vpop.f32.mrf.mxu0
      %v2743 = vadd.f32 0.0, %v2742
      %2744 = vmatmul.bf16.gmra.mxu0 %v2414
      %v2745 = vpop.f32.mrf.mxu0
      %v2746 = vadd.f32 0.0, %v2745
      %v2747 = vpop.f32.mrf.mxu0
      %v2748 = vadd.f32 0.0, %v2747
      %2749 = vmatmul.bf16.gmra.mxu0 %v2417
      %v2750 = vpop.f32.mrf.mxu0
      %v2751 = vadd.f32 0.0, %v2750
      %v2752 = vpop.f32.mrf.mxu0
      %v2753 = vadd.f32 0.0, %v2752
      %2754 = vmatmul.bf16.gmra.mxu0 %v2420
      %v2755 = vpop.f32.mrf.mxu0
      %v2756 = vadd.f32 0.0, %v2755
      %v2757 = vpop.f32.mrf.mxu0
      %v2758 = vadd.f32 0.0, %v2757
      %2759 = vmatmul.bf16.gmra.mxu0 %v2423
      %v2760 = vpop.f32.mrf.mxu0
      %v2761 = vadd.f32 0.0, %v2760
      %v2762 = vpop.f32.mrf.mxu0
      %v2763 = vadd.f32 0.0, %v2762
      %2764 = vmatmul.bf16.gmra.mxu0 %v2426
      %v2765 = vpop.f32.mrf.mxu0
      %v2766 = vadd.f32 0.0, %v2765
      %v2767 = vpop.f32.mrf.mxu0
      %v2768 = vadd.f32 0.0, %v2767
      %2769 = vmatmul.bf16.gmra.mxu0 %v2429
      %v2770 = vpop.f32.mrf.mxu0
      %v2771 = vadd.f32 0.0, %v2770
      %v2772 = vpop.f32.mrf.mxu0
      %v2773 = vadd.f32 0.0, %v2772
      %2774 = vmatmul.bf16.gmra.mxu0 %v2432
      %v2775 = vpop.f32.mrf.mxu0
      %v2776 = vadd.f32 0.0, %v2775
      %v2777 = vpop.f32.mrf.mxu0
      %v2778 = vadd.f32 0.0, %v2777
      %2779 = vmatmul.bf16.gmra.mxu0 %v2435
      %v2780 = vpop.f32.mrf.mxu0
      %v2781 = vadd.f32 0.0, %v2780
      %v2782 = vpop.f32.mrf.mxu0
      %v2783 = vadd.f32 0.0, %v2782
      %2784 = vmatmul.bf16.gmra.mxu0 %v2438
      %v2785 = vpop.f32.mrf.mxu0
      %v2786 = vadd.f32 0.0, %v2785
      %v2787 = vpop.f32.mrf.mxu0
      %v2788 = vadd.f32 0.0, %v2787
      %2789 = vmatmul.bf16.gmra.mxu0 %v2572
      %v2790 = vpop.f32.mrf.mxu0
      %v2791 = vadd.f32 0.0, %v2790
      %v2792 = vpop.f32.mrf.mxu0
      %v2793 = vadd.f32 0.0, %v2792
      %2794 = vmatmul.bf16.gmra.mxu0 %v2706
      %v2795 = vpop.f32.mrf.mxu0
      %v2796 = vadd.f32 0.0, %v2795
      %v2797 = vpop.f32.mrf.mxu0
      %v2798 = vadd.f32 0.0, %v2797
      %2799 = vdwg.mxu0
      %v2800 = vadd.f32 %v2666, %v2721
      %v2801 = vadd.f32 %v2667, %v2723
      %v2802 = vadd.f32 %v2668, %v2726
      %v2803 = vadd.f32 %v2669, %v2728
      %v2804 = vadd.f32 %v2670, %v2731
      %v2805 = vadd.f32 %v2671, %v2733
      %v2806 = vadd.f32 %v2672, %v2736
      %v2807 = vadd.f32 %v2673, %v2738
      %v2808 = vadd.f32 %v2674, %v2741
      %v2809 = vadd.f32 %v2675, %v2743
      %v2810 = vadd.f32 %v2676, %v2746
      %v2811 = vadd.f32 %v2677, %v2748
      %v2812 = vadd.f32 %v2678, %v2751
      %v2813 = vadd.f32 %v2679, %v2753
      %v2814 = vadd.f32 %v2680, %v2756
      %v2815 = vadd.f32 %v2681, %v2758
      %v2816 = vadd.f32 %v2682, %v2761
      %v2817 = vadd.f32 %v2683, %v2763
      %v2818 = vadd.f32 %v2684, %v2766
      %v2819 = vadd.f32 %v2685, %v2768
      %v2820 = vadd.f32 %v2686, %v2771
      %v2821 = vadd.f32 %v2687, %v2773
      %v2822 = vadd.f32 %v2688, %v2776
      %v2823 = vadd.f32 %v2689, %v2778
      %v2824 = vadd.f32 %v2690, %v2781
      %v2825 = vadd.f32 %v2691, %v2783
      %v2826 = vadd.f32 %v2692, %v2786
      %v2827 = vadd.f32 %v2693, %v2788
      %v2828 = vadd.f32 %v2694, %v2791
      %v2829 = vadd.f32 %v2695, %v2793
      %v2830 = vadd.f32 %v2696, %v2796
      %v2831 = vadd.f32 %v2697, %v2798
      %v2832 = vld [vmem:[%s6] sm:$0x1]
      %v2833 = vld [vmem:[%s7] sm:$0x1]
      %v2834 = vld [vmem:[%s10] sm:$0xf]
      %v2835 = vld [vmem:[%s11] sm:$0xf]
      %v2836 = vsel %vm667, %v2800, 0.0
      %v2837 = vsel %vm667, %v2801, 0.0
      %v2838 = vadd.f32 %v2836, %v2837
      %v2839 = vsel %vm667, %v2802, 0.0
      %v2840 = vadd.f32 %v2838, %v2839
      %v2841 = vsel %vm667, %v2803, 0.0
      %v2842 = vadd.f32 %v2840, %v2841
      %v2843 = vsel %vm667, %v2804, 0.0
      %v2844 = vadd.f32 %v2842, %v2843
      %v2845 = vsel %vm667, %v2805, 0.0
      %v2846 = vadd.f32 %v2844, %v2845
      %v2847 = vsel %vm667, %v2806, 0.0
      %v2848 = vadd.f32 %v2846, %v2847
      %v2849 = vsel %vm667, %v2807, 0.0
      %v2850 = vadd.f32 %v2848, %v2849
      %v2851 = vsel %vm667, %v2808, 0.0
      %v2852 = vadd.f32 %v2850, %v2851
      %v2853 = vsel %vm667, %v2809, 0.0
      %v2854 = vadd.f32 %v2852, %v2853
      %v2855 = vsel %vm667, %v2810, 0.0
      %v2856 = vadd.f32 %v2854, %v2855
      %v2857 = vsel %vm667, %v2811, 0.0
      %v2858 = vadd.f32 %v2856, %v2857
      %v2859 = vsel %vm667, %v2812, 0.0
      %v2860 = vadd.f32 %v2858, %v2859
      %v2861 = vsel %vm667, %v2813, 0.0
      %v2862 = vadd.f32 %v2860, %v2861
      %v2863 = vsel %vm667, %v2814, 0.0
      %v2864 = vadd.f32 %v2862, %v2863
      %v2865 = vsel %vm667, %v2815, 0.0
      %v2866 = vadd.f32 %v2864, %v2865
      %v2867 = vsel %vm667, %v2816, 0.0
      %v2868 = vadd.f32 %v2866, %v2867
      %v2869 = vsel %vm667, %v2817, 0.0
      %v2870 = vadd.f32 %v2868, %v2869
      %v2871 = vsel %vm667, %v2818, 0.0
      %v2872 = vadd.f32 %v2870, %v2871
      %v2873 = vsel %vm667, %v2819, 0.0
      %v2874 = vadd.f32 %v2872, %v2873
      %v2875 = vsel %vm667, %v2820, 0.0
      %v2876 = vadd.f32 %v2874, %v2875
      %v2877 = vsel %vm667, %v2821, 0.0
      %v2878 = vadd.f32 %v2876, %v2877
      %v2879 = vsel %vm667, %v2822, 0.0
      %v2880 = vadd.f32 %v2878, %v2879
      %v2881 = vsel %vm667, %v2823, 0.0
      %v2882 = vadd.f32 %v2880, %v2881
      %v2883 = vsel %vm667, %v2824, 0.0
      %v2884 = vadd.f32 %v2882, %v2883
      %v2885 = vsel %vm667, %v2825, 0.0
      %v2886 = vadd.f32 %v2884, %v2885
      %v2887 = vsel %vm667, %v2826, 0.0
      %v2888 = vadd.f32 %v2886, %v2887
      %v2889 = vsel %vm667, %v2827, 0.0
      %v2890 = vadd.f32 %v2888, %v2889
      %v2891 = vsel %vm667, %v2828, 0.0
      %v2892 = vadd.f32 %v2890, %v2891
      %v2893 = vsel %vm667, %v2829, 0.0
      %v2894 = vadd.f32 %v2892, %v2893
      %v2895 = vsel %vm667, %v2830, 0.0
      %v2896 = vadd.f32 %v2894, %v2895
      %v2897 = vsel %vm667, %v2831, 0.0
      %v2898 = vadd.f32 %v2896, %v2897
      %v2899 = vrot.slane %v2898, 4
      %v2900 = vadd.f32 %v2898, %v2899
      %v2901 = vrot.slane %v2900, 2
      %v2902 = vadd.f32 %v2900, %v2901
      %v2903 = vrot.slane %v2902, 1
      %v2904 = vadd.f32 %v2902, %v2903
      %v2905 = vmul.f32 %v2800, %v2800
      %v2906 = vmul.f32 %v2801, %v2801
      %v2907 = vmul.f32 %v2802, %v2802
      %v2908 = vmul.f32 %v2803, %v2803
      %v2909 = vmul.f32 %v2804, %v2804
      %v2910 = vmul.f32 %v2805, %v2805
      %v2911 = vmul.f32 %v2806, %v2806
      %v2912 = vmul.f32 %v2807, %v2807
      %v2913 = vmul.f32 %v2808, %v2808
      %v2914 = vmul.f32 %v2809, %v2809
      %v2915 = vmul.f32 %v2810, %v2810
      %v2916 = vmul.f32 %v2811, %v2811
      %v2917 = vmul.f32 %v2812, %v2812
      %v2918 = vmul.f32 %v2813, %v2813
      %v2919 = vmul.f32 %v2814, %v2814
      %v2920 = vmul.f32 %v2815, %v2815
      %v2921 = vmul.f32 %v2816, %v2816
      %v2922 = vmul.f32 %v2817, %v2817
      %v2923 = vmul.f32 %v2818, %v2818
      %v2924 = vmul.f32 %v2819, %v2819
      %v2925 = vmul.f32 %v2820, %v2820
      %v2926 = vmul.f32 %v2821, %v2821
      %v2927 = vmul.f32 %v2822, %v2822
      %v2928 = vmul.f32 %v2823, %v2823
      %v2929 = vmul.f32 %v2824, %v2824
      %v2930 = vmul.f32 %v2825, %v2825
      %v2931 = vmul.f32 %v2826, %v2826
      %v2932 = vmul.f32 %v2827, %v2827
      %v2933 = vmul.f32 %v2828, %v2828
      %v2934 = vmul.f32 %v2829, %v2829
      %v2935 = vmul.f32 %v2830, %v2830
      %v2936 = vmul.f32 %v2831, %v2831
      %v2937 = vsel %vm667, %v2905, 0.0
      %v2938 = vsel %vm667, %v2906, 0.0
      %v2939 = vadd.f32 %v2937, %v2938
      %v2940 = vsel %vm667, %v2907, 0.0
      %v2941 = vadd.f32 %v2939, %v2940
      %v2942 = vsel %vm667, %v2908, 0.0
      %v2943 = vadd.f32 %v2941, %v2942
      %v2944 = vsel %vm667, %v2909, 0.0
      %v2945 = vadd.f32 %v2943, %v2944
      %v2946 = vsel %vm667, %v2910, 0.0
      %v2947 = vadd.f32 %v2945, %v2946
      %v2948 = vsel %vm667, %v2911, 0.0
      %v2949 = vadd.f32 %v2947, %v2948
      %v2950 = vsel %vm667, %v2912, 0.0
      %v2951 = vadd.f32 %v2949, %v2950
      %v2952 = vsel %vm667, %v2913, 0.0
      %v2953 = vadd.f32 %v2951, %v2952
      %v2954 = vsel %vm667, %v2914, 0.0
      %v2955 = vadd.f32 %v2953, %v2954
      %v2956 = vsel %vm667, %v2915, 0.0
      %v2957 = vadd.f32 %v2955, %v2956
      %v2958 = vsel %vm667, %v2916, 0.0
      %v2959 = vadd.f32 %v2957, %v2958
      %v2960 = vsel %vm667, %v2917, 0.0
      %v2961 = vadd.f32 %v2959, %v2960
      %v2962 = vsel %vm667, %v2918, 0.0
      %v2963 = vadd.f32 %v2961, %v2962
      %v2964 = vsel %vm667, %v2919, 0.0
      %v2965 = vadd.f32 %v2963, %v2964
      %v2966 = vsel %vm667, %v2920, 0.0
      %v2967 = vadd.f32 %v2965, %v2966
      %v2968 = vsel %vm667, %v2921, 0.0
      %v2969 = vadd.f32 %v2967, %v2968
      %v2970 = vsel %vm667, %v2922, 0.0
      %v2971 = vadd.f32 %v2969, %v2970
      %v2972 = vsel %vm667, %v2923, 0.0
      %v2973 = vadd.f32 %v2971, %v2972
      %v2974 = vsel %vm667, %v2924, 0.0
      %v2975 = vadd.f32 %v2973, %v2974
      %v2976 = vsel %vm667, %v2925, 0.0
      %v2977 = vadd.f32 %v2975, %v2976
      %v2978 = vsel %vm667, %v2926, 0.0
      %v2979 = vadd.f32 %v2977, %v2978
      %v2980 = vsel %vm667, %v2927, 0.0
      %v2981 = vadd.f32 %v2979, %v2980
      %v2982 = vsel %vm667, %v2928, 0.0
      %v2983 = vadd.f32 %v2981, %v2982
      %v2984 = vsel %vm667, %v2929, 0.0
      %v2985 = vadd.f32 %v2983, %v2984
      %v2986 = vsel %vm667, %v2930, 0.0
      %v2987 = vadd.f32 %v2985, %v2986
      %v2988 = vsel %vm667, %v2931, 0.0
      %v2989 = vadd.f32 %v2987, %v2988
      %v2990 = vsel %vm667, %v2932, 0.0
      %v2991 = vadd.f32 %v2989, %v2990
      %v2992 = vsel %vm667, %v2933, 0.0
      %v2993 = vadd.f32 %v2991, %v2992
      %v2994 = vsel %vm667, %v2934, 0.0
      %v2995 = vadd.f32 %v2993, %v2994
      %v2996 = vsel %vm667, %v2935, 0.0
      %v2997 = vadd.f32 %v2995, %v2996
      %v2998 = vsel %vm667, %v2936, 0.0
      %v2999 = vadd.f32 %v2997, %v2998
      %v3000 = vrot.slane %v2999, 4
      %v3001 = vadd.f32 %v2999, %v3000
      %v3002 = vrot.slane %v3001, 2
      %v3003 = vadd.f32 %v3001, %v3002
      %v3004 = vrot.slane %v3003, 1
      %v3005 = vadd.f32 %v3003, %v3004
      %v3006 = vsel %vm842, %v2904, %v3005
      %v3008 = vsel %vm667, %v3006, 0
      %v3011 = vsel %vm847, %v2834, 0
      %3013 = vmatpush.msra.mxu0 0.0
      %3014 = vmatpush.msra.mxu0 0.0
      %3015 = vmatpush.msra.mxu0 0.0
      %3016 = vmatpush.msra.mxu0 0.0
      %3017 = vmatpush.msra.mxu0 0.0
      %3018 = vmatpush.msra.mxu0 0.0
      %3019 = vmatpush.msra.mxu0 0.0
      %3020 = vmatpush.msra.mxu0 0.0
      %3021 = vmatpush.msra.mxu0 0.0
      %3022 = vmatpush.msra.mxu0 0.0
      %3023 = vmatpush.msra.mxu0 0.0
      %3024 = vmatpush.msra.mxu0 0.0
      %3025 = vmatpush.msra.mxu0 0.0
      %3026 = vmatpush.msra.mxu0 0.0
      %3027 = vmatpush.msra.mxu0 0.0
      %3028 = vmatpush.msra.mxu0 %v3011
      %3029 = vmatmul.f32.gmra.mxu0 %v3008
      %v3030 = vpop.f32.mrf.mxu0
      %v3031 = vadd.f32 0.0, %v3030
      %3032 = vdwg.mxu0
      %v3033 = vmul.f32 %v3031, 0.00390625
      %v3034 = vmul.f32 %v3033, %v3033
      %v3036 = vrot.slane %v3034, 7
      %v3038 = vsub.f32 %v3033, %v3036
      %v3039 = vadd.f32 %v3038, 1e-05
      %v3040 = vrsqrt.pop %v3039
      %v3041 = vmul.f32 %v3040, %v3039
      %v3042 = vmul.f32 %v3041, %v3040
      %v3043 = vmul.f32 0.5, %v3042
      %v3044 = vsub.f32 1.5, %v3043
      %v3045 = vmul.f32 %v3040, %v3044
      %vm3046 = vweird.f32 %v3039
      %vm3047 = vweird.f32 %v3040
      %vm3048 = vmor %vm3046, %vm3047
      %v3049 = vsel %vm3048, %v3040, %v3045
      %v3050 = vperm.slane %v3033, 0
      %v3051 = vperm.slane %v3049, 1
      %v3052 = vsel %vm842, %v3050, %v3051
      %v3054 = vsel %vm667, %v3052, 0
      %v3057 = vsel %vm847, %v2835, 0
      %3059 = vmatpush.msra.mxu0 0.0
      %3060 = vmatpush.msra.mxu0 0.0
      %3061 = vmatpush.msra.mxu0 0.0
      %3062 = vmatpush.msra.mxu0 0.0
      %3063 = vmatpush.msra.mxu0 0.0
      %3064 = vmatpush.msra.mxu0 0.0
      %3065 = vmatpush.msra.mxu0 0.0
      %3066 = vmatpush.msra.mxu0 0.0
      %3067 = vmatpush.msra.mxu0 0.0
      %3068 = vmatpush.msra.mxu0 0.0
      %3069 = vmatpush.msra.mxu0 0.0
      %3070 = vmatpush.msra.mxu0 0.0
      %3071 = vmatpush.msra.mxu0 0.0
      %3072 = vmatpush.msra.mxu0 0.0
      %3073 = vmatpush.msra.mxu0 0.0
      %3074 = vmatpush.msra.mxu0 %v3057
      %3075 = vmatmul.f32.gmra.mxu0 %v3054
      %v3076 = vpop.f32.mrf.mxu0
      %v3077 = vadd.f32 0.0, %v3076
      %3078 = vdwg.mxu0
      %v3080 = vperm.slane %v2832, 0
      %v3082 = vmul.f32 %v3077, %v3080
      %v3084 = vrot.slane %v3082, 1
      %v3086 = vmul.f32 %v3077, %v3084
      %v3087 = vsub.f32 %v2833, %v3086
      %v3088 = vperm.slane %v3082, 1
      %v3089 = vmul.f32 %v2800, %v3088
      %v3090 = vmul.f32 %v2801, %v3088
      %v3091 = vmul.f32 %v2802, %v3088
      %v3092 = vmul.f32 %v2803, %v3088
      %v3093 = vmul.f32 %v2804, %v3088
      %v3094 = vmul.f32 %v2805, %v3088
      %v3095 = vmul.f32 %v2806, %v3088
      %v3096 = vmul.f32 %v2807, %v3088
      %v3097 = vmul.f32 %v2808, %v3088
      %v3098 = vmul.f32 %v2809, %v3088
      %v3099 = vmul.f32 %v2810, %v3088
      %v3100 = vmul.f32 %v2811, %v3088
      %v3101 = vmul.f32 %v2812, %v3088
      %v3102 = vmul.f32 %v2813, %v3088
      %v3103 = vmul.f32 %v2814, %v3088
      %v3104 = vmul.f32 %v2815, %v3088
      %v3105 = vmul.f32 %v2816, %v3088
      %v3106 = vmul.f32 %v2817, %v3088
      %v3107 = vmul.f32 %v2818, %v3088
      %v3108 = vmul.f32 %v2819, %v3088
      %v3109 = vmul.f32 %v2820, %v3088
      %v3110 = vmul.f32 %v2821, %v3088
      %v3111 = vmul.f32 %v2822, %v3088
      %v3112 = vmul.f32 %v2823, %v3088
      %v3113 = vmul.f32 %v2824, %v3088
      %v3114 = vmul.f32 %v2825, %v3088
      %v3115 = vmul.f32 %v2826, %v3088
      %v3116 = vmul.f32 %v2827, %v3088
      %v3117 = vmul.f32 %v2828, %v3088
      %v3118 = vmul.f32 %v2829, %v3088
      %v3119 = vmul.f32 %v2830, %v3088
      %v3120 = vmul.f32 %v2831, %v3088
      %v3122 = vperm.slane %v3087, 0
      %v3124 = vadd.f32 %v3089, %v3122
      %v3125 = vadd.f32 %v3090, %v3122
      %v3126 = vadd.f32 %v3091, %v3122
      %v3127 = vadd.f32 %v3092, %v3122
      %v3128 = vadd.f32 %v3093, %v3122
      %v3129 = vadd.f32 %v3094, %v3122
      %v3130 = vadd.f32 %v3095, %v3122
      %v3131 = vadd.f32 %v3096, %v3122
      %v3132 = vadd.f32 %v3097, %v3122
      %v3133 = vadd.f32 %v3098, %v3122
      %v3134 = vadd.f32 %v3099, %v3122
      %v3135 = vadd.f32 %v3100, %v3122
      %v3136 = vadd.f32 %v3101, %v3122
      %v3137 = vadd.f32 %v3102, %v3122
      %v3138 = vadd.f32 %v3103, %v3122
      %v3139 = vadd.f32 %v3104, %v3122
      %v3140 = vadd.f32 %v3105, %v3122
      %v3141 = vadd.f32 %v3106, %v3122
      %v3142 = vadd.f32 %v3107, %v3122
      %v3143 = vadd.f32 %v3108, %v3122
      %v3144 = vadd.f32 %v3109, %v3122
      %v3145 = vadd.f32 %v3110, %v3122
      %v3146 = vadd.f32 %v3111, %v3122
      %v3147 = vadd.f32 %v3112, %v3122
      %v3148 = vadd.f32 %v3113, %v3122
      %v3149 = vadd.f32 %v3114, %v3122
      %v3150 = vadd.f32 %v3115, %v3122
      %v3151 = vadd.f32 %v3116, %v3122
      %v3152 = vadd.f32 %v3117, %v3122
      %v3153 = vadd.f32 %v3118, %v3122
      %v3154 = vadd.f32 %v3119, %v3122
      %v3155 = vadd.f32 %v3120, %v3122
      %v3156 = vmax.f32 %v3124, 0.0
      %v3157 = vmax.f32 %v3125, 0.0
      %v3158 = vmax.f32 %v3126, 0.0
      %v3159 = vmax.f32 %v3127, 0.0
      %v3160 = vmax.f32 %v3128, 0.0
      %v3161 = vmax.f32 %v3129, 0.0
      %v3162 = vmax.f32 %v3130, 0.0
      %v3163 = vmax.f32 %v3131, 0.0
      %v3164 = vmax.f32 %v3132, 0.0
      %v3165 = vmax.f32 %v3133, 0.0
      %v3166 = vmax.f32 %v3134, 0.0
      %v3167 = vmax.f32 %v3135, 0.0
      %v3168 = vmax.f32 %v3136, 0.0
      %v3169 = vmax.f32 %v3137, 0.0
      %v3170 = vmax.f32 %v3138, 0.0
      %v3171 = vmax.f32 %v3139, 0.0
      %v3172 = vmax.f32 %v3140, 0.0
      %v3173 = vmax.f32 %v3141, 0.0
      %v3174 = vmax.f32 %v3142, 0.0
      %v3175 = vmax.f32 %v3143, 0.0
      %v3176 = vmax.f32 %v3144, 0.0
      %v3177 = vmax.f32 %v3145, 0.0
      %v3178 = vmax.f32 %v3146, 0.0
      %v3179 = vmax.f32 %v3147, 0.0
      %v3180 = vmax.f32 %v3148, 0.0
      %v3181 = vmax.f32 %v3149, 0.0
      %v3182 = vmax.f32 %v3150, 0.0
      %v3183 = vmax.f32 %v3151, 0.0
      %v3184 = vmax.f32 %v3152, 0.0
      %v3185 = vmax.f32 %v3153, 0.0
      %v3186 = vmax.f32 %v3154, 0.0
      %v3187 = vmax.f32 %v3155, 0.0
      %v3188 = vpack.c.bf16 %v3157, %v3156
      %v3189 = vpack.c.bf16 %v3159, %v3158
      %v3190 = vpack.c.bf16 %v3161, %v3160
      %v3191 = vpack.c.bf16 %v3163, %v3162
      %v3192 = vpack.c.bf16 %v3165, %v3164
      %v3193 = vpack.c.bf16 %v3167, %v3166
      %v3194 = vpack.c.bf16 %v3169, %v3168
      %v3195 = vpack.c.bf16 %v3171, %v3170
      %v3196 = vpack.c.bf16 %v3173, %v3172
      %v3197 = vpack.c.bf16 %v3175, %v3174
      %v3198 = vpack.c.bf16 %v3177, %v3176
      %v3199 = vpack.c.bf16 %v3179, %v3178
      %v3200 = vpack.c.bf16 %v3181, %v3180
      %v3201 = vpack.c.bf16 %v3183, %v3182
      %v3202 = vpack.c.bf16 %v3185, %v3184
      %v3203 = vpack.c.bf16 %v3187, %v3186
      %v3204 = vld [vmem:[%s3] sm:$0x3]
      %v3206 = vsel %vm667, %v3188, 0
      %v3209 = vsel %vm667, %v3189, 0
      %v3212 = vsel %vm667, %v3190, 0
      %v3215 = vsel %vm667, %v3191, 0
      %v3218 = vsel %vm667, %v3192, 0
      %v3221 = vsel %vm667, %v3193, 0
      %v3224 = vsel %vm667, %v3194, 0
      %v3227 = vsel %vm667, %v3195, 0
      %v3230 = vsel %vm667, %v3196, 0
      %v3233 = vsel %vm667, %v3197, 0
      %v3236 = vsel %vm667, %v3198, 0
      %v3239 = vsel %vm667, %v3199, 0
      %v3242 = vsel %vm667, %v3200, 0
      %v3245 = vsel %vm667, %v3201, 0
      %v3248 = vsel %vm667, %v3202, 0
      %v3251 = vsel %vm667, %v3203, 0
      %v3254 = vsel %vm1317, %v3204, 0
      %3256 = vmatpush.bf16.msra.mxu0 0
      %3257 = vmatpush.bf16.msra.mxu0 0
      %3258 = vmatpush.bf16.msra.mxu0 0
      %3259 = vmatpush.bf16.msra.mxu0 0
      %3260 = vmatpush.bf16.msra.mxu0 0
      %3261 = vmatpush.bf16.msra.mxu0 0
      %3262 = vmatpush.bf16.msra.mxu0 0
      %3263 = vmatpush.bf16.msra.mxu0 %v3254
      %3264 = vmatmul.bf16.gmra.mxu0 %v3206
      %v3265 = vpop.f32.mrf.mxu0
      %v3266 = vadd.f32 0.0, %v3265
      %v3267 = vpop.f32.mrf.mxu0
      %v3268 = vadd.f32 0.0, %v3267
      %3269 = vmatmul.bf16.gmra.mxu0 %v3209
      %v3270 = vpop.f32.mrf.mxu0
      %v3271 = vadd.f32 0.0, %v3270
      %v3272 = vpop.f32.mrf.mxu0
      %v3273 = vadd.f32 0.0, %v3272
      %3274 = vmatmul.bf16.gmra.mxu0 %v3212
      %v3275 = vpop.f32.mrf.mxu0
      %v3276 = vadd.f32 0.0, %v3275
      %v3277 = vpop.f32.mrf.mxu0
      %v3278 = vadd.f32 0.0, %v3277
      %3279 = vmatmul.bf16.gmra.mxu0 %v3215
      %v3280 = vpop.f32.mrf.mxu0
      %v3281 = vadd.f32 0.0, %v3280
      %v3282 = vpop.f32.mrf.mxu0
      %v3283 = vadd.f32 0.0, %v3282
      %3284 = vmatmul.bf16.gmra.mxu0 %v3218
      %v3285 = vpop.f32.mrf.mxu0
      %v3286 = vadd.f32 0.0, %v3285
      %v3287 = vpop.f32.mrf.mxu0
      %v3288 = vadd.f32 0.0, %v3287
      %3289 = vmatmul.bf16.gmra.mxu0 %v3221
      %v3290 = vpop.f32.mrf.mxu0
      %v3291 = vadd.f32 0.0, %v3290
      %v3292 = vpop.f32.mrf.mxu0
      %v3293 = vadd.f32 0.0, %v3292
      %3294 = vmatmul.bf16.gmra.mxu0 %v3224
      %v3295 = vpop.f32.mrf.mxu0
      %v3296 = vadd.f32 0.0, %v3295
      %v3297 = vpop.f32.mrf.mxu0
      %v3298 = vadd.f32 0.0, %v3297
      %3299 = vmatmul.bf16.gmra.mxu0 %v3227
      %v3300 = vpop.f32.mrf.mxu0
      %v3301 = vadd.f32 0.0, %v3300
      %v3302 = vpop.f32.mrf.mxu0
      %v3303 = vadd.f32 0.0, %v3302
      %3304 = vmatmul.bf16.gmra.mxu0 %v3230
      %v3305 = vpop.f32.mrf.mxu0
      %v3306 = vadd.f32 0.0, %v3305
      %v3307 = vpop.f32.mrf.mxu0
      %v3308 = vadd.f32 0.0, %v3307
      %3309 = vmatmul.bf16.gmra.mxu0 %v3233
      %v3310 = vpop.f32.mrf.mxu0
      %v3311 = vadd.f32 0.0, %v3310
      %v3312 = vpop.f32.mrf.mxu0
      %v3313 = vadd.f32 0.0, %v3312
      %3314 = vmatmul.bf16.gmra.mxu0 %v3236
      %v3315 = vpop.f32.mrf.mxu0
      %v3316 = vadd.f32 0.0, %v3315
      %v3317 = vpop.f32.mrf.mxu0
      %v3318 = vadd.f32 0.0, %v3317
      %3319 = vmatmul.bf16.gmra.mxu0 %v3239
      %v3320 = vpop.f32.mrf.mxu0
      %v3321 = vadd.f32 0.0, %v3320
      %v3322 = vpop.f32.mrf.mxu0
      %v3323 = vadd.f32 0.0, %v3322
      %3324 = vmatmul.bf16.gmra.mxu0 %v3242
      %v3325 = vpop.f32.mrf.mxu0
      %v3326 = vadd.f32 0.0, %v3325
      %v3327 = vpop.f32.mrf.mxu0
      %v3328 = vadd.f32 0.0, %v3327
      %3329 = vmatmul.bf16.gmra.mxu0 %v3245
      %v3330 = vpop.f32.mrf.mxu0
      %v3331 = vadd.f32 0.0, %v3330
      %v3332 = vpop.f32.mrf.mxu0
      %v3333 = vadd.f32 0.0, %v3332
      %3334 = vmatmul.bf16.gmra.mxu0 %v3248
      %v3335 = vpop.f32.mrf.mxu0
      %v3336 = vadd.f32 0.0, %v3335
      %v3337 = vpop.f32.mrf.mxu0
      %v3338 = vadd.f32 0.0, %v3337
      %3339 = vmatmul.bf16.gmra.mxu0 %v3251
      %v3340 = vpop.f32.mrf.mxu0
      %v3341 = vadd.f32 0.0, %v3340
      %v3342 = vpop.f32.mrf.mxu0
      %v3343 = vadd.f32 0.0, %v3342
      %3344 = vdwg.mxu0
      %v3345 = vld [vmem:[%s8] sm:$0x1]
      %v3346 = vld [vmem:[%s9] sm:$0x1]
      %v3347 = vld [vmem:[%s12] sm:$0xff]
      %v3348 = vld [vmem:[%s12 + $0x8] sm:$0xff]
      %v3349 = vld [vmem:[%s13] sm:$0xff]
      %v3350 = vld [vmem:[%s13 + $0x8] sm:$0xff]
      %v3351 = vsel %vm525, %v3266, 0.0
      %v3352 = vsel %vm525, %v3268, 0.0
      %v3353 = vadd.f32 %v3351, %v3352
      %v3354 = vsel %vm525, %v3271, 0.0
      %v3355 = vadd.f32 %v3353, %v3354
      %v3356 = vsel %vm525, %v3273, 0.0
      %v3357 = vadd.f32 %v3355, %v3356
      %v3358 = vsel %vm525, %v3276, 0.0
      %v3359 = vadd.f32 %v3357, %v3358
      %v3360 = vsel %vm525, %v3278, 0.0
      %v3361 = vadd.f32 %v3359, %v3360
      %v3362 = vsel %vm525, %v3281, 0.0
      %v3363 = vadd.f32 %v3361, %v3362
      %v3364 = vsel %vm525, %v3283, 0.0
      %v3365 = vadd.f32 %v3363, %v3364
      %v3366 = vsel %vm525, %v3286, 0.0
      %v3367 = vadd.f32 %v3365, %v3366
      %v3368 = vsel %vm525, %v3288, 0.0
      %v3369 = vadd.f32 %v3367, %v3368
      %v3370 = vsel %vm525, %v3291, 0.0
      %v3371 = vadd.f32 %v3369, %v3370
      %v3372 = vsel %vm525, %v3293, 0.0
      %v3373 = vadd.f32 %v3371, %v3372
      %v3374 = vsel %vm525, %v3296, 0.0
      %v3375 = vadd.f32 %v3373, %v3374
      %v3376 = vsel %vm525, %v3298, 0.0
      %v3377 = vadd.f32 %v3375, %v3376
      %v3378 = vsel %vm525, %v3301, 0.0
      %v3379 = vadd.f32 %v3377, %v3378
      %v3380 = vsel %vm525, %v3303, 0.0
      %v3381 = vadd.f32 %v3379, %v3380
      %v3382 = vsel %vm525, %v3306, 0.0
      %v3383 = vadd.f32 %v3381, %v3382
      %v3384 = vsel %vm525, %v3308, 0.0
      %v3385 = vadd.f32 %v3383, %v3384
      %v3386 = vsel %vm525, %v3311, 0.0
      %v3387 = vadd.f32 %v3385, %v3386
      %v3388 = vsel %vm525, %v3313, 0.0
      %v3389 = vadd.f32 %v3387, %v3388
      %v3390 = vsel %vm525, %v3316, 0.0
      %v3391 = vadd.f32 %v3389, %v3390
      %v3392 = vsel %vm525, %v3318, 0.0
      %v3393 = vadd.f32 %v3391, %v3392
      %v3394 = vsel %vm525, %v3321, 0.0
      %v3395 = vadd.f32 %v3393, %v3394
      %v3396 = vsel %vm525, %v3323, 0.0
      %v3397 = vadd.f32 %v3395, %v3396
      %v3398 = vsel %vm525, %v3326, 0.0
      %v3399 = vadd.f32 %v3397, %v3398
      %v3400 = vsel %vm525, %v3328, 0.0
      %v3401 = vadd.f32 %v3399, %v3400
      %v3402 = vsel %vm525, %v3331, 0.0
      %v3403 = vadd.f32 %v3401, %v3402
      %v3404 = vsel %vm525, %v3333, 0.0
      %v3405 = vadd.f32 %v3403, %v3404
      %v3406 = vsel %vm525, %v3336, 0.0
      %v3407 = vadd.f32 %v3405, %v3406
      %v3408 = vsel %vm525, %v3338, 0.0
      %v3409 = vadd.f32 %v3407, %v3408
      %v3410 = vsel %vm525, %v3341, 0.0
      %v3411 = vadd.f32 %v3409, %v3410
      %v3412 = vsel %vm525, %v3343, 0.0
      %v3413 = vadd.f32 %v3411, %v3412
      %v3414 = vrot.slane %v3413, 4
      %v3415 = vadd.f32 %v3413, %v3414
      %v3416 = vrot.slane %v3415, 2
      %v3417 = vadd.f32 %v3415, %v3416
      %v3418 = vrot.slane %v3417, 1
      %v3419 = vadd.f32 %v3417, %v3418
      %v3420 = vmul.f32 %v3266, %v3266
      %v3421 = vmul.f32 %v3268, %v3268
      %v3422 = vmul.f32 %v3271, %v3271
      %v3423 = vmul.f32 %v3273, %v3273
      %v3424 = vmul.f32 %v3276, %v3276
      %v3425 = vmul.f32 %v3278, %v3278
      %v3426 = vmul.f32 %v3281, %v3281
      %v3427 = vmul.f32 %v3283, %v3283
      %v3428 = vmul.f32 %v3286, %v3286
      %v3429 = vmul.f32 %v3288, %v3288
      %v3430 = vmul.f32 %v3291, %v3291
      %v3431 = vmul.f32 %v3293, %v3293
      %v3432 = vmul.f32 %v3296, %v3296
      %v3433 = vmul.f32 %v3298, %v3298
      %v3434 = vmul.f32 %v3301, %v3301
      %v3435 = vmul.f32 %v3303, %v3303
      %v3436 = vmul.f32 %v3306, %v3306
      %v3437 = vmul.f32 %v3308, %v3308
      %v3438 = vmul.f32 %v3311, %v3311
      %v3439 = vmul.f32 %v3313, %v3313
      %v3440 = vmul.f32 %v3316, %v3316
      %v3441 = vmul.f32 %v3318, %v3318
      %v3442 = vmul.f32 %v3321, %v3321
      %v3443 = vmul.f32 %v3323, %v3323
      %v3444 = vmul.f32 %v3326, %v3326
      %v3445 = vmul.f32 %v3328, %v3328
      %v3446 = vmul.f32 %v3331, %v3331
      %v3447 = vmul.f32 %v3333, %v3333
      %v3448 = vmul.f32 %v3336, %v3336
      %v3449 = vmul.f32 %v3338, %v3338
      %v3450 = vmul.f32 %v3341, %v3341
      %v3451 = vmul.f32 %v3343, %v3343
      %v3452 = vsel %vm525, %v3420, 0.0
      %v3453 = vsel %vm525, %v3421, 0.0
      %v3454 = vadd.f32 %v3452, %v3453
      %v3455 = vsel %vm525, %v3422, 0.0
      %v3456 = vadd.f32 %v3454, %v3455
      %v3457 = vsel %vm525, %v3423, 0.0
      %v3458 = vadd.f32 %v3456, %v3457
      %v3459 = vsel %vm525, %v3424, 0.0
      %v3460 = vadd.f32 %v3458, %v3459
      %v3461 = vsel %vm525, %v3425, 0.0
      %v3462 = vadd.f32 %v3460, %v3461
      %v3463 = vsel %vm525, %v3426, 0.0
      %v3464 = vadd.f32 %v3462, %v3463
      %v3465 = vsel %vm525, %v3427, 0.0
      %v3466 = vadd.f32 %v3464, %v3465
      %v3467 = vsel %vm525, %v3428, 0.0
      %v3468 = vadd.f32 %v3466, %v3467
      %v3469 = vsel %vm525, %v3429, 0.0
      %v3470 = vadd.f32 %v3468, %v3469
      %v3471 = vsel %vm525, %v3430, 0.0
      %v3472 = vadd.f32 %v3470, %v3471
      %v3473 = vsel %vm525, %v3431, 0.0
      %v3474 = vadd.f32 %v3472, %v3473
      %v3475 = vsel %vm525, %v3432, 0.0
      %v3476 = vadd.f32 %v3474, %v3475
      %v3477 = vsel %vm525, %v3433, 0.0
      %v3478 = vadd.f32 %v3476, %v3477
      %v3479 = vsel %vm525, %v3434, 0.0
      %v3480 = vadd.f32 %v3478, %v3479
      %v3481 = vsel %vm525, %v3435, 0.0
      %v3482 = vadd.f32 %v3480, %v3481
      %v3483 = vsel %vm525, %v3436, 0.0
      %v3484 = vadd.f32 %v3482, %v3483
      %v3485 = vsel %vm525, %v3437, 0.0
      %v3486 = vadd.f32 %v3484, %v3485
      %v3487 = vsel %vm525, %v3438, 0.0
      %v3488 = vadd.f32 %v3486, %v3487
      %v3489 = vsel %vm525, %v3439, 0.0
      %v3490 = vadd.f32 %v3488, %v3489
      %v3491 = vsel %vm525, %v3440, 0.0
      %v3492 = vadd.f32 %v3490, %v3491
      %v3493 = vsel %vm525, %v3441, 0.0
      %v3494 = vadd.f32 %v3492, %v3493
      %v3495 = vsel %vm525, %v3442, 0.0
      %v3496 = vadd.f32 %v3494, %v3495
      %v3497 = vsel %vm525, %v3443, 0.0
      %v3498 = vadd.f32 %v3496, %v3497
      %v3499 = vsel %vm525, %v3444, 0.0
      %v3500 = vadd.f32 %v3498, %v3499
      %v3501 = vsel %vm525, %v3445, 0.0
      %v3502 = vadd.f32 %v3500, %v3501
      %v3503 = vsel %vm525, %v3446, 0.0
      %v3504 = vadd.f32 %v3502, %v3503
      %v3505 = vsel %vm525, %v3447, 0.0
      %v3506 = vadd.f32 %v3504, %v3505
      %v3507 = vsel %vm525, %v3448, 0.0
      %v3508 = vadd.f32 %v3506, %v3507
      %v3509 = vsel %vm525, %v3449, 0.0
      %v3510 = vadd.f32 %v3508, %v3509
      %v3511 = vsel %vm525, %v3450, 0.0
      %v3512 = vadd.f32 %v3510, %v3511
      %v3513 = vsel %vm525, %v3451, 0.0
      %v3514 = vadd.f32 %v3512, %v3513
      %v3515 = vrot.slane %v3514, 4
      %v3516 = vadd.f32 %v3514, %v3515
      %v3517 = vrot.slane %v3516, 2
      %v3518 = vadd.f32 %v3516, %v3517
      %v3519 = vrot.slane %v3518, 1
      %v3520 = vadd.f32 %v3518, %v3519
      %v3521 = vsel %vm842, %v3419, %v3520
      %v3523 = vsel %vm525, %v3521, 0
      %3525 = vmatpush.msra.mxu0 0.0
      %3526 = vmatpush.msra.mxu0 0.0
      %3527 = vmatpush.msra.mxu0 0.0
      %3528 = vmatpush.msra.mxu0 0.0
      %3529 = vmatpush.msra.mxu0 0.0
      %3530 = vmatpush.msra.mxu0 0.0
      %3531 = vmatpush.msra.mxu0 0.0
      %3532 = vmatpush.msra.mxu0 0.0
      %3533 = vmatpush.msra.mxu0 0.0
      %3534 = vmatpush.msra.mxu0 0.0
      %3535 = vmatpush.msra.mxu0 0.0
      %3536 = vmatpush.msra.mxu0 0.0
      %3537 = vmatpush.msra.mxu0 0.0
      %3538 = vmatpush.msra.mxu0 0.0
      %3539 = vmatpush.msra.mxu0 %v3348
      %3540 = vmatpush.msra.mxu0 %v3347
      %3541 = vmatmul.f32.gmra.mxu0 %v3523
      %v3542 = vpop.f32.mrf.mxu0
      %v3543 = vadd.f32 0.0, %v3542
      %3544 = vdwg.mxu0
      %v3545 = vmul.f32 %v3543, 0.00390625
      %v3546 = vmul.f32 %v3545, %v3545
      %v3548 = vrot.slane %v3546, 7
      %v3550 = vsub.f32 %v3545, %v3548
      %v3551 = vadd.f32 %v3550, 1e-05
      %v3552 = vrsqrt.pop %v3551
      %v3553 = vmul.f32 %v3552, %v3551
      %v3554 = vmul.f32 %v3553, %v3552
      %v3555 = vmul.f32 0.5, %v3554
      %v3556 = vsub.f32 1.5, %v3555
      %v3557 = vmul.f32 %v3552, %v3556
      %vm3558 = vweird.f32 %v3551
      %vm3559 = vweird.f32 %v3552
      %vm3560 = vmor %vm3558, %vm3559
      %v3561 = vsel %vm3560, %v3552, %v3557
      %v3562 = vperm.slane %v3545, 0
      %v3563 = vperm.slane %v3561, 1
      %v3564 = vsel %vm842, %v3562, %v3563
      %v3566 = vsel %vm525, %v3564, 0
      %3568 = vmatpush.msra.mxu0 0.0
      %3569 = vmatpush.msra.mxu0 0.0
      %3570 = vmatpush.msra.mxu0 0.0
      %3571 = vmatpush.msra.mxu0 0.0
      %3572 = vmatpush.msra.mxu0 0.0
      %3573 = vmatpush.msra.mxu0 0.0
      %3574 = vmatpush.msra.mxu0 0.0
      %3575 = vmatpush.msra.mxu0 0.0
      %3576 = vmatpush.msra.mxu0 0.0
      %3577 = vmatpush.msra.mxu0 0.0
      %3578 = vmatpush.msra.mxu0 0.0
      %3579 = vmatpush.msra.mxu0 0.0
      %3580 = vmatpush.msra.mxu0 0.0
      %3581 = vmatpush.msra.mxu0 0.0
      %3582 = vmatpush.msra.mxu0 %v3350
      %3583 = vmatpush.msra.mxu0 %v3349
      %3584 = vmatmul.f32.gmra.mxu0 %v3566
      %v3585 = vpop.f32.mrf.mxu0
      %v3586 = vadd.f32 0.0, %v3585
      %3587 = vdwg.mxu0
      %v3589 = vperm.slane %v3345, 0
      %v3591 = vmul.f32 %v3586, %v3589
      %v3593 = vrot.slane %v3591, 1
      %v3595 = vmul.f32 %v3586, %v3593
      %v3596 = vsub.f32 %v3346, %v3595
      %v3597 = vperm.slane %v3591, 1
      %v3598 = vmul.f32 %v3266, %v3597
      %v3599 = vmul.f32 %v3268, %v3597
      %v3600 = vmul.f32 %v3271, %v3597
      %v3601 = vmul.f32 %v3273, %v3597
      %v3602 = vmul.f32 %v3276, %v3597
      %v3603 = vmul.f32 %v3278, %v3597
      %v3604 = vmul.f32 %v3281, %v3597
      %v3605 = vmul.f32 %v3283, %v3597
      %v3606 = vmul.f32 %v3286, %v3597
      %v3607 = vmul.f32 %v3288, %v3597
      %v3608 = vmul.f32 %v3291, %v3597
      %v3609 = vmul.f32 %v3293, %v3597
      %v3610 = vmul.f32 %v3296, %v3597
      %v3611 = vmul.f32 %v3298, %v3597
      %v3612 = vmul.f32 %v3301, %v3597
      %v3613 = vmul.f32 %v3303, %v3597
      %v3614 = vmul.f32 %v3306, %v3597
      %v3615 = vmul.f32 %v3308, %v3597
      %v3616 = vmul.f32 %v3311, %v3597
      %v3617 = vmul.f32 %v3313, %v3597
      %v3618 = vmul.f32 %v3316, %v3597
      %v3619 = vmul.f32 %v3318, %v3597
      %v3620 = vmul.f32 %v3321, %v3597
      %v3621 = vmul.f32 %v3323, %v3597
      %v3622 = vmul.f32 %v3326, %v3597
      %v3623 = vmul.f32 %v3328, %v3597
      %v3624 = vmul.f32 %v3331, %v3597
      %v3625 = vmul.f32 %v3333, %v3597
      %v3626 = vmul.f32 %v3336, %v3597
      %v3627 = vmul.f32 %v3338, %v3597
      %v3628 = vmul.f32 %v3341, %v3597
      %v3629 = vmul.f32 %v3343, %v3597
      %v3631 = vperm.slane %v3596, 0
      %v3633 = vadd.f32 %v3598, %v3631
      %v3634 = vadd.f32 %v3599, %v3631
      %v3635 = vadd.f32 %v3600, %v3631
      %v3636 = vadd.f32 %v3601, %v3631
      %v3637 = vadd.f32 %v3602, %v3631
      %v3638 = vadd.f32 %v3603, %v3631
      %v3639 = vadd.f32 %v3604, %v3631
      %v3640 = vadd.f32 %v3605, %v3631
      %v3641 = vadd.f32 %v3606, %v3631
      %v3642 = vadd.f32 %v3607, %v3631
      %v3643 = vadd.f32 %v3608, %v3631
      %v3644 = vadd.f32 %v3609, %v3631
      %v3645 = vadd.f32 %v3610, %v3631
      %v3646 = vadd.f32 %v3611, %v3631
      %v3647 = vadd.f32 %v3612, %v3631
      %v3648 = vadd.f32 %v3613, %v3631
      %v3649 = vadd.f32 %v3614, %v3631
      %v3650 = vadd.f32 %v3615, %v3631
      %v3651 = vadd.f32 %v3616, %v3631
      %v3652 = vadd.f32 %v3617, %v3631
      %v3653 = vadd.f32 %v3618, %v3631
      %v3654 = vadd.f32 %v3619, %v3631
      %v3655 = vadd.f32 %v3620, %v3631
      %v3656 = vadd.f32 %v3621, %v3631
      %v3657 = vadd.f32 %v3622, %v3631
      %v3658 = vadd.f32 %v3623, %v3631
      %v3659 = vadd.f32 %v3624, %v3631
      %v3660 = vadd.f32 %v3625, %v3631
      %v3661 = vadd.f32 %v3626, %v3631
      %v3662 = vadd.f32 %v3627, %v3631
      %v3663 = vadd.f32 %v3628, %v3631
      %v3664 = vadd.f32 %v3629, %v3631
      %v3665 = vadd.f32 %v3633, %v469
      %v3666 = vadd.f32 %v3634, %v470
      %v3667 = vadd.f32 %v3635, %v471
      %v3668 = vadd.f32 %v3636, %v472
      %v3669 = vadd.f32 %v3637, %v473
      %v3670 = vadd.f32 %v3638, %v474
      %v3671 = vadd.f32 %v3639, %v475
      %v3672 = vadd.f32 %v3640, %v476
      %v3673 = vadd.f32 %v3641, %v477
      %v3674 = vadd.f32 %v3642, %v478
      %v3675 = vadd.f32 %v3643, %v479
      %v3676 = vadd.f32 %v3644, %v480
      %v3677 = vadd.f32 %v3645, %v481
      %v3678 = vadd.f32 %v3646, %v482
      %v3679 = vadd.f32 %v3647, %v483
      %v3680 = vadd.f32 %v3648, %v484
      %v3681 = vadd.f32 %v3649, %v485
      %v3682 = vadd.f32 %v3650, %v486
      %v3683 = vadd.f32 %v3651, %v487
      %v3684 = vadd.f32 %v3652, %v488
      %v3685 = vadd.f32 %v3653, %v489
      %v3686 = vadd.f32 %v3654, %v490
      %v3687 = vadd.f32 %v3655, %v491
      %v3688 = vadd.f32 %v3656, %v492
      %v3689 = vadd.f32 %v3657, %v493
      %v3690 = vadd.f32 %v3658, %v494
      %v3691 = vadd.f32 %v3659, %v495
      %v3692 = vadd.f32 %v3660, %v496
      %v3693 = vadd.f32 %v3661, %v497
      %v3694 = vadd.f32 %v3662, %v498
      %v3695 = vadd.f32 %v3663, %v499
      %v3696 = vadd.f32 %v3664, %v500
      %v3697 = vmax.f32 %v3665, 0.0
      %v3698 = vmax.f32 %v3666, 0.0
      %v3699 = vmax.f32 %v3667, 0.0
      %v3700 = vmax.f32 %v3668, 0.0
      %v3701 = vmax.f32 %v3669, 0.0
      %v3702 = vmax.f32 %v3670, 0.0
      %v3703 = vmax.f32 %v3671, 0.0
      %v3704 = vmax.f32 %v3672, 0.0
      %v3705 = vmax.f32 %v3673, 0.0
      %v3706 = vmax.f32 %v3674, 0.0
      %v3707 = vmax.f32 %v3675, 0.0
      %v3708 = vmax.f32 %v3676, 0.0
      %v3709 = vmax.f32 %v3677, 0.0
      %v3710 = vmax.f32 %v3678, 0.0
      %v3711 = vmax.f32 %v3679, 0.0
      %v3712 = vmax.f32 %v3680, 0.0
      %v3713 = vmax.f32 %v3681, 0.0
      %v3714 = vmax.f32 %v3682, 0.0
      %v3715 = vmax.f32 %v3683, 0.0
      %v3716 = vmax.f32 %v3684, 0.0
      %v3717 = vmax.f32 %v3685, 0.0
      %v3718 = vmax.f32 %v3686, 0.0
      %v3719 = vmax.f32 %v3687, 0.0
      %v3720 = vmax.f32 %v3688, 0.0
      %v3721 = vmax.f32 %v3689, 0.0
      %v3722 = vmax.f32 %v3690, 0.0
      %v3723 = vmax.f32 %v3691, 0.0
      %v3724 = vmax.f32 %v3692, 0.0
      %v3725 = vmax.f32 %v3693, 0.0
      %v3726 = vmax.f32 %v3694, 0.0
      %v3727 = vmax.f32 %v3695, 0.0
      %v3728 = vmax.f32 %v3696, 0.0
      %3729 = vst.msk [vmem:[%s467] sm:$0xff] %vm525, %v3697
      %3730 = vst.msk [vmem:[%s467 + $0x8] sm:$0xff] %vm525, %v3698
      %3731 = vst.msk [vmem:[%s467 + $0x10] sm:$0xff] %vm525, %v3699
      %3732 = vst.msk [vmem:[%s467 + $0x18] sm:$0xff] %vm525, %v3700
      %3733 = vst.msk [vmem:[%s467 + $0x20] sm:$0xff] %vm525, %v3701
      %3734 = vst.msk [vmem:[%s467 + $0x28] sm:$0xff] %vm525, %v3702
      %3735 = vst.msk [vmem:[%s467 + $0x30] sm:$0xff] %vm525, %v3703
      %3736 = vst.msk [vmem:[%s467 + $0x38] sm:$0xff] %vm525, %v3704
      %3737 = vst.msk [vmem:[%s467 + $0x40] sm:$0xff] %vm525, %v3705
      %3738 = vst.msk [vmem:[%s467 + $0x48] sm:$0xff] %vm525, %v3706
      %3739 = vst.msk [vmem:[%s467 + $0x50] sm:$0xff] %vm525, %v3707
      %3740 = vst.msk [vmem:[%s467 + $0x58] sm:$0xff] %vm525, %v3708
      %3741 = vst.msk [vmem:[%s467 + $0x60] sm:$0xff] %vm525, %v3709
      %3742 = vst.msk [vmem:[%s467 + $0x68] sm:$0xff] %vm525, %v3710
      %3743 = vst.msk [vmem:[%s467 + $0x70] sm:$0xff] %vm525, %v3711
      %3744 = vst.msk [vmem:[%s467 + $0x78] sm:$0xff] %vm525, %v3712
      %3745 = vst.msk [vmem:[%s467 + $0x80] sm:$0xff] %vm525, %v3713
      %3746 = vst.msk [vmem:[%s467 + $0x88] sm:$0xff] %vm525, %v3714
      %3747 = vst.msk [vmem:[%s467 + $0x90] sm:$0xff] %vm525, %v3715
      %3748 = vst.msk [vmem:[%s467 + $0x98] sm:$0xff] %vm525, %v3716
      %3749 = vst.msk [vmem:[%s467 + $0xa0] sm:$0xff] %vm525, %v3717
      %3750 = vst.msk [vmem:[%s467 + $0xa8] sm:$0xff] %vm525, %v3718
      %3751 = vst.msk [vmem:[%s467 + $0xb0] sm:$0xff] %vm525, %v3719
      %3752 = vst.msk [vmem:[%s467 + $0xb8] sm:$0xff] %vm525, %v3720
      %3753 = vst.msk [vmem:[%s467 + $0xc0] sm:$0xff] %vm525, %v3721
      %3754 = vst.msk [vmem:[%s467 + $0xc8] sm:$0xff] %vm525, %v3722
      %3755 = vst.msk [vmem:[%s467 + $0xd0] sm:$0xff] %vm525, %v3723
      %3756 = vst.msk [vmem:[%s467 + $0xd8] sm:$0xff] %vm525, %v3724
      %3757 = vst.msk [vmem:[%s467 + $0xe0] sm:$0xff] %vm525, %v3725
      %3758 = vst.msk [vmem:[%s467 + $0xe8] sm:$0xff] %vm525, %v3726
      %3759 = vst.msk [vmem:[%s467 + $0xf0] sm:$0xff] %vm525, %v3727
      %3760 = vst.msk [vmem:[%s467 + $0xf8] sm:$0xff] %vm525, %v3728
      %p3761 = scmp.lt.s32.totalorder %s25, 1
      %s3762 = scalar_select %p3761, %s25, 1
      %s3763 = smul.addr %s3762, 32
      %s3764 = smul.addr %s3763, 8
      %s3765 = scalar_lea.vmem %s14, %s3764
      // Predicated region
      $region77: #{tpu_custom_call.1} parent=75 // pred_check
        %p3766 = pneg %p342
      $region78: #{tpu_custom_call.1} parent=75 // pred_check_branch
        %3768 = sbr.rel (%p3766) target = $region80
      $region79: #{tpu_custom_call.1} parent=75 // pred_region
        _
      $region80: #{tpu_custom_call.1} parent=75 // pred_fallthru
        _
    $region76: #{tpu_custom_call.1} parent=5 // pred_fallthru
      _
    %p3769 = scmp.le.s32.totalorder 2, %s20
    // Predicated region
    $region81: #{tpu_custom_call.1} parent=5 // pred_check
      %p3770 = pneg %p3769
    $region82: #{tpu_custom_call.1} parent=5 // pred_check_branch
      %3772 = sbr.rel (%p3770) target = $region84
    $region83: #{tpu_custom_call.1} parent=5 // pred_region
      %s3773 = ssub.s32 %s20, 2
      // Predicated region
      $region85: #{tpu_custom_call.1} parent=83 // pred_check
        %p3774 = pneg %p348
      $region86: #{tpu_custom_call.1} parent=83 // pred_check_branch
        %3776 = sbr.rel (%p3774) target = $region88
      $region87: #{tpu_custom_call.1} parent=83 // pred_region
        %p3777 = scmp.lt.s32.totalorder %s26, 1
        %s3778 = scalar_select %p3777, %s26, 1
        %s3779 = smul.addr %s3778, 32
        %s3780 = smul.addr %s3779, 8
        %s3781 = scalar_lea.vmem %s14, %s3780
      $region88: #{tpu_custom_call.1} parent=83 // pred_fallthru
        _
    $region84: #{tpu_custom_call.1} parent=5 // pred_fallthru
      _
  $region6: #{tpu_custom_call.1} parent=0 // loop_footer
    %s24 = sadd.s32 1, %s20
  $region7: #{tpu_custom_call.1} parent=0 // loop_footer_branch
    %19 = sbr.rel target = $region3
  $region8: #{tpu_custom_call.1} parent=0 // loop_exit
    _

</llo_original>
